<compile_context>
chip_gen: v6e
topology: v6e:2x2x1
jax: 0.10.0
libtpu: 0.0.40
codegen_flags: <defaults>
</compile_context>

<pallas_src>
import jax
import jax.numpy as jnp
from jax.experimental import pallas as pl
from jax.experimental.pallas import tpu as pltpu


# ----------------------------------------------------------------------------
# Kernels
# ----------------------------------------------------------------------------
def _wholetile_kernel(x_ref, fmap_ref, w_ref, b_ref, r4_ref, out_ref):
    # x_ref:    (C, th, W)        original-resolution input rows
    # fmap_ref: (Cf, th, 4W)      skip tile in the (H, 4W) flattened-row view
    # w_ref:    (Chalf, C)        1x1-conv weight
    # b_ref:    (Chalf, 1)        bias (f32)
    # r4_ref:   (W, 4W)           nearest-neighbour 2x2 replication matrix
    # out_ref:  (Chalf+Cf, th, 4W)
    chalf = w_ref.shape[0]

    # 1x1 conv over channels on the whole tile (contract C) -- one MXU matmul.
    y = jax.lax.dot_general(
        w_ref[...], x_ref[...],
        dimension_numbers=(((1,), (0,)), ((), ())),
        preferred_element_type=jnp.float32)                 # (Chalf, th, W)
    y = y + b_ref[...][:, :, None]                          # bias added once (hoisted)

    # 2x2 nearest replication into the flattened (row, 4W) view (contract W).
    yw = jax.lax.dot_general(
        y, r4_ref[...],
        dimension_numbers=(((2,), (0,)), ((), ())),
        preferred_element_type=jnp.float32)                 # (Chalf, th, 4W)

    out_ref[0:chalf, :, :] = yw.astype(out_ref.dtype)       # dense, lane-wide store
    out_ref[chalf:, :, :] = fmap_ref[...]                   # in-kernel channel concat


def _perrow_kernel(x_ref, fmap_ref, w_ref, b_ref, r4_ref, out_ref):
    # Fallback: previously-validated per-row variant (small unrolled tile).
    chalf = w_ref.shape[0]
    th = x_ref.shape[1]
    w = w_ref[...]
    r4 = r4_ref[...]
    # Bias broadcast hoisted out of the loop (JAX does not CSE broadcast_in_dim).
    bw = jnp.broadcast_to(b_ref[...], (chalf, x_ref.shape[2]))
    for i in range(th):
        yi = jnp.dot(w, x_ref[:, i, :], preferred_element_type=jnp.float32) + bw
        yw = jnp.dot(yi, r4, preferred_element_type=jnp.float32)
        out_ref[0:chalf, i, :] = yw.astype(out_ref.dtype)
    out_ref[chalf:, :, :] = fmap_ref[...]


# ----------------------------------------------------------------------------
# Tiling / VMEM configuration (generation-aware)
# ----------------------------------------------------------------------------
def _vmem_config():
    """Returns (block budget bytes, vmem_limit_bytes, min grid steps)."""
    cap = None
    try:
        cap = getattr(pltpu.get_tpu_info(), "vmem_capacity_bytes", None)
    except Exception:
        cap = None
    if cap is None:
        return 20 * 1024 * 1024, 32 * 1024 * 1024, 2          # unknown: conservative
    if cap <= 64 * 1024 * 1024:
        # v7x-class: 64 MiB VMEM per TensorCore, 2 TCs -> keep >=4 grid steps so
        # both cores get balanced shards; leave headroom under 64 MiB.
        return 44 * 1024 * 1024, 52 * 1024 * 1024, 4
    # v5e / v6e: 128 MiB VMEM, single TensorCore -> take the largest fitting tile.
    return 80 * 1024 * 1024, 100 * 1024 * 1024, 2


def _pick_rows_per_tile(N, C, Cf, Cout, H, W, itemsize, budget, min_steps,
                        max_rows=None):
    """Largest sublane-legal input-row tile fitting a double-buffered budget."""
    W4 = 4 * W

    def block_bytes(th):
        x_b = C * th * W
        f_b = Cf * th * W4
        o_b = Cout * th * W4
        return 2 * (x_b + f_b + o_b) * itemsize      # x2 for double buffering

    legal = sorted(t for t in range(1, H + 1)
                   if H % t == 0 and (t % 8 == 0 or t == H))
    if max_rows is not None:
        capped = [t for t in legal if t <= max_rows]
        legal = capped or legal[:1]
    fitting = [t for t in legal if block_bytes(t) <= budget] or legal[:1]
    # Largest fitting tile that still leaves >= min_steps grid steps
    # (pipeline overlap; megacore sharding on 2-TC chips).
    for t in sorted(fitting, reverse=True):
        if N * (H // t) >= min_steps:
            return t
    return max(fitting)


# ----------------------------------------------------------------------------
# pallas_call builder + wrapper
# ----------------------------------------------------------------------------
def _build_call(kernel, N, C, Cf, Chalf, H, W, dtype, th, vmem_limit):
    Cout = Chalf + Cf
    W4 = 4 * W
    itemsize = jnp.dtype(dtype).itemsize
    cost = pl.CostEstimate(
        flops=2 * N * H * W * Chalf * (C + 4 * W),
        transcendentals=0,
        bytes_accessed=(N * C * H * W + N * Cf * H * W4 + N * Cout * H * W4) * itemsize,
    )
    return pl.pallas_call(
        kernel,
        out_shape=jax.ShapeDtypeStruct((N, Cout, H, W4), dtype),
        grid_spec=pltpu.PrefetchScalarGridSpec(
            num_scalar_prefetch=0,
            grid=(N, H // th),
            in_specs=[
                pl.BlockSpec((None, C, th, W), lambda n, r: (n, 0, r, 0)),
                pl.BlockSpec((None, Cf, th, W4), lambda n, r: (n, 0, r, 0)),
                pl.BlockSpec((Chalf, C), lambda n, r: (0, 0)),
                pl.BlockSpec((Chalf, 1), lambda n, r: (0, 0)),
                pl.BlockSpec((W, W4), lambda n, r: (0, 0)),
            ],
            out_specs=pl.BlockSpec((None, Cout, th, W4), lambda n, r: (n, 0, r, 0)),
        ),
        compiler_params=pltpu.CompilerParams(
            dimension_semantics=("parallel", "parallel"),
            vmem_limit_bytes=vmem_limit,
        ),
        cost_estimate=cost,
    )


def upsample_forward(x, feature_map, weight, bias):
    """Pallas equivalent of UpSample.forward(x, feature_map)."""
    N, C, H, W = x.shape
    Nf, Cf, H2, W2 = feature_map.shape
    Chalf = weight.shape[0]
    assert Nf == N and H2 == 2 * H and W2 == 2 * W and weight.shape[1] == C
    # The in-kernel concat writes both parts with the output dtype; require
    # matching dtypes instead of silently casting (torch.cat would promote).
    assert feature_map.dtype == x.dtype, "feature_map dtype must match x dtype"
    Cout = Chalf + Cf
    W4 = 4 * W
    itemsize = jnp.dtype(x.dtype).itemsize

    w2d = weight.reshape(Chalf, C).astype(x.dtype)
    b2d = bias.reshape(Chalf, 1).astype(jnp.float32)
    # Replication matrix for the (H, 4W) flattened-row view:
    # r4[j, m] = 1  iff  (m mod 2W) // 2 == j   (both column and row duplication).
    r4 = ((jnp.arange(W4)[None, :] % (2 * W)) // 2
          == jnp.arange(W)[:, None]).astype(x.dtype)
    # Free view of the skip tensor: (N, Cf, 2H, 2W) -> (N, Cf, H, 4W).
    fmap_flat = feature_map.reshape(N, Cf, H, W4)

    budget, vmem_limit, min_steps = _vmem_config()
    th = _pick_rows_per_tile(N, C, Cf, Cout, H, W, itemsize, budget, min_steps)

    args = (x, fmap_flat, w2d, b2d, r4)
    try:
        out = _build_call(_wholetile_kernel, N, C, Cf, Chalf, H, W,
                          x.dtype, th, vmem_limit)(*args)
        out = jax.block_until_ready(out)
    except Exception:
        # TODO(synk): whole-tile 2D x 3D dot_general rejected by this toolchain;
        # fall back to the previously-validated per-row kernel (conservative VMEM).
        th_fb = _pick_rows_per_tile(N, C, Cf, Cout, H, W, itemsize,
                                    budget=20 * 1024 * 1024, min_steps=2,
                                    max_rows=32)
        out = _build_call(_perrow_kernel, N, C, Cf, Chalf, H, W,
                          x.dtype, th_fb, 32 * 1024 * 1024)(*args)
        out = jax.block_until_ready(out)

    # Free inverse view: (N, Cout, H, 4W) -> (N, Cout, 2H, 2W).
    return out.reshape(N, Cout, 2 * H, 2 * W)


def ref_forward(x, feature_map, weight, bias):
    """Pure-JAX reference matching the PyTorch module."""
    up = jnp.repeat(jnp.repeat(x, 2, axis=2), 2, axis=3)
    w2d = weight.reshape(weight.shape[0], weight.shape[1])
    out = jnp.einsum("oc,nchw->nohw", w2d, up) + bias[None, :, None, None]
    return jnp.concatenate([out, feature_map], axis=1)


if __name__ == "__main__":
    key = jax.random.PRNGKey(0)
    kx, kf, kw, kb = jax.random.split(key, 4)

    N, C, H, W = 2, 4, 16, 16
    x = jax.random.normal(kx, (N, C, H, W), dtype=jnp.float32)
    feature_map = jax.random.normal(kf, (N, C // 2, 2 * H, 2 * W), dtype=jnp.float32)

    # nn.Conv2d(channel, channel // 2, 1, 1) parameters, deterministic init.
    weight = 0.1 * jax.random.normal(kw, (C // 2, C, 1, 1), dtype=jnp.float32)
    bias = 0.1 * jax.random.normal(kb, (C // 2,), dtype=jnp.float32)

    out = upsample_forward(x, feature_map, weight, bias)
    out = jax.block_until_ready(out)

    expected = ref_forward(x, feature_map, weight, bias)
    assert out.shape == (N, C // 2 + C // 2, 2 * H, 2 * W)
    assert jnp.allclose(out, expected, atol=1e-5, rtol=1e-5), "mismatch vs reference"

    print("KERNEL_OK")
</pallas_src>

<mosaic_0001>
module attributes {stable_mosaic.version = 11 : i64} {
  func.func @_wholetile_kernel(%arg0: i32, %arg1: i32, %arg2: memref<1x4x16x16xf32, #tpu.memory_space<vmem>>, %arg3: memref<1x2x16x64xf32, #tpu.memory_space<vmem>>, %arg4: memref<2x4xf32, #tpu.memory_space<vmem>>, %arg5: memref<2x1xf32, #tpu.memory_space<vmem>>, %arg6: memref<16x64xf32, #tpu.memory_space<vmem>>, %arg7: memref<1x4x16x64xf32, #tpu.memory_space<vmem>>) attributes {dimension_semantics = [#tpu.dimension_semantics<parallel>, #tpu.dimension_semantics<parallel>], iteration_bounds = array<i64: 2, 1>, scalar_prefetch = 0 : i64, scratch_operands = 0 : i64, tpu.core_type = #tpu.core_type<tc>, window_params = [{transform_indices = @transform_0, window_bounds = array<i64: 1, 4, 16, 16>}, {transform_indices = @transform_1, window_bounds = array<i64: 1, 2, 16, 64>}, {pipeline_mode = #tpu.pipeline_mode<synchronous>, transform_indices = @transform_2, window_bounds = array<i64: 2, 4>}, {pipeline_mode = #tpu.pipeline_mode<synchronous>, transform_indices = @transform_3, window_bounds = array<i64: 2, 1>}, {pipeline_mode = #tpu.pipeline_mode<synchronous>, transform_indices = @transform_4, window_bounds = array<i64: 16, 64>}, {transform_indices = @transform_5, window_bounds = array<i64: 1, 4, 16, 64>}]} {
    %c0 = arith.constant 0 : index
    %c0_0 = arith.constant 0 : index
    %0 = vector.load %arg4[%c0, %c0_0] : memref<2x4xf32, #tpu.memory_space<vmem>>, vector<2x4xf32>
    %c0_1 = arith.constant 0 : index
    %c0_2 = arith.constant 0 : index
    %c0_3 = arith.constant 0 : index
    %c0_4 = arith.constant 0 : index
    %1 = vector.load %arg2[%c0_1, %c0_2, %c0_3, %c0_4] : memref<1x4x16x16xf32, #tpu.memory_space<vmem>>, vector<1x4x16x16xf32>
    %2 = vector.shape_cast %1 : vector<1x4x16x16xf32> to vector<4x16x16xf32>
    %cst = arith.constant dense<0.000000e+00> : vector<2x16x16xf32>
    %3 = tpu.matmul %0, %2, %cst {dimension_numbers = #tpu.dot_dimension_numbers<[1], [0], [0], [1, 2], [0, 0, 1, 1, 1, 2], [], []>} : vector<2x4xf32>, vector<4x16x16xf32>, vector<2x16x16xf32> -> vector<2x16x16xf32>
    %c0_5 = arith.constant 0 : index
    %c0_6 = arith.constant 0 : index
    %4 = vector.load %arg5[%c0_5, %c0_6] : memref<2x1xf32, #tpu.memory_space<vmem>>, vector<2x1xf32>
    %5 = vector.shape_cast %4 : vector<2x1xf32> to vector<2x1x1xf32>
    %6 = vector.broadcast %5 : vector<2x1x1xf32> to vector<2x16x16xf32>
    %7 = arith.addf %3, %6 : vector<2x16x16xf32>
    %c0_7 = arith.constant 0 : index
    %c0_8 = arith.constant 0 : index
    %8 = vector.load %arg6[%c0_7, %c0_8] : memref<16x64xf32, #tpu.memory_space<vmem>>, vector<16x64xf32>
    %cst_9 = arith.constant dense<0.000000e+00> : vector<2x16x64xf32>
    %9 = tpu.matmul %7, %8, %cst_9 {dimension_numbers = #tpu.dot_dimension_numbers<[2], [0], [0, 1], [1], [0, 0, 0, 1, 1, 1], [], []>} : vector<2x16x16xf32>, vector<16x64xf32>, vector<2x16x64xf32> -> vector<2x16x64xf32>
    %c0_10 = arith.constant 0 : index
    %c0_11 = arith.constant 0 : index
    %c0_12 = arith.constant 0 : index
    %c0_13 = arith.constant 0 : index
    %10 = vector.load %arg7[%c0_10, %c0_11, %c0_12, %c0_13] : memref<1x4x16x64xf32, #tpu.memory_space<vmem>>, vector<1x2x16x64xf32>
    %11 = vector.shape_cast %10 : vector<1x2x16x64xf32> to vector<2x16x64xf32>
    %12 = vector.shape_cast %9 : vector<2x16x64xf32> to vector<1x2x16x64xf32>
    tpu.vector_store %arg7[%c0_10, %c0_11, %c0_12, %c0_13], %12 {strides = array<i32>} : memref<1x4x16x64xf32, #tpu.memory_space<vmem>>, vector<1x2x16x64xf32>,
    %c0_14 = arith.constant 0 : index
    %c0_15 = arith.constant 0 : index
    %c0_16 = arith.constant 0 : index
    %c0_17 = arith.constant 0 : index
    %13 = vector.load %arg3[%c0_14, %c0_15, %c0_16, %c0_17] : memref<1x2x16x64xf32, #tpu.memory_space<vmem>>, vector<1x2x16x64xf32>
    %14 = vector.shape_cast %13 : vector<1x2x16x64xf32> to vector<2x16x64xf32>
    %c0_18 = arith.constant 0 : index
    %c2 = arith.constant 2 : index
    %c0_19 = arith.constant 0 : index
    %c0_20 = arith.constant 0 : index
    %15 = vector.load %arg7[%c0_18, %c2, %c0_19, %c0_20] : memref<1x4x16x64xf32, #tpu.memory_space<vmem>>, vector<1x2x16x64xf32>
    %16 = vector.shape_cast %15 : vector<1x2x16x64xf32> to vector<2x16x64xf32>
    %17 = vector.shape_cast %14 : vector<2x16x64xf32> to vector<1x2x16x64xf32>
    tpu.vector_store %arg7[%c0_18, %c2, %c0_19, %c0_20], %17 {strides = array<i32>} : memref<1x4x16x64xf32, #tpu.memory_space<vmem>>, vector<1x2x16x64xf32>,
    return
  }
  func.func @transform_0(%arg0: i32, %arg1: i32) -> (i32, i32, i32, i32) {
    %c0_i32 = arith.constant 0 : i32
    %c0_i32_0 = arith.constant 0 : i32
    %c0_i32_1 = arith.constant 0 : i32
    return %arg0, %c0_i32, %arg1, %c0_i32_0 : i32, i32, i32, i32
  }
  func.func @transform_1(%arg0: i32, %arg1: i32) -> (i32, i32, i32, i32) {
    %c0_i32 = arith.constant 0 : i32
    %c0_i32_0 = arith.constant 0 : i32
    %c0_i32_1 = arith.constant 0 : i32
    return %arg0, %c0_i32, %arg1, %c0_i32_0 : i32, i32, i32, i32
  }
  func.func @transform_2(%arg0: i32, %arg1: i32) -> (i32, i32) {
    %c0_i32 = arith.constant 0 : i32
    %c0_i32_0 = arith.constant 0 : i32
    %c0_i32_1 = arith.constant 0 : i32
    return %c0_i32, %c0_i32_0 : i32, i32
  }
  func.func @transform_3(%arg0: i32, %arg1: i32) -> (i32, i32) {
    %c0_i32 = arith.constant 0 : i32
    %c0_i32_0 = arith.constant 0 : i32
    %c0_i32_1 = arith.constant 0 : i32
    return %c0_i32, %c0_i32_0 : i32, i32
  }
  func.func @transform_4(%arg0: i32, %arg1: i32) -> (i32, i32) {
    %c0_i32 = arith.constant 0 : i32
    %c0_i32_0 = arith.constant 0 : i32
    %c0_i32_1 = arith.constant 0 : i32
    return %c0_i32, %c0_i32_0 : i32, i32
  }
  func.func @transform_5(%arg0: i32, %arg1: i32) -> (i32, i32, i32, i32) {
    %c0_i32 = arith.constant 0 : i32
    %c0_i32_0 = arith.constant 0 : i32
    %c0_i32_1 = arith.constant 0 : i32
    return %arg0, %c0_i32, %arg1, %c0_i32_0 : i32, i32, i32, i32
  }
}

module attributes {stable_mosaic.version = 11 : i64} {
  func.func @_perrow_kernel(%arg0: i32, %arg1: i32, %arg2: memref<1x4x16x16xf32, #tpu.memory_space<vmem>>, %arg3: memref<1x2x16x64xf32, #tpu.memory_space<vmem>>, %arg4: memref<2x4xf32, #tpu.memory_space<vmem>>, %arg5: memref<2x1xf32, #tpu.memory_space<vmem>>, %arg6: memref<16x64xf32, #tpu.memory_space<vmem>>, %arg7: memref<1x4x16x64xf32, #tpu.memory_space<vmem>>) attributes {dimension_semantics = [#tpu.dimension_semantics<parallel>, #tpu.dimension_semantics<parallel>], iteration_bounds = array<i64: 2, 1>, scalar_prefetch = 0 : i64, scratch_operands = 0 : i64, tpu.core_type = #tpu.core_type<tc>, window_params = [{transform_indices = @transform_0, window_bounds = array<i64: 1, 4, 16, 16>}, {transform_indices = @transform_1, window_bounds = array<i64: 1, 2, 16, 64>}, {pipeline_mode = #tpu.pipeline_mode<synchronous>, transform_indices = @transform_2, window_bounds = array<i64: 2, 4>}, {pipeline_mode = #tpu.pipeline_mode<synchronous>, transform_indices = @transform_3, window_bounds = array<i64: 2, 1>}, {pipeline_mode = #tpu.pipeline_mode<synchronous>, transform_indices = @transform_4, window_bounds = array<i64: 16, 64>}, {transform_indices = @transform_5, window_bounds = array<i64: 1, 4, 16, 64>}]} {
    %c0 = arith.constant 0 : index
    %c0_0 = arith.constant 0 : index
    %0 = vector.load %arg4[%c0, %c0_0] : memref<2x4xf32, #tpu.memory_space<vmem>>, vector<2x4xf32>
    %c0_1 = arith.constant 0 : index
    %c0_2 = arith.constant 0 : index
    %1 = vector.load %arg6[%c0_1, %c0_2] : memref<16x64xf32, #tpu.memory_space<vmem>>, vector<16x64xf32>
    %c0_3 = arith.constant 0 : index
    %c0_4 = arith.constant 0 : index
    %2 = vector.load %arg5[%c0_3, %c0_4] : memref<2x1xf32, #tpu.memory_space<vmem>>, vector<2x1xf32>
    %3 = vector.shape_cast %2 : vector<2x1xf32> to vector<2x1xf32>
    %4 = vector.broadcast %3 : vector<2x1xf32> to vector<2x16xf32>
    %c0_5 = arith.constant 0 : index
    %c0_6 = arith.constant 0 : index
    %c0_7 = arith.constant 0 : index
    %c0_8 = arith.constant 0 : index
    %5 = vector.load %arg2[%c0_5, %c0_6, %c0_7, %c0_8] : memref<1x4x16x16xf32, #tpu.memory_space<vmem>>, vector<1x4x1x16xf32>
    %6 = vector.shape_cast %5 : vector<1x4x1x16xf32> to vector<4x16xf32>
    %cst = arith.constant dense<0.000000e+00> : vector<2x16xf32>
    %7 = tpu.matmul %0, %6, %cst {dimension_numbers = #tpu.dot_dimension_numbers<[1], [0], [0], [1], [0, 0, 1, 1], [], []>} : vector<2x4xf32>, vector<4x16xf32>, vector<2x16xf32> -> vector<2x16xf32>
    %8 = arith.addf %7, %4 : vector<2x16xf32>
    %cst_9 = arith.constant dense<0.000000e+00> : vector<2x64xf32>
    %9 = tpu.matmul %8, %1, %cst_9 {dimension_numbers = #tpu.dot_dimension_numbers<[1], [0], [0], [1], [0, 0, 1, 1], [], []>} : vector<2x16xf32>, vector<16x64xf32>, vector<2x64xf32> -> vector<2x64xf32>
    %c0_10 = arith.constant 0 : index
    %c0_11 = arith.constant 0 : index
    %c0_12 = arith.constant 0 : index
    %c0_13 = arith.constant 0 : index
    %10 = vector.load %arg7[%c0_10, %c0_11, %c0_12, %c0_13] : memref<1x4x16x64xf32, #tpu.memory_space<vmem>>, vector<1x2x1x64xf32>
    %11 = vector.shape_cast %10 : vector<1x2x1x64xf32> to vector<2x64xf32>
    %12 = vector.shape_cast %9 : vector<2x64xf32> to vector<1x2x1x64xf32>
    tpu.vector_store %arg7[%c0_10, %c0_11, %c0_12, %c0_13], %12 {strides = array<i32>} : memref<1x4x16x64xf32, #tpu.memory_space<vmem>>, vector<1x2x1x64xf32>,
    %c0_14 = arith.constant 0 : index
    %c0_15 = arith.constant 0 : index
    %c1 = arith.constant 1 : index
    %c0_16 = arith.constant 0 : index
    %13 = vector.load %arg2[%c0_14, %c0_15, %c1, %c0_16] : memref<1x4x16x16xf32, #tpu.memory_space<vmem>>, vector<1x4x1x16xf32>
    %14 = vector.shape_cast %13 : vector<1x4x1x16xf32> to vector<4x16xf32>
    %cst_17 = arith.constant dense<0.000000e+00> : vector<2x16xf32>
    %15 = tpu.matmul %0, %14, %cst_17 {dimension_numbers = #tpu.dot_dimension_numbers<[1], [0], [0], [1], [0, 0, 1, 1], [], []>} : vector<2x4xf32>, vector<4x16xf32>, vector<2x16xf32> -> vector<2x16xf32>
    %16 = arith.addf %15, %4 : vector<2x16xf32>
    %cst_18 = arith.constant dense<0.000000e+00> : vector<2x64xf32>
    %17 = tpu.matmul %16, %1, %cst_18 {dimension_numbers = #tpu.dot_dimension_numbers<[1], [0], [0], [1], [0, 0, 1, 1], [], []>} : vector<2x16xf32>, vector<16x64xf32>, vector<2x64xf32> -> vector<2x64xf32>
    %c0_19 = arith.constant 0 : index
    %c0_20 = arith.constant 0 : index
    %c1_21 = arith.constant 1 : index
    %c0_22 = arith.constant 0 : index
    %18 = vector.load %arg7[%c0_19, %c0_20, %c1_21, %c0_22] : memref<1x4x16x64xf32, #tpu.memory_space<vmem>>, vector<1x2x1x64xf32>
    %19 = vector.shape_cast %18 : vector<1x2x1x64xf32> to vector<2x64xf32>
    %20 = vector.shape_cast %17 : vector<2x64xf32> to vector<1x2x1x64xf32>
    tpu.vector_store %arg7[%c0_19, %c0_20, %c1_21, %c0_22], %20 {strides = array<i32>} : memref<1x4x16x64xf32, #tpu.memory_space<vmem>>, vector<1x2x1x64xf32>,
    %c0_23 = arith.constant 0 : index
    %c0_24 = arith.constant 0 : index
    %c2 = arith.constant 2 : index
    %c0_25 = arith.constant 0 : index
    %21 = vector.load %arg2[%c0_23, %c0_24, %c2, %c0_25] : memref<1x4x16x16xf32, #tpu.memory_space<vmem>>, vector<1x4x1x16xf32>
    %22 = vector.shape_cast %21 : vector<1x4x1x16xf32> to vector<4x16xf32>
    %cst_26 = arith.constant dense<0.000000e+00> : vector<2x16xf32>
    %23 = tpu.matmul %0, %22, %cst_26 {dimension_numbers = #tpu.dot_dimension_numbers<[1], [0], [0], [1], [0, 0, 1, 1], [], []>} : vector<2x4xf32>, vector<4x16xf32>, vector<2x16xf32> -> vector<2x16xf32>
    %24 = arith.addf %23, %4 : vector<2x16xf32>
    %cst_27 = arith.constant dense<0.000000e+00> : vector<2x64xf32>
    %25 = tpu.matmul %24, %1, %cst_27 {dimension_numbers = #tpu.dot_dimension_numbers<[1], [0], [0], [1], [0, 0, 1, 1], [], []>} : vector<2x16xf32>, vector<16x64xf32>, vector<2x64xf32> -> vector<2x64xf32>
    %c0_28 = arith.constant 0 : index
    %c0_29 = arith.constant 0 : index
    %c2_30 = arith.constant 2 : index
    %c0_31 = arith.constant 0 : index
    %26 = vector.load %arg7[%c0_28, %c0_29, %c2_30, %c0_31] : memref<1x4x16x64xf32, #tpu.memory_space<vmem>>, vector<1x2x1x64xf32>
    %27 = vector.shape_cast %26 : vector<1x2x1x64xf32> to vector<2x64xf32>
    %28 = vector.shape_cast %25 : vector<2x64xf32> to vector<1x2x1x64xf32>
    tpu.vector_store %arg7[%c0_28, %c0_29, %c2_30, %c0_31], %28 {strides = array<i32>} : memref<1x4x16x64xf32, #tpu.memory_space<vmem>>, vector<1x2x1x64xf32>,
    %c0_32 = arith.constant 0 : index
    %c0_33 = arith.constant 0 : index
    %c3 = arith.constant 3 : index
    %c0_34 = arith.constant 0 : index
    %29 = vector.load %arg2[%c0_32, %c0_33, %c3, %c0_34] : memref<1x4x16x16xf32, #tpu.memory_space<vmem>>, vector<1x4x1x16xf32>
    %30 = vector.shape_cast %29 : vector<1x4x1x16xf32> to vector<4x16xf32>
    %cst_35 = arith.constant dense<0.000000e+00> : vector<2x16xf32>
    %31 = tpu.matmul %0, %30, %cst_35 {dimension_numbers = #tpu.dot_dimension_numbers<[1], [0], [0], [1], [0, 0, 1, 1], [], []>} : vector<2x4xf32>, vector<4x16xf32>, vector<2x16xf32> -> vector<2x16xf32>
    %32 = arith.addf %31, %4 : vector<2x16xf32>
    %cst_36 = arith.constant dense<0.000000e+00> : vector<2x64xf32>
    %33 = tpu.matmul %32, %1, %cst_36 {dimension_numbers = #tpu.dot_dimension_numbers<[1], [0], [0], [1], [0, 0, 1, 1], [], []>} : vector<2x16xf32>, vector<16x64xf32>, vector<2x64xf32> -> vector<2x64xf32>
    %c0_37 = arith.constant 0 : index
    %c0_38 = arith.constant 0 : index
    %c3_39 = arith.constant 3 : index
    %c0_40 = arith.constant 0 : index
    %34 = vector.load %arg7[%c0_37, %c0_38, %c3_39, %c0_40] : memref<1x4x16x64xf32, #tpu.memory_space<vmem>>, vector<1x2x1x64xf32>
    %35 = vector.shape_cast %34 : vector<1x2x1x64xf32> to vector<2x64xf32>
    %36 = vector.shape_cast %33 : vector<2x64xf32> to vector<1x2x1x64xf32>
    tpu.vector_store %arg7[%c0_37, %c0_38, %c3_39, %c0_40], %36 {strides = array<i32>} : memref<1x4x16x64xf32, #tpu.memory_space<vmem>>, vector<1x2x1x64xf32>,
    %c0_41 = arith.constant 0 : index
    %c0_42 = arith.constant 0 : index
    %c4 = arith.constant 4 : index
    %c0_43 = arith.constant 0 : index
    %37 = vector.load %arg2[%c0_41, %c0_42, %c4, %c0_43] : memref<1x4x16x16xf32, #tpu.memory_space<vmem>>, vector<1x4x1x16xf32>
    %38 = vector.shape_cast %37 : vector<1x4x1x16xf32> to vector<4x16xf32>
    %cst_44 = arith.constant dense<0.000000e+00> : vector<2x16xf32>
    %39 = tpu.matmul %0, %38, %cst_44 {dimension_numbers = #tpu.dot_dimension_numbers<[1], [0], [0], [1], [0, 0, 1, 1], [], []>} : vector<2x4xf32>, vector<4x16xf32>, vector<2x16xf32> -> vector<2x16xf32>
    %40 = arith.addf %39, %4 : vector<2x16xf32>
    %cst_45 = arith.constant dense<0.000000e+00> : vector<2x64xf32>
    %41 = tpu.matmul %40, %1, %cst_45 {dimension_numbers = #tpu.dot_dimension_numbers<[1], [0], [0], [1], [0, 0, 1, 1], [], []>} : vector<2x16xf32>, vector<16x64xf32>, vector<2x64xf32> -> vector<2x64xf32>
    %c0_46 = arith.constant 0 : index
    %c0_47 = arith.constant 0 : index
    %c4_48 = arith.constant 4 : index
    %c0_49 = arith.constant 0 : index
    %42 = vector.load %arg7[%c0_46, %c0_47, %c4_48, %c0_49] : memref<1x4x16x64xf32, #tpu.memory_space<vmem>>, vector<1x2x1x64xf32>
    %43 = vector.shape_cast %42 : vector<1x2x1x64xf32> to vector<2x64xf32>
    %44 = vector.shape_cast %41 : vector<2x64xf32> to vector<1x2x1x64xf32>
    tpu.vector_store %arg7[%c0_46, %c0_47, %c4_48, %c0_49], %44 {strides = array<i32>} : memref<1x4x16x64xf32, #tpu.memory_space<vmem>>, vector<1x2x1x64xf32>,
    %c0_50 = arith.constant 0 : index
    %c0_51 = arith.constant 0 : index
    %c5 = arith.constant 5 : index
    %c0_52 = arith.constant 0 : index
    %45 = vector.load %arg2[%c0_50, %c0_51, %c5, %c0_52] : memref<1x4x16x16xf32, #tpu.memory_space<vmem>>, vector<1x4x1x16xf32>
    %46 = vector.shape_cast %45 : vector<1x4x1x16xf32> to vector<4x16xf32>
    %cst_53 = arith.constant dense<0.000000e+00> : vector<2x16xf32>
    %47 = tpu.matmul %0, %46, %cst_53 {dimension_numbers = #tpu.dot_dimension_numbers<[1], [0], [0], [1], [0, 0, 1, 1], [], []>} : vector<2x4xf32>, vector<4x16xf32>, vector<2x16xf32> -> vector<2x16xf32>
    %48 = arith.addf %47, %4 : vector<2x16xf32>
    %cst_54 = arith.constant dense<0.000000e+00> : vector<2x64xf32>
    %49 = tpu.matmul %48, %1, %cst_54 {dimension_numbers = #tpu.dot_dimension_numbers<[1], [0], [0], [1], [0, 0, 1, 1], [], []>} : vector<2x16xf32>, vector<16x64xf32>, vector<2x64xf32> -> vector<2x64xf32>
    %c0_55 = arith.constant 0 : index
    %c0_56 = arith.constant 0 : index
    %c5_57 = arith.constant 5 : index
    %c0_58 = arith.constant 0 : index
    %50 = vector.load %arg7[%c0_55, %c0_56, %c5_57, %c0_58] : memref<1x4x16x64xf32, #tpu.memory_space<vmem>>, vector<1x2x1x64xf32>
    %51 = vector.shape_cast %50 : vector<1x2x1x64xf32> to vector<2x64xf32>
    %52 = vector.shape_cast %49 : vector<2x64xf32> to vector<1x2x1x64xf32>
    tpu.vector_store %arg7[%c0_55, %c0_56, %c5_57, %c0_58], %52 {strides = array<i32>} : memref<1x4x16x64xf32, #tpu.memory_space<vmem>>, vector<1x2x1x64xf32>,
    %c0_59 = arith.constant 0 : index
    %c0_60 = arith.constant 0 : index
    %c6 = arith.constant 6 : index
    %c0_61 = arith.constant 0 : index
    %53 = vector.load %arg2[%c0_59, %c0_60, %c6, %c0_61] : memref<1x4x16x16xf32, #tpu.memory_space<vmem>>, vector<1x4x1x16xf32>
    %54 = vector.shape_cast %53 : vector<1x4x1x16xf32> to vector<4x16xf32>
    %cst_62 = arith.constant dense<0.000000e+00> : vector<2x16xf32>
    %55 = tpu.matmul %0, %54, %cst_62 {dimension_numbers = #tpu.dot_dimension_numbers<[1], [0], [0], [1], [0, 0, 1, 1], [], []>} : vector<2x4xf32>, vector<4x16xf32>, vector<2x16xf32> -> vector<2x16xf32>
    %56 = arith.addf %55, %4 : vector<2x16xf32>
    %cst_63 = arith.constant dense<0.000000e+00> : vector<2x64xf32>
    %57 = tpu.matmul %56, %1, %cst_63 {dimension_numbers = #tpu.dot_dimension_numbers<[1], [0], [0], [1], [0, 0, 1, 1], [], []>} : vector<2x16xf32>, vector<16x64xf32>, vector<2x64xf32> -> vector<2x64xf32>
    %c0_64 = arith.constant 0 : index
    %c0_65 = arith.constant 0 : index
    %c6_66 = arith.constant 6 : index
    %c0_67 = arith.constant 0 : index
    %58 = vector.load %arg7[%c0_64, %c0_65, %c6_66, %c0_67] : memref<1x4x16x64xf32, #tpu.memory_space<vmem>>, vector<1x2x1x64xf32>
    %59 = vector.shape_cast %58 : vector<1x2x1x64xf32> to vector<2x64xf32>
    %60 = vector.shape_cast %57 : vector<2x64xf32> to vector<1x2x1x64xf32>
    tpu.vector_store %arg7[%c0_64, %c0_65, %c6_66, %c0_67], %60 {strides = array<i32>} : memref<1x4x16x64xf32, #tpu.memory_space<vmem>>, vector<1x2x1x64xf32>,
    %c0_68 = arith.constant 0 : index
    %c0_69 = arith.constant 0 : index
    %c7 = arith.constant 7 : index
    %c0_70 = arith.constant 0 : index
    %61 = vector.load %arg2[%c0_68, %c0_69, %c7, %c0_70] : memref<1x4x16x16xf32, #tpu.memory_space<vmem>>, vector<1x4x1x16xf32>
    %62 = vector.shape_cast %61 : vector<1x4x1x16xf32> to vector<4x16xf32>
    %cst_71 = arith.constant dense<0.000000e+00> : vector<2x16xf32>
    %63 = tpu.matmul %0, %62, %cst_71 {dimension_numbers = #tpu.dot_dimension_numbers<[1], [0], [0], [1], [0, 0, 1, 1], [], []>} : vector<2x4xf32>, vector<4x16xf32>, vector<2x16xf32> -> vector<2x16xf32>
    %64 = arith.addf %63, %4 : vector<2x16xf32>
    %cst_72 = arith.constant dense<0.000000e+00> : vector<2x64xf32>
    %65 = tpu.matmul %64, %1, %cst_72 {dimension_numbers = #tpu.dot_dimension_numbers<[1], [0], [0], [1], [0, 0, 1, 1], [], []>} : vector<2x16xf32>, vector<16x64xf32>, vector<2x64xf32> -> vector<2x64xf32>
    %c0_73 = arith.constant 0 : index
    %c0_74 = arith.constant 0 : index
    %c7_75 = arith.constant 7 : index
    %c0_76 = arith.constant 0 : index
    %66 = vector.load %arg7[%c0_73, %c0_74, %c7_75, %c0_76] : memref<1x4x16x64xf32, #tpu.memory_space<vmem>>, vector<1x2x1x64xf32>
    %67 = vector.shape_cast %66 : vector<1x2x1x64xf32> to vector<2x64xf32>
    %68 = vector.shape_cast %65 : vector<2x64xf32> to vector<1x2x1x64xf32>
    tpu.vector_store %arg7[%c0_73, %c0_74, %c7_75, %c0_76], %68 {strides = array<i32>} : memref<1x4x16x64xf32, #tpu.memory_space<vmem>>, vector<1x2x1x64xf32>,
    %c0_77 = arith.constant 0 : index
    %c0_78 = arith.constant 0 : index
    %c8 = arith.constant 8 : index
    %c0_79 = arith.constant 0 : index
    %69 = vector.load %arg2[%c0_77, %c0_78, %c8, %c0_79] : memref<1x4x16x16xf32, #tpu.memory_space<vmem>>, vector<1x4x1x16xf32>
    %70 = vector.shape_cast %69 : vector<1x4x1x16xf32> to vector<4x16xf32>
    %cst_80 = arith.constant dense<0.000000e+00> : vector<2x16xf32>
    %71 = tpu.matmul %0, %70, %cst_80 {dimension_numbers = #tpu.dot_dimension_numbers<[1], [0], [0], [1], [0, 0, 1, 1], [], []>} : vector<2x4xf32>, vector<4x16xf32>, vector<2x16xf32> -> vector<2x16xf32>
    %72 = arith.addf %71, %4 : vector<2x16xf32>
    %cst_81 = arith.constant dense<0.000000e+00> : vector<2x64xf32>
    %73 = tpu.matmul %72, %1, %cst_81 {dimension_numbers = #tpu.dot_dimension_numbers<[1], [0], [0], [1], [0, 0, 1, 1], [], []>} : vector<2x16xf32>, vector<16x64xf32>, vector<2x64xf32> -> vector<2x64xf32>
    %c0_82 = arith.constant 0 : index
    %c0_83 = arith.constant 0 : index
    %c8_84 = arith.constant 8 : index
    %c0_85 = arith.constant 0 : index
    %74 = vector.load %arg7[%c0_82, %c0_83, %c8_84, %c0_85] : memref<1x4x16x64xf32, #tpu.memory_space<vmem>>, vector<1x2x1x64xf32>
    %75 = vector.shape_cast %74 : vector<1x2x1x64xf32> to vector<2x64xf32>
    %76 = vector.shape_cast %73 : vector<2x64xf32> to vector<1x2x1x64xf32>
    tpu.vector_store %arg7[%c0_82, %c0_83, %c8_84, %c0_85], %76 {strides = array<i32>} : memref<1x4x16x64xf32, #tpu.memory_space<vmem>>, vector<1x2x1x64xf32>,
    %c0_86 = arith.constant 0 : index
    %c0_87 = arith.constant 0 : index
    %c9 = arith.constant 9 : index
    %c0_88 = arith.constant 0 : index
    %77 = vector.load %arg2[%c0_86, %c0_87, %c9, %c0_88] : memref<1x4x16x16xf32, #tpu.memory_space<vmem>>, vector<1x4x1x16xf32>
    %78 = vector.shape_cast %77 : vector<1x4x1x16xf32> to vector<4x16xf32>
    %cst_89 = arith.constant dense<0.000000e+00> : vector<2x16xf32>
    %79 = tpu.matmul %0, %78, %cst_89 {dimension_numbers = #tpu.dot_dimension_numbers<[1], [0], [0], [1], [0, 0, 1, 1], [], []>} : vector<2x4xf32>, vector<4x16xf32>, vector<2x16xf32> -> vector<2x16xf32>
    %80 = arith.addf %79, %4 : vector<2x16xf32>
    %cst_90 = arith.constant dense<0.000000e+00> : vector<2x64xf32>
    %81 = tpu.matmul %80, %1, %cst_90 {dimension_numbers = #tpu.dot_dimension_numbers<[1], [0], [0], [1], [0, 0, 1, 1], [], []>} : vector<2x16xf32>, vector<16x64xf32>, vector<2x64xf32> -> vector<2x64xf32>
    %c0_91 = arith.constant 0 : index
    %c0_92 = arith.constant 0 : index
    %c9_93 = arith.constant 9 : index
    %c0_94 = arith.constant 0 : index
    %82 = vector.load %arg7[%c0_91, %c0_92, %c9_93, %c0_94] : memref<1x4x16x64xf32, #tpu.memory_space<vmem>>, vector<1x2x1x64xf32>
    %83 = vector.shape_cast %82 : vector<1x2x1x64xf32> to vector<2x64xf32>
    %84 = vector.shape_cast %81 : vector<2x64xf32> to vector<1x2x1x64xf32>
    tpu.vector_store %arg7[%c0_91, %c0_92, %c9_93, %c0_94], %84 {strides = array<i32>} : memref<1x4x16x64xf32, #tpu.memory_space<vmem>>, vector<1x2x1x64xf32>,
    %c0_95 = arith.constant 0 : index
    %c0_96 = arith.constant 0 : index
    %c10 = arith.constant 10 : index
    %c0_97 = arith.constant 0 : index
    %85 = vector.load %arg2[%c0_95, %c0_96, %c10, %c0_97] : memref<1x4x16x16xf32, #tpu.memory_space<vmem>>, vector<1x4x1x16xf32>
    %86 = vector.shape_cast %85 : vector<1x4x1x16xf32> to vector<4x16xf32>
    %cst_98 = arith.constant dense<0.000000e+00> : vector<2x16xf32>
    %87 = tpu.matmul %0, %86, %cst_98 {dimension_numbers = #tpu.dot_dimension_numbers<[1], [0], [0], [1], [0, 0, 1, 1], [], []>} : vector<2x4xf32>, vector<4x16xf32>, vector<2x16xf32> -> vector<2x16xf32>
    %88 = arith.addf %87, %4 : vector<2x16xf32>
    %cst_99 = arith.constant dense<0.000000e+00> : vector<2x64xf32>
    %89 = tpu.matmul %88, %1, %cst_99 {dimension_numbers = #tpu.dot_dimension_numbers<[1], [0], [0], [1], [0, 0, 1, 1], [], []>} : vector<2x16xf32>, vector<16x64xf32>, vector<2x64xf32> -> vector<2x64xf32>
    %c0_100 = arith.constant 0 : index
    %c0_101 = arith.constant 0 : index
    %c10_102 = arith.constant 10 : index
    %c0_103 = arith.constant 0 : index
    %90 = vector.load %arg7[%c0_100, %c0_101, %c10_102, %c0_103] : memref<1x4x16x64xf32, #tpu.memory_space<vmem>>, vector<1x2x1x64xf32>
    %91 = vector.shape_cast %90 : vector<1x2x1x64xf32> to vector<2x64xf32>
    %92 = vector.shape_cast %89 : vector<2x64xf32> to vector<1x2x1x64xf32>
    tpu.vector_store %arg7[%c0_100, %c0_101, %c10_102, %c0_103], %92 {strides = array<i32>} : memref<1x4x16x64xf32, #tpu.memory_space<vmem>>, vector<1x2x1x64xf32>,
    %c0_104 = arith.constant 0 : index
    %c0_105 = arith.constant 0 : index
    %c11 = arith.constant 11 : index
    %c0_106 = arith.constant 0 : index
    %93 = vector.load %arg2[%c0_104, %c0_105, %c11, %c0_106] : memref<1x4x16x16xf32, #tpu.memory_space<vmem>>, vector<1x4x1x16xf32>
    %94 = vector.shape_cast %93 : vector<1x4x1x16xf32> to vector<4x16xf32>
    %cst_107 = arith.constant dense<0.000000e+00> : vector<2x16xf32>
    %95 = tpu.matmul %0, %94, %cst_107 {dimension_numbers = #tpu.dot_dimension_numbers<[1], [0], [0], [1], [0, 0, 1, 1], [], []>} : vector<2x4xf32>, vector<4x16xf32>, vector<2x16xf32> -> vector<2x16xf32>
    %96 = arith.addf %95, %4 : vector<2x16xf32>
    %cst_108 = arith.constant dense<0.000000e+00> : vector<2x64xf32>
    %97 = tpu.matmul %96, %1, %cst_108 {dimension_numbers = #tpu.dot_dimension_numbers<[1], [0], [0], [1], [0, 0, 1, 1], [], []>} : vector<2x16xf32>, vector<16x64xf32>, vector<2x64xf32> -> vector<2x64xf32>
    %c0_109 = arith.constant 0 : index
    %c0_110 = arith.constant 0 : index
    %c11_111 = arith.constant 11 : index
    %c0_112 = arith.constant 0 : index
    %98 = vector.load %arg7[%c0_109, %c0_110, %c11_111, %c0_112] : memref<1x4x16x64xf32, #tpu.memory_space<vmem>>, vector<1x2x1x64xf32>
    %99 = vector.shape_cast %98 : vector<1x2x1x64xf32> to vector<2x64xf32>
    %100 = vector.shape_cast %97 : vector<2x64xf32> to vector<1x2x1x64xf32>
    tpu.vector_store %arg7[%c0_109, %c0_110, %c11_111, %c0_112], %100 {strides = array<i32>} : memref<1x4x16x64xf32, #tpu.memory_space<vmem>>, vector<1x2x1x64xf32>,
    %c0_113 = arith.constant 0 : index
    %c0_114 = arith.constant 0 : index
    %c12 = arith.constant 12 : index
    %c0_115 = arith.constant 0 : index
    %101 = vector.load %arg2[%c0_113, %c0_114, %c12, %c0_115] : memref<1x4x16x16xf32, #tpu.memory_space<vmem>>, vector<1x4x1x16xf32>
    %102 = vector.shape_cast %101 : vector<1x4x1x16xf32> to vector<4x16xf32>
    %cst_116 = arith.constant dense<0.000000e+00> : vector<2x16xf32>
    %103 = tpu.matmul %0, %102, %cst_116 {dimension_numbers = #tpu.dot_dimension_numbers<[1], [0], [0], [1], [0, 0, 1, 1], [], []>} : vector<2x4xf32>, vector<4x16xf32>, vector<2x16xf32> -> vector<2x16xf32>
    %104 = arith.addf %103, %4 : vector<2x16xf32>
    %cst_117 = arith.constant dense<0.000000e+00> : vector<2x64xf32>
    %105 = tpu.matmul %104, %1, %cst_117 {dimension_numbers = #tpu.dot_dimension_numbers<[1], [0], [0], [1], [0, 0, 1, 1], [], []>} : vector<2x16xf32>, vector<16x64xf32>, vector<2x64xf32> -> vector<2x64xf32>
    %c0_118 = arith.constant 0 : index
    %c0_119 = arith.constant 0 : index
    %c12_120 = arith.constant 12 : index
    %c0_121 = arith.constant 0 : index
    %106 = vector.load %arg7[%c0_118, %c0_119, %c12_120, %c0_121] : memref<1x4x16x64xf32, #tpu.memory_space<vmem>>, vector<1x2x1x64xf32>
    %107 = vector.shape_cast %106 : vector<1x2x1x64xf32> to vector<2x64xf32>
    %108 = vector.shape_cast %105 : vector<2x64xf32> to vector<1x2x1x64xf32>
    tpu.vector_store %arg7[%c0_118, %c0_119, %c12_120, %c0_121], %108 {strides = array<i32>} : memref<1x4x16x64xf32, #tpu.memory_space<vmem>>, vector<1x2x1x64xf32>,
    %c0_122 = arith.constant 0 : index
    %c0_123 = arith.constant 0 : index
    %c13 = arith.constant 13 : index
    %c0_124 = arith.constant 0 : index
    %109 = vector.load %arg2[%c0_122, %c0_123, %c13, %c0_124] : memref<1x4x16x16xf32, #tpu.memory_space<vmem>>, vector<1x4x1x16xf32>
    %110 = vector.shape_cast %109 : vector<1x4x1x16xf32> to vector<4x16xf32>
    %cst_125 = arith.constant dense<0.000000e+00> : vector<2x16xf32>
    %111 = tpu.matmul %0, %110, %cst_125 {dimension_numbers = #tpu.dot_dimension_numbers<[1], [0], [0], [1], [0, 0, 1, 1], [], []>} : vector<2x4xf32>, vector<4x16xf32>, vector<2x16xf32> -> vector<2x16xf32>
    %112 = arith.addf %111, %4 : vector<2x16xf32>
    %cst_126 = arith.constant dense<0.000000e+00> : vector<2x64xf32>
    %113 = tpu.matmul %112, %1, %cst_126 {dimension_numbers = #tpu.dot_dimension_numbers<[1], [0], [0], [1], [0, 0, 1, 1], [], []>} : vector<2x16xf32>, vector<16x64xf32>, vector<2x64xf32> -> vector<2x64xf32>
    %c0_127 = arith.constant 0 : index
    %c0_128 = arith.constant 0 : index
    %c13_129 = arith.constant 13 : index
    %c0_130 = arith.constant 0 : index
    %114 = vector.load %arg7[%c0_127, %c0_128, %c13_129, %c0_130] : memref<1x4x16x64xf32, #tpu.memory_space<vmem>>, vector<1x2x1x64xf32>
    %115 = vector.shape_cast %114 : vector<1x2x1x64xf32> to vector<2x64xf32>
    %116 = vector.shape_cast %113 : vector<2x64xf32> to vector<1x2x1x64xf32>
    tpu.vector_store %arg7[%c0_127, %c0_128, %c13_129, %c0_130], %116 {strides = array<i32>} : memref<1x4x16x64xf32, #tpu.memory_space<vmem>>, vector<1x2x1x64xf32>,
    %c0_131 = arith.constant 0 : index
    %c0_132 = arith.constant 0 : index
    %c14 = arith.constant 14 : index
    %c0_133 = arith.constant 0 : index
    %117 = vector.load %arg2[%c0_131, %c0_132, %c14, %c0_133] : memref<1x4x16x16xf32, #tpu.memory_space<vmem>>, vector<1x4x1x16xf32>
    %118 = vector.shape_cast %117 : vector<1x4x1x16xf32> to vector<4x16xf32>
    %cst_134 = arith.constant dense<0.000000e+00> : vector<2x16xf32>
    %119 = tpu.matmul %0, %118, %cst_134 {dimension_numbers = #tpu.dot_dimension_numbers<[1], [0], [0], [1], [0, 0, 1, 1], [], []>} : vector<2x4xf32>, vector<4x16xf32>, vector<2x16xf32> -> vector<2x16xf32>
    %120 = arith.addf %119, %4 : vector<2x16xf32>
    %cst_135 = arith.constant dense<0.000000e+00> : vector<2x64xf32>
    %121 = tpu.matmul %120, %1, %cst_135 {dimension_numbers = #tpu.dot_dimension_numbers<[1], [0], [0], [1], [0, 0, 1, 1], [], []>} : vector<2x16xf32>, vector<16x64xf32>, vector<2x64xf32> -> vector<2x64xf32>
    %c0_136 = arith.constant 0 : index
    %c0_137 = arith.constant 0 : index
    %c14_138 = arith.constant 14 : index
    %c0_139 = arith.constant 0 : index
    %122 = vector.load %arg7[%c0_136, %c0_137, %c14_138, %c0_139] : memref<1x4x16x64xf32, #tpu.memory_space<vmem>>, vector<1x2x1x64xf32>
    %123 = vector.shape_cast %122 : vector<1x2x1x64xf32> to vector<2x64xf32>
    %124 = vector.shape_cast %121 : vector<2x64xf32> to vector<1x2x1x64xf32>
    tpu.vector_store %arg7[%c0_136, %c0_137, %c14_138, %c0_139], %124 {strides = array<i32>} : memref<1x4x16x64xf32, #tpu.memory_space<vmem>>, vector<1x2x1x64xf32>,
    %c0_140 = arith.constant 0 : index
    %c0_141 = arith.constant 0 : index
    %c15 = arith.constant 15 : index
    %c0_142 = arith.constant 0 : index
    %125 = vector.load %arg2[%c0_140, %c0_141, %c15, %c0_142] : memref<1x4x16x16xf32, #tpu.memory_space<vmem>>, vector<1x4x1x16xf32>
    %126 = vector.shape_cast %125 : vector<1x4x1x16xf32> to vector<4x16xf32>
    %cst_143 = arith.constant dense<0.000000e+00> : vector<2x16xf32>
    %127 = tpu.matmul %0, %126, %cst_143 {dimension_numbers = #tpu.dot_dimension_numbers<[1], [0], [0], [1], [0, 0, 1, 1], [], []>} : vector<2x4xf32>, vector<4x16xf32>, vector<2x16xf32> -> vector<2x16xf32>
    %128 = arith.addf %127, %4 : vector<2x16xf32>
    %cst_144 = arith.constant dense<0.000000e+00> : vector<2x64xf32>
    %129 = tpu.matmul %128, %1, %cst_144 {dimension_numbers = #tpu.dot_dimension_numbers<[1], [0], [0], [1], [0, 0, 1, 1], [], []>} : vector<2x16xf32>, vector<16x64xf32>, vector<2x64xf32> -> vector<2x64xf32>
    %c0_145 = arith.constant 0 : index
    %c0_146 = arith.constant 0 : index
    %c15_147 = arith.constant 15 : index
    %c0_148 = arith.constant 0 : index
    %130 = vector.load %arg7[%c0_145, %c0_146, %c15_147, %c0_148] : memref<1x4x16x64xf32, #tpu.memory_space<vmem>>, vector<1x2x1x64xf32>
    %131 = vector.shape_cast %130 : vector<1x2x1x64xf32> to vector<2x64xf32>
    %132 = vector.shape_cast %129 : vector<2x64xf32> to vector<1x2x1x64xf32>
    tpu.vector_store %arg7[%c0_145, %c0_146, %c15_147, %c0_148], %132 {strides = array<i32>} : memref<1x4x16x64xf32, #tpu.memory_space<vmem>>, vector<1x2x1x64xf32>,
    %c0_149 = arith.constant 0 : index
    %c0_150 = arith.constant 0 : index
    %c0_151 = arith.constant 0 : index
    %c0_152 = arith.constant 0 : index
    %133 = vector.load %arg3[%c0_149, %c0_150, %c0_151, %c0_152] : memref<1x2x16x64xf32, #tpu.memory_space<vmem>>, vector<1x2x16x64xf32>
    %134 = vector.shape_cast %133 : vector<1x2x16x64xf32> to vector<2x16x64xf32>
    %c0_153 = arith.constant 0 : index
    %c2_154 = arith.constant 2 : index
    %c0_155 = arith.constant 0 : index
    %c0_156 = arith.constant 0 : index
    %135 = vector.load %arg7[%c0_153, %c2_154, %c0_155, %c0_156] : memref<1x4x16x64xf32, #tpu.memory_space<vmem>>, vector<1x2x16x64xf32>
    %136 = vector.shape_cast %135 : vector<1x2x16x64xf32> to vector<2x16x64xf32>
    %137 = vector.shape_cast %134 : vector<2x16x64xf32> to vector<1x2x16x64xf32>
    tpu.vector_store %arg7[%c0_153, %c2_154, %c0_155, %c0_156], %137 {strides = array<i32>} : memref<1x4x16x64xf32, #tpu.memory_space<vmem>>, vector<1x2x16x64xf32>,
    return
  }
  func.func @transform_0(%arg0: i32, %arg1: i32) -> (i32, i32, i32, i32) {
    %c0_i32 = arith.constant 0 : i32
    %c0_i32_0 = arith.constant 0 : i32
    %c0_i32_1 = arith.constant 0 : i32
    return %arg0, %c0_i32, %arg1, %c0_i32_0 : i32, i32, i32, i32
  }
  func.func @transform_1(%arg0: i32, %arg1: i32) -> (i32, i32, i32, i32) {
    %c0_i32 = arith.constant 0 : i32
    %c0_i32_0 = arith.constant 0 : i32
    %c0_i32_1 = arith.constant 0 : i32
    return %arg0, %c0_i32, %arg1, %c0_i32_0 : i32, i32, i32, i32
  }
  func.func @transform_2(%arg0: i32, %arg1: i32) -> (i32, i32) {
    %c0_i32 = arith.constant 0 : i32
    %c0_i32_0 = arith.constant 0 : i32
    %c0_i32_1 = arith.constant 0 : i32
    return %c0_i32, %c0_i32_0 : i32, i32
  }
  func.func @transform_3(%arg0: i32, %arg1: i32) -> (i32, i32) {
    %c0_i32 = arith.constant 0 : i32
    %c0_i32_0 = arith.constant 0 : i32
    %c0_i32_1 = arith.constant 0 : i32
    return %c0_i32, %c0_i32_0 : i32, i32
  }
  func.func @transform_4(%arg0: i32, %arg1: i32) -> (i32, i32) {
    %c0_i32 = arith.constant 0 : i32
    %c0_i32_0 = arith.constant 0 : i32
    %c0_i32_1 = arith.constant 0 : i32
    return %c0_i32, %c0_i32_0 : i32, i32
  }
  func.func @transform_5(%arg0: i32, %arg1: i32) -> (i32, i32, i32, i32) {
    %c0_i32 = arith.constant 0 : i32
    %c0_i32_0 = arith.constant 0 : i32
    %c0_i32_1 = arith.constant 0 : i32
    return %arg0, %c0_i32, %arg1, %c0_i32_0 : i32, i32, i32, i32
  }
}

</mosaic_0001>

<llo_original>
// kernel: tpu_custom_call.1
$region0: #{tpu_custom_call.1}
  #allocation0 [shape = 'u32[]', space=smem, size = 0x4, offset = 0x4, fixed_abs, tag = 'smem constant byte address 0x4 - core index']
  #allocation1 [shape = 'u32[144,128]{1,0:T(1,128)}', space=vmem, size = 0x12000, scoped, tag = 'internal scratch']
  %s0 = inlined_call_operand.hbm [shape: f32[2,4,16,16], index: 0, kind: input, shape index: {}]
  %s1 = inlined_call_operand.hbm [shape: f32[2,2,16,64], index: 1, kind: input, shape index: {}]
  %s2 = inlined_call_operand.vmem [shape: f32[2,4], index: 2, kind: input, shape index: {}]
  %s3 = inlined_call_operand.vmem [shape: f32[2,1], index: 3, kind: input, shape index: {}]
  %s4 = inlined_call_operand.hbm [shape: f32[16,64], index: 4, kind: input, shape index: {}]
  %s5 = inlined_call_operand.hbm [shape: f32[2,4,16,64], index: 5, kind: output, shape index: {}]
  %s6 = sld [smem:[#allocation0]]
  $region65: #{tpu_custom_call.1} parent=0
    _
  %s8 = ssub.s32 1, %s6
  %s9 = scalar_select 0, %s8, %s6
  $region1: #{tpu_custom_call.1} parent=0
    #allocation2 [shape = 'u8[65536]{0}', space=vmem, size = 0x10000, scoped, tag = 'input window, operand 0']
    #allocation3 [shape = 's32[2]{0}', space=sflag, size = 0x8, scoped, tag = 'scoped memory for tpu_custom_call.1']
    #allocation4 [shape = 's32[2]{0}', space=sflag, size = 0x8, scoped, tag = 'scoped memory for tpu_custom_call.1']
    #allocation5 [shape = 'u8[32768]{0}', space=vmem, size = 0x8000, scoped, tag = 'input window, operand 1']
    #allocation6 [shape = 's32[2]{0}', space=sflag, size = 0x8, scoped, tag = 'scoped memory for tpu_custom_call.1']
    #allocation7 [shape = 'u8[8192]{0}', space=vmem, size = 0x2000, scoped, tag = 'input window, operand 4, single buffered']
    #allocation8 [shape = 'u8[65536]{0}', space=vmem, size = 0x10000, scoped, tag = 'output window, operand 0']
    %10 = vsyncpa [#allocation3], 0
    %s11 = scalar_lea.sflag [#allocation3], 1
    %12 = vsyncpa %s11, 0
    %13 = vsyncpa [#allocation6], 0
    %s14 = scalar_lea.sflag [#allocation6], 1
    %15 = vsyncpa %s14, 0
    %16 = vsyncpa [#allocation4], 0
    %s17 = scalar_lea.sflag [#allocation4], 1
    %18 = vsyncpa %s17, 0
    loop: start=0, step=1, limit=4
    $region2: #{tpu_custom_call.1} parent=1 // loop_pre_header
      _
    $region3: #{tpu_custom_call.1} parent=1 // loop_header
      %s20 = sphi 0, %s24
      %p21 = scmp.ge.s32.totalorder %s20, 4
      %s27 = sphi 0, %s39
      %s28 = sphi 0, %s35
      %s29 = sphi 0, %s27
      %s30 = sphi 0, %s28
      %s31 = sphi 0, %s29
      %s32 = sphi 0, %s30
      %s44 = sphi 0, %s46
      %s47 = sphi 0, %s44
      %s48 = sphi 0, %s47
      %s64 = sphi 0, %s48
      %s72 = sphi 0, %s74
      %s75 = sphi 0, %s72
      %s76 = sphi 0, %s75
      %s92 = sphi 0, %s76
      %s96 = sphi 0, %s96
      %s98 = sphi 0, %s96
      %s99 = sphi 0, %s98
      %s113 = sphi 0, %s99
      %s117 = sphi 0, %s117
      %s119 = sphi 0, %s117
      %s120 = sphi 0, %s119
      %s134 = sphi 0, %s120
      %s138 = sphi 0, %s138
      %s140 = sphi 0, %s138
      %s141 = sphi 0, %s140
      %s155 = sphi 0, %s141
      %s163 = sphi 0, %s165
      %s166 = sphi 0, %s163
      %s167 = sphi 0, %s166
      %s183 = sphi 0, %s167
    $region4: #{tpu_custom_call.1} parent=1 // loop_header_branch
      %23 = sbr.rel (%p21) target = $region8
    $region5: #{tpu_custom_call.1} parent=1 // loop_body
      %s25 = ssub.s32 %s20, 1
      %s26 = ssub.s32 %s20, 2
      %s33 = sadd.s32 1, %s28
      %p34 = scmp.ge.s32.totalorder %s33, 1
      %s35 = scalar_select %p34, 0, %s33
      %s36 = sadd.s32 1, %s27
      %s37 = scalar_select %p34, %s36, %s27
      %p38 = scmp.ge.s32.totalorder %s37, 2
      %s39 = scalar_select %p38, 0, %s37
      %s40 = ssub.s32 %s27, %s39
      %s41 = ssub.s32 %s28, %s35
      %s42 = sor.u32 %s40, %s41
      %p43 = scmp.eq.s32.totalorder %s42, 0
      %s45 = sadd.s32 %s44, 1
      %s46 = scalar_select %p43, %s44, %s45
      %p49 = pneg %p43
      %p50 = scmp.eq.s32.totalorder %s20, 1
      %p51 = por %p49, %p50
      %p52 = scmp.ne.s32.totalorder %s44, %s47
      %p53 = scmp.eq.s32.totalorder %s20, 0
      %p54 = por %p52, %p53
      %p55 = scmp.ne.s32.totalorder %s44, %s47
      %p56 = scmp.eq.s32.totalorder %s25, 1
      %p57 = por %p55, %p56
      %p58 = scmp.ne.s32.totalorder %s47, %s48
      %p59 = scmp.eq.s32.totalorder %s25, 0
      %p60 = por %p58, %p59
      %p61 = scmp.ne.s32.totalorder %s47, %s48
      %p62 = scmp.eq.s32.totalorder %s26, 1
      %p63 = por %p61, %p62
      %p65 = scmp.ne.s32.totalorder %s48, %s64
      %p66 = scmp.eq.s32.totalorder %s26, 0
      %p67 = por %p65, %p66
      %s68 = ssub.s32 %s27, %s39
      %s69 = ssub.s32 %s28, %s35
      %s70 = sor.u32 %s68, %s69
      %p71 = scmp.eq.s32.totalorder %s70, 0
      %s73 = sadd.s32 %s72, 1
      %s74 = scalar_select %p71, %s72, %s73
      %p77 = pneg %p71
      %p78 = scmp.eq.s32.totalorder %s20, 1
      %p79 = por %p77, %p78
      %p80 = scmp.ne.s32.totalorder %s72, %s75
      %p81 = scmp.eq.s32.totalorder %s20, 0
      %p82 = por %p80, %p81
      %p83 = scmp.ne.s32.totalorder %s72, %s75
      %p84 = scmp.eq.s32.totalorder %s25, 1
      %p85 = por %p83, %p84
      %p86 = scmp.ne.s32.totalorder %s75, %s76
      %p87 = scmp.eq.s32.totalorder %s25, 0
      %p88 = por %p86, %p87
      %p89 = scmp.ne.s32.totalorder %s75, %s76
      %p90 = scmp.eq.s32.totalorder %s26, 1
      %p91 = por %p89, %p90
      %p93 = scmp.ne.s32.totalorder %s76, %s92
      %p94 = scmp.eq.s32.totalorder %s26, 0
      %p95 = por %p93, %p94
      %s97 = sadd.s32 %s96, 1
      %p100 = scmp.eq.s32.totalorder %s20, 1
      %p101 = scmp.ne.s32.totalorder %s96, %s98
      %p102 = scmp.eq.s32.totalorder %s20, 0
      %p103 = por %p101, %p102
      %p104 = scmp.ne.s32.totalorder %s96, %s98
      %p105 = scmp.eq.s32.totalorder %s25, 1
      %p106 = por %p104, %p105
      %p107 = scmp.ne.s32.totalorder %s98, %s99
      %p108 = scmp.eq.s32.totalorder %s25, 0
      %p109 = por %p107, %p108
      %p110 = scmp.ne.s32.totalorder %s98, %s99
      %p111 = scmp.eq.s32.totalorder %s26, 1
      %p112 = por %p110, %p111
      %p114 = scmp.ne.s32.totalorder %s99, %s113
      %p115 = scmp.eq.s32.totalorder %s26, 0
      %p116 = por %p114, %p115
      %s118 = sadd.s32 %s117, 1
      %p121 = scmp.eq.s32.totalorder %s20, 1
      %p122 = scmp.ne.s32.totalorder %s117, %s119
      %p123 = scmp.eq.s32.totalorder %s20, 0
      %p124 = por %p122, %p123
      %p125 = scmp.ne.s32.totalorder %s117, %s119
      %p126 = scmp.eq.s32.totalorder %s25, 1
      %p127 = por %p125, %p126
      %p128 = scmp.ne.s32.totalorder %s119, %s120
      %p129 = scmp.eq.s32.totalorder %s25, 0
      %p130 = por %p128, %p129
      %p131 = scmp.ne.s32.totalorder %s119, %s120
      %p132 = scmp.eq.s32.totalorder %s26, 1
      %p133 = por %p131, %p132
      %p135 = scmp.ne.s32.totalorder %s120, %s134
      %p136 = scmp.eq.s32.totalorder %s26, 0
      %p137 = por %p135, %p136
      %s139 = sadd.s32 %s138, 1
      %p142 = scmp.eq.s32.totalorder %s20, 1
      %p143 = scmp.ne.s32.totalorder %s138, %s140
      %p144 = scmp.eq.s32.totalorder %s20, 0
      %p145 = por %p143, %p144
      %p146 = scmp.ne.s32.totalorder %s138, %s140
      %p147 = scmp.eq.s32.totalorder %s25, 1
      %p148 = por %p146, %p147
      %p149 = scmp.ne.s32.totalorder %s140, %s141
      %p150 = scmp.eq.s32.totalorder %s25, 0
      %p151 = por %p149, %p150
      %p152 = scmp.ne.s32.totalorder %s140, %s141
      %p153 = scmp.eq.s32.totalorder %s26, 1
      %p154 = por %p152, %p153
      %p156 = scmp.ne.s32.totalorder %s141, %s155
      %p157 = scmp.eq.s32.totalorder %s26, 0
      %p158 = por %p156, %p157
      %s159 = ssub.s32 %s27, %s39
      %s160 = ssub.s32 %s28, %s35
      %s161 = sor.u32 %s159, %s160
      %p162 = scmp.eq.s32.totalorder %s161, 0
      %s164 = sadd.s32 %s163, 1
      %s165 = scalar_select %p162, %s163, %s164
      %p168 = pneg %p162
      %p169 = scmp.eq.s32.totalorder %s20, 1
      %p170 = por %p168, %p169
      %p171 = scmp.ne.s32.totalorder %s163, %s166
      %p172 = scmp.eq.s32.totalorder %s20, 0
      %p173 = por %p171, %p172
      %p174 = scmp.ne.s32.totalorder %s163, %s166
      %p175 = scmp.eq.s32.totalorder %s25, 1
      %p176 = por %p174, %p175
      %p177 = scmp.ne.s32.totalorder %s166, %s167
      %p178 = scmp.eq.s32.totalorder %s25, 0
      %p179 = por %p177, %p178
      %p180 = scmp.ne.s32.totalorder %s166, %s167
      %p181 = scmp.eq.s32.totalorder %s26, 1
      %p182 = por %p180, %p181
      %p184 = scmp.ne.s32.totalorder %s167, %s183
      %p185 = scmp.eq.s32.totalorder %s26, 0
      %p186 = por %p184, %p185
      %p187 = scmp.le.s32.totalorder 1, %s20
      %p188 = scmp.lt.s32.totalorder %s20, 3
      %p189 = pnand %p187, %p188
      %p190 = pneg %p189
      // Predicated region
      $region9: #{tpu_custom_call.1} parent=5 // pred_check
        _
      $region10: #{tpu_custom_call.1} parent=5 // pred_check_branch
        %192 = sbr.rel (%p189) target = $region12
      $region11: #{tpu_custom_call.1} parent=5 // pred_region
        %s193 = ssub.s32 %s20, 1
        // Predicated region
        $region13: #{tpu_custom_call.1} parent=11 // pred_check
          %p194 = pneg %p109
        $region14: #{tpu_custom_call.1} parent=11 // pred_check_branch
          %196 = sbr.rel (%p194) target = $region16
        $region15: #{tpu_custom_call.1} parent=11 // pred_region
          _
        $region16: #{tpu_custom_call.1} parent=11 // pred_fallthru
          _
        // Predicated region
        $region17: #{tpu_custom_call.1} parent=11 // pred_check
          %p197 = pneg %p130
        $region18: #{tpu_custom_call.1} parent=11 // pred_check_branch
          %199 = sbr.rel (%p197) target = $region20
        $region19: #{tpu_custom_call.1} parent=11 // pred_region
          _
        $region20: #{tpu_custom_call.1} parent=11 // pred_fallthru
          _
        // Predicated region
        $region21: #{tpu_custom_call.1} parent=11 // pred_check
          %p200 = pneg %p151
        $region22: #{tpu_custom_call.1} parent=11 // pred_check_branch
          %202 = sbr.rel (%p200) target = $region24
        $region23: #{tpu_custom_call.1} parent=11 // pred_region
          %s204 = ssub.s32 256, 256
          %205 = vsyncadd [#allocation6], %s204
          %s206 = sshll.u32 [#allocation7], 4
          %s207 = int_to_ptr.vmem [resolvable:$true] %s206
          %212 = dma.hbm_to_vmem [thread:$0]  %s4, 256, %s207, [#allocation6], 128, 128, 8
        $region24: #{tpu_custom_call.1} parent=11 // pred_fallthru
          _
      $region12: #{tpu_custom_call.1} parent=5 // pred_fallthru
        _
      %p213 = scmp.lt.s32.totalorder %s20, 2
      // Predicated region
      $region25: #{tpu_custom_call.1} parent=5 // pred_check
        %p214 = pneg %p213
      $region26: #{tpu_custom_call.1} parent=5 // pred_check_branch
        %216 = sbr.rel (%p214) target = $region28
      $region27: #{tpu_custom_call.1} parent=5 // pred_region
        // Predicated region
        $region29: #{tpu_custom_call.1} parent=27 // pred_check
          %p217 = pneg %p54
        $region30: #{tpu_custom_call.1} parent=27 // pred_check_branch
          %219 = sbr.rel (%p217) target = $region32
        $region31: #{tpu_custom_call.1} parent=27 // pred_region
          %s220 = sand.u32 %s44, 1
          %s221 = scalar_lea.sflag [#allocation3], %s220
          %s222 = sand.u32 %s44, 1
          %s223 = smul.addr %s222, 64
          %s224 = scalar_lea.vmem [#allocation2], %s223
          %s225 = smul.u32 2, %s28
          %s227 = ssub.s32 1024, 1024
          %228 = vsyncadd %s221, %s227
          %s229 = smul.addr %s27, 8
          %s230 = sadd.s32 %s225, %s229
          %s231 = smul.addr %s230, 128
          %s232 = scalar_lea.hbm %s0, %s231
          %s233 = sshll.u32 %s224, 4
          %s234 = int_to_ptr.vmem [resolvable:$true] %s233
          %239 = dma.hbm_to_vmem [thread:$0]  %s232, 1024, %s234, %s221, 128, 128, 8
        $region32: #{tpu_custom_call.1} parent=27 // pred_fallthru
          _
        // Predicated region
        $region33: #{tpu_custom_call.1} parent=27 // pred_check
          %p240 = pneg %p82
        $region34: #{tpu_custom_call.1} parent=27 // pred_check_branch
          %242 = sbr.rel (%p240) target = $region36
        $region35: #{tpu_custom_call.1} parent=27 // pred_region
          %s243 = sand.u32 %s20, 1
          %s244 = scalar_lea.sflag [#allocation6], %s243
          %s245 = sand.u32 %s72, 1
          %s246 = smul.addr %s245, 32
          %s247 = scalar_lea.vmem [#allocation5], %s246
          %s248 = smul.u32 2, %s28
          %s250 = ssub.s32 512, 512
          %251 = vsyncadd %s244, %s250
          %s252 = smul.addr %s27, 4
          %s253 = sadd.s32 %s248, %s252
          %s254 = smul.addr %s253, 128
          %s255 = scalar_lea.hbm %s1, %s254
          %s256 = sshll.u32 %s247, 4
          %s257 = int_to_ptr.vmem [resolvable:$true] %s256
          %262 = dma.hbm_to_vmem [thread:$0]  %s255, 512, %s257, %s244, 128, 128, 8
        $region36: #{tpu_custom_call.1} parent=27 // pred_fallthru
          _
      $region28: #{tpu_custom_call.1} parent=5 // pred_fallthru
        _
      %p263 = scmp.le.s32.totalorder 1, %s20
      %p264 = scmp.lt.s32.totalorder %s20, 3
      %p265 = pnand %p263, %p264
      %p266 = pneg %p265
      // Predicated region
      $region37: #{tpu_custom_call.1} parent=5 // pred_check
        _
      $region38: #{tpu_custom_call.1} parent=5 // pred_check_branch
        %268 = sbr.rel (%p265) target = $region40
      $region39: #{tpu_custom_call.1} parent=5 // pred_region
        %s269 = ssub.s32 %s20, 1
        %s270 = sand.u32 %s47, 1
        %s271 = scalar_lea.sflag [#allocation3], %s270
        %s272 = sand.u32 %s47, 1
        %s273 = smul.addr %s272, 64
        %s274 = scalar_lea.vmem [#allocation2], %s273
        // Predicated region
        $region41: #{tpu_custom_call.1} parent=39 // pred_check
          %p275 = pneg %p60
        $region42: #{tpu_custom_call.1} parent=39 // pred_check_branch
          %277 = sbr.rel (%p275) target = $region44
        $region43: #{tpu_custom_call.1} parent=39 // pred_region
          %278 = dma.done %s271, 1024
        $region44: #{tpu_custom_call.1} parent=39 // pred_fallthru
          _
        %s279 = sand.u32 %s25, 1
        %s280 = scalar_lea.sflag [#allocation6], %s279
        %s281 = sand.u32 %s75, 1
        %s282 = smul.addr %s281, 32
        %s283 = scalar_lea.vmem [#allocation5], %s282
        // Predicated region
        $region45: #{tpu_custom_call.1} parent=39 // pred_check
          %p284 = pneg %p88
        $region46: #{tpu_custom_call.1} parent=39 // pred_check_branch
          %286 = sbr.rel (%p284) target = $region48
        $region47: #{tpu_custom_call.1} parent=39 // pred_region
          %287 = dma.done %s280, 512
        $region48: #{tpu_custom_call.1} parent=39 // pred_fallthru
          _
        // Predicated region
        $region49: #{tpu_custom_call.1} parent=39 // pred_check
          %p288 = pneg %p151
        $region50: #{tpu_custom_call.1} parent=39 // pred_check_branch
          %290 = sbr.rel (%p288) target = $region52
        $region51: #{tpu_custom_call.1} parent=39 // pred_region
          %291 = dma.done [#allocation6], 256
        $region52: #{tpu_custom_call.1} parent=39 // pred_fallthru
          _
        %s292 = sand.u32 %s47, 1
        %s293 = scalar_lea.sflag [#allocation3], %s292
        %s294 = sand.u32 %s47, 1
        %s295 = smul.addr %s294, 64
        %s296 = scalar_lea.vmem [#allocation2], %s295
        %p297 = pneg %p60
        %p298 = pneg %p57
        %s299 = sand.u32 %s25, 1
        %s300 = scalar_lea.sflag [#allocation6], %s299
        %s301 = sand.u32 %s75, 1
        %s302 = smul.addr %s301, 32
        %s303 = scalar_lea.vmem [#allocation5], %s302
        %p304 = pneg %p88
        %p305 = pneg %p85
        %p306 = pneg %p109
        %p307 = pneg %p106
        %p308 = pneg %p130
        %p309 = pneg %p127
        %p310 = pneg %p151
        %p311 = pneg %p148
        %p312 = pneg %p179
        %p313 = pneg %p176
        %s314 = sand.u32 %s166, 1
        %s315 = scalar_lea.sflag [#allocation4], %s314
        %s316 = sand.u32 %s166, 1
        %s317 = smul.addr %s316, 64
        %s318 = scalar_lea.vmem [#allocation8], %s317
        %s319 = smul.u32 2, %s30
        %s320 = smul.u32 2, %s30
        %s321 = smul.u32 2, %s30
        %v322 = vld [vmem:[%s2] sm:$0x3]
        %v323 = vld [vmem:[%s274] sm:$0xff]
        %v324 = vld [vmem:[%s274 + $0x8] sm:$0xff]
        %v325 = vld [vmem:[%s274 + $0x10] sm:$0xff]
        %v326 = vld [vmem:[%s274 + $0x18] sm:$0xff]
        %v327 = vld [vmem:[%s274 + $0x20] sm:$0xff]
        %v328 = vld [vmem:[%s274 + $0x28] sm:$0xff]
        %v329 = vld [vmem:[%s274 + $0x30] sm:$0xff]
        %v330 = vld [vmem:[%s274 + $0x38] sm:$0xff]
        %v331 = vld [vmem:[%s3] sm:$0x3]
        %v334 = vunpack.c.l.s4 1966171168
        %v335 = vunpack.c.0.s8 %v334
        %v336 = vlaneseq
        %v337 = vshrl.u32 %v336, 7
        %v338 = vsub.s32 %v335, %v337
        %v339 = vrot.slane %v331, %v338
        %v340 = vcombine.high %v339, %v339
        %v342 = vunpack.c.l.s4 1966171168
        %v343 = vunpack.c.0.s8 %v342
        %v344 = vlaneseq
        %v345 = vshrl.u32 %v344, 7
        %v346 = vsub.s32 %v343, %v345
        %v347 = vrot.slane %v339, %v346
        %v349 = vunpack.c.l.s4 1966171168
        %v350 = vunpack.c.0.s8 %v349
        %v351 = vlaneseq
        %v352 = vshrl.u32 %v351, 7
        %v353 = vsub.s32 %v350, %v352
        %v354 = vrot.slane %v340, %v353
        %v355 = vlaneseq
        %v356 = vshrl.u32 %v355, 7
        %v357 = vsub.s32 0, %v356
        %v358 = vrot.slane %v347, %v357
        %v359 = vlaneseq
        %v360 = vshrl.u32 %v359, 7
        %v361 = vsub.s32 0, %v360
        %v362 = vrot.slane %v354, %v361
        %363 = vset.pattern.permute.xlu0 0
        %364 = vperm.xlu0 %363, %v358
        %v365 = vpop.permute.xlu0 %364
        %367 = vset.pattern.permute.xlu0 0
        %368 = vperm.xlu0 %367, %v362
        %v369 = vpop.permute.xlu0 %368
        %v371 = vcombine.low %v323, %v327
        %v372 = vcombine.high %v323, %v327
        %v374 = vunpack.c.l.s4 1983009808
        %v375 = vunpack.c.0.s8 %v374
        %v376 = vlaneseq
        %v377 = vshrl.u32 %v376, 7
        %v378 = vsub.s32 %v375, %v377
        %v379 = vrot.slane %v371, %v378
        %v381 = vunpack.c.l.s4 1983009808
        %v382 = vunpack.c.0.s8 %v381
        %v383 = vlaneseq
        %v384 = vshrl.u32 %v383, 7
        %v385 = vsub.s32 %v382, %v384
        %v386 = vrot.slane %v372, %v385
        %v387 = vcombine.low %v325, %v329
        %v388 = vcombine.high %v325, %v329
        %v390 = vunpack.c.l.s4 1983009808
        %v391 = vunpack.c.0.s8 %v390
        %v392 = vlaneseq
        %v393 = vshrl.u32 %v392, 7
        %v394 = vsub.s32 %v391, %v393
        %v395 = vrot.slane %v387, %v394
        %v397 = vunpack.c.l.s4 1983009808
        %v398 = vunpack.c.0.s8 %v397
        %v399 = vlaneseq
        %v400 = vshrl.u32 %v399, 7
        %v401 = vsub.s32 %v398, %v400
        %v402 = vrot.slane %v388, %v401
        %v403 = vcombine.low %v379, %v395
        %v404 = vcombine.high %v379, %v395
        %v406 = vunpack.c.l.s4 1934713408
        %v407 = vunpack.c.0.s8 %v406
        %v408 = vlaneseq
        %v409 = vshrl.u32 %v408, 7
        %v410 = vsub.s32 %v407, %v409
        %v411 = vrot.slane %v403, %v410
        %v413 = vunpack.c.l.s4 1934713408
        %v414 = vunpack.c.0.s8 %v413
        %v415 = vlaneseq
        %v416 = vshrl.u32 %v415, 7
        %v417 = vsub.s32 %v414, %v416
        %v418 = vrot.slane %v404, %v417
        %v419 = vcombine.low %v386, %v402
        %v420 = vcombine.high %v386, %v402
        %v422 = vunpack.c.l.s4 1934713408
        %v423 = vunpack.c.0.s8 %v422
        %v424 = vlaneseq
        %v425 = vshrl.u32 %v424, 7
        %v426 = vsub.s32 %v423, %v425
        %v427 = vrot.slane %v419, %v426
        %v429 = vunpack.c.l.s4 1934713408
        %v430 = vunpack.c.0.s8 %v429
        %v431 = vlaneseq
        %v432 = vshrl.u32 %v431, 7
        %v433 = vsub.s32 %v430, %v432
        %v434 = vrot.slane %v420, %v433
        %v435 = vcombine.high %v411, 0.0
        %v436 = vcombine.high %v418, 0.0
        %v437 = vcombine.high %v427, 0.0
        %v438 = vcombine.high %v434, 0.0
        %v439 = vcombine.low %v324, %v328
        %v440 = vcombine.high %v324, %v328
        %v442 = vunpack.c.l.s4 1983009808
        %v443 = vunpack.c.0.s8 %v442
        %v444 = vlaneseq
        %v445 = vshrl.u32 %v444, 7
        %v446 = vsub.s32 %v443, %v445
        %v447 = vrot.slane %v439, %v446
        %v449 = vunpack.c.l.s4 1983009808
        %v450 = vunpack.c.0.s8 %v449
        %v451 = vlaneseq
        %v452 = vshrl.u32 %v451, 7
        %v453 = vsub.s32 %v450, %v452
        %v454 = vrot.slane %v440, %v453
        %v455 = vcombine.low %v326, %v330
        %v456 = vcombine.high %v326, %v330
        %v458 = vunpack.c.l.s4 1983009808
        %v459 = vunpack.c.0.s8 %v458
        %v460 = vlaneseq
        %v461 = vshrl.u32 %v460, 7
        %v462 = vsub.s32 %v459, %v461
        %v463 = vrot.slane %v455, %v462
        %v465 = vunpack.c.l.s4 1983009808
        %v466 = vunpack.c.0.s8 %v465
        %v467 = vlaneseq
        %v468 = vshrl.u32 %v467, 7
        %v469 = vsub.s32 %v466, %v468
        %v470 = vrot.slane %v456, %v469
        %v471 = vcombine.low %v447, %v463
        %v472 = vcombine.high %v447, %v463
        %v474 = vunpack.c.l.s4 1934713408
        %v475 = vunpack.c.0.s8 %v474
        %v476 = vlaneseq
        %v477 = vshrl.u32 %v476, 7
        %v478 = vsub.s32 %v475, %v477
        %v479 = vrot.slane %v471, %v478
        %v481 = vunpack.c.l.s4 1934713408
        %v482 = vunpack.c.0.s8 %v481
        %v483 = vlaneseq
        %v484 = vshrl.u32 %v483, 7
        %v485 = vsub.s32 %v482, %v484
        %v486 = vrot.slane %v472, %v485
        %v487 = vcombine.low %v454, %v470
        %v488 = vcombine.high %v454, %v470
        %v490 = vunpack.c.l.s4 1934713408
        %v491 = vunpack.c.0.s8 %v490
        %v492 = vlaneseq
        %v493 = vshrl.u32 %v492, 7
        %v494 = vsub.s32 %v491, %v493
        %v495 = vrot.slane %v487, %v494
        %v497 = vunpack.c.l.s4 1934713408
        %v498 = vunpack.c.0.s8 %v497
        %v499 = vlaneseq
        %v500 = vshrl.u32 %v499, 7
        %v501 = vsub.s32 %v498, %v500
        %v502 = vrot.slane %v488, %v501
        %v503 = vcombine.high %v479, 0.0
        %v504 = vcombine.high %v486, 0.0
        %v505 = vcombine.high %v495, 0.0
        %v506 = vcombine.high %v502, 0.0
        %508 = vrot.lane.b32.xlu0 %v435, 16
        %v509 = vpop.permute.xlu0 %508
        %512 = vrot.lane.b32.xlu0 %v418, 32
        %v513 = vpop.permute.xlu0 %512
        %516 = vrot.lane.b32.xlu0 %v436, 48
        %v517 = vpop.permute.xlu0 %516
        %520 = vrot.lane.b32.xlu0 %v427, 64
        %v521 = vpop.permute.xlu0 %520
        %524 = vrot.lane.b32.xlu0 %v437, 80
        %v525 = vpop.permute.xlu0 %524
        %528 = vrot.lane.b32.xlu0 %v434, 96
        %v529 = vpop.permute.xlu0 %528
        %532 = vrot.lane.b32.xlu0 %v438, 112
        %v533 = vpop.permute.xlu0 %532
        %536 = vrot.lane.b32.xlu0 %v503, 16
        %v537 = vpop.permute.xlu0 %536
        %540 = vrot.lane.b32.xlu0 %v486, 32
        %v541 = vpop.permute.xlu0 %540
        %544 = vrot.lane.b32.xlu0 %v504, 48
        %v545 = vpop.permute.xlu0 %544
        %548 = vrot.lane.b32.xlu0 %v495, 64
        %v549 = vpop.permute.xlu0 %548
        %552 = vrot.lane.b32.xlu0 %v505, 80
        %v553 = vpop.permute.xlu0 %552
        %556 = vrot.lane.b32.xlu0 %v502, 96
        %v557 = vpop.permute.xlu0 %556
        %560 = vrot.lane.b32.xlu0 %v506, 112
        %v561 = vpop.permute.xlu0 %560
        %vm563 = vcmask 130048
        %v564 = vsel %vm563, %v411, %v509
        %vm565 = vcmask 261120
        %v566 = vsel %vm565, %v564, %v513
        %vm567 = vcmask 392192
        %v568 = vsel %vm567, %v566, %v517
        %vm569 = vcmask 523264
        %v570 = vsel %vm569, %v568, %v521
        %vm571 = vcmask 654336
        %v572 = vsel %vm571, %v570, %v525
        %vm573 = vcmask 785408
        %v574 = vsel %vm573, %v572, %v529
        %vm575 = vcmask 916480
        %v576 = vsel %vm575, %v574, %v533
        %v577 = vsel %vm563, %v479, %v537
        %v578 = vsel %vm565, %v577, %v541
        %v579 = vsel %vm567, %v578, %v545
        %v580 = vsel %vm569, %v579, %v549
        %v581 = vsel %vm571, %v580, %v553
        %v582 = vsel %vm573, %v581, %v557
        %v583 = vsel %vm575, %v582, %v561
        %v584 = vcombine.high %v365, 0.0
        %v586 = vunpack.c.l.s4 1983009808
        %v587 = vunpack.c.0.s8 %v586
        %v588 = vlaneseq
        %v589 = vshrl.u32 %v588, 7
        %v590 = vsub.s32 %v587, %v589
        %v591 = vrot.slane %v365, %v590
        %v593 = vunpack.c.l.s4 1983009808
        %v594 = vunpack.c.0.s8 %v593
        %v595 = vlaneseq
        %v596 = vshrl.u32 %v595, 7
        %v597 = vsub.s32 %v594, %v596
        %v598 = vrot.slane %v584, %v597
        %v599 = vcombine.high %v369, 0.0
        %v601 = vunpack.c.l.s4 1983009808
        %v602 = vunpack.c.0.s8 %v601
        %v603 = vlaneseq
        %v604 = vshrl.u32 %v603, 7
        %v605 = vsub.s32 %v602, %v604
        %v606 = vrot.slane %v369, %v605
        %v608 = vunpack.c.l.s4 1983009808
        %v609 = vunpack.c.0.s8 %v608
        %v610 = vlaneseq
        %v611 = vshrl.u32 %v610, 7
        %v612 = vsub.s32 %v609, %v611
        %v613 = vrot.slane %v599, %v612
        %v614 = vcombine.low %v591, %v606
        %v615 = vcombine.high %v591, %v606
        %v617 = vunpack.c.l.s4 1934713408
        %v618 = vunpack.c.0.s8 %v617
        %v619 = vlaneseq
        %v620 = vshrl.u32 %v619, 7
        %v621 = vsub.s32 %v618, %v620
        %v622 = vrot.slane %v614, %v621
        %v624 = vunpack.c.l.s4 1934713408
        %v625 = vunpack.c.0.s8 %v624
        %v626 = vlaneseq
        %v627 = vshrl.u32 %v626, 7
        %v628 = vsub.s32 %v625, %v627
        %v629 = vrot.slane %v615, %v628
        %v630 = vcombine.low %v598, %v613
        %v631 = vcombine.high %v598, %v613
        %v633 = vunpack.c.l.s4 1934713408
        %v634 = vunpack.c.0.s8 %v633
        %v635 = vlaneseq
        %v636 = vshrl.u32 %v635, 7
        %v637 = vsub.s32 %v634, %v636
        %v638 = vrot.slane %v630, %v637
        %v640 = vunpack.c.l.s4 1934713408
        %v641 = vunpack.c.0.s8 %v640
        %v642 = vlaneseq
        %v643 = vshrl.u32 %v642, 7
        %v644 = vsub.s32 %v641, %v643
        %v645 = vrot.slane %v631, %v644
        %v646 = vcombine.high %v622, 0.0
        %v647 = vcombine.high %v629, 0.0
        %v648 = vcombine.high %v638, 0.0
        %v649 = vcombine.high %v645, 0.0
        %651 = vrot.lane.b32.xlu0 %v646, 16
        %v652 = vpop.permute.xlu0 %651
        %655 = vrot.lane.b32.xlu0 %v629, 32
        %v656 = vpop.permute.xlu0 %655
        %659 = vrot.lane.b32.xlu0 %v647, 48
        %v660 = vpop.permute.xlu0 %659
        %663 = vrot.lane.b32.xlu0 %v638, 64
        %v664 = vpop.permute.xlu0 %663
        %667 = vrot.lane.b32.xlu0 %v648, 80
        %v668 = vpop.permute.xlu0 %667
        %671 = vrot.lane.b32.xlu0 %v645, 96
        %v672 = vpop.permute.xlu0 %671
        %675 = vrot.lane.b32.xlu0 %v649, 112
        %v676 = vpop.permute.xlu0 %675
        %v678 = vsel %vm563, %v622, %v652
        %v679 = vsel %vm565, %v678, %v656
        %v680 = vsel %vm567, %v679, %v660
        %v681 = vsel %vm569, %v680, %v664
        %v682 = vsel %vm571, %v681, %v668
        %v683 = vsel %vm573, %v682, %v672
        %v684 = vsel %vm575, %v683, %v676
        %vm685 = vcmask 31744
        %v687 = vsel %vm685, %v322, 0
        %vm689 = vcmask 1043456
        %v691 = vsel %vm689, %v576, 0
        %v694 = vsel %vm689, %v583, 0
        %696 = vmatprep.subr.mxu0 0.0
        %697 = vmatpush1.msra.mxu0 0.0
        %698 = vmatprep.subr.mxu0 0.0
        %699 = vmatpush1.msra.mxu0 0.0
        %700 = vmatprep.subr.mxu0 0.0
        %701 = vmatpush1.msra.mxu0 0.0
        %702 = vmatprep.subr.mxu0 0.0
        %703 = vmatpush1.msra.mxu0 0.0
        %704 = vmatprep.subr.mxu0 0.0
        %705 = vmatpush1.msra.mxu0 0.0
        %706 = vmatprep.subr.mxu0 0.0
        %707 = vmatpush1.msra.mxu0 0.0
        %708 = vmatprep.subr.mxu0 0.0
        %709 = vmatpush1.msra.mxu0 0.0
        %710 = vmatprep.subr.mxu0 0.0
        %711 = vmatpush1.msra.mxu0 0.0
        %712 = vmatprep.subr.mxu0 0.0
        %713 = vmatpush1.msra.mxu0 0.0
        %714 = vmatprep.subr.mxu0 0.0
        %715 = vmatpush1.msra.mxu0 0.0
        %716 = vmatprep.subr.mxu0 0.0
        %717 = vmatpush1.msra.mxu0 0.0
        %718 = vmatprep.subr.mxu0 0.0
        %719 = vmatpush1.msra.mxu0 0.0
        %720 = vmatprep.subr.mxu0 0.0
        %721 = vmatpush1.msra.mxu0 0.0
        %722 = vmatprep.subr.mxu0 0.0
        %723 = vmatpush1.msra.mxu0 0.0
        %724 = vmatprep.subr.mxu0 0.0
        %725 = vmatpush1.msra.mxu0 0.0
        %726 = vmatprep.subr.mxu0 %v694
        %727 = vmatpush1.msra.mxu0 %v691
        %728 = vmatprep.subr.mxu0 0.0
        %729 = vmatpush2.msra.mxu0 0.0
        %730 = vmatprep.subr.mxu0 0.0
        %731 = vmatpush2.msra.mxu0 0.0
        %732 = vmatprep.subr.mxu0 0.0
        %733 = vmatpush2.msra.mxu0 0.0
        %734 = vmatprep.subr.mxu0 0.0
        %735 = vmatpush2.msra.mxu0 0.0
        %736 = vmatprep.subr.mxu0 0.0
        %737 = vmatpush2.msra.mxu0 0.0
        %738 = vmatprep.subr.mxu0 0.0
        %739 = vmatpush2.msra.mxu0 0.0
        %740 = vmatprep.subr.mxu0 0.0
        %741 = vmatpush2.msra.mxu0 0.0
        %742 = vmatprep.subr.mxu0 0.0
        %743 = vmatpush2.msra.mxu0 0.0
        %744 = vmatprep.subr.mxu0 0.0
        %745 = vmatpush2.msra.mxu0 0.0
        %746 = vmatprep.subr.mxu0 0.0
        %747 = vmatpush2.msra.mxu0 0.0
        %748 = vmatprep.subr.mxu0 0.0
        %749 = vmatpush2.msra.mxu0 0.0
        %750 = vmatprep.subr.mxu0 0.0
        %751 = vmatpush2.msra.mxu0 0.0
        %752 = vmatprep.subr.mxu0 0.0
        %753 = vmatpush2.msra.mxu0 0.0
        %754 = vmatprep.subr.mxu0 0.0
        %755 = vmatpush2.msra.mxu0 0.0
        %756 = vmatprep.subr.mxu0 0.0
        %757 = vmatpush2.msra.mxu0 0.0
        %758 = vmatprep.subr.mxu0 0.0
        %759 = vmatpush2.msra.mxu0 0.0
        %760 = vmatprep.mubr.f32.mxu0 0.0
        %761 = vmatmul.mubr.f32.gmra.mxu0 %v687
        %v762 = vpop.f32.mrf.mxu0
        %v763 = vadd.f32 %v684, %v762
        %v764 = vpop.f32.mrf.mxu0
        %v765 = vadd.f32 %v684, %v764
        %766 = vdwg.mxu0
        %768 = vrot.lane.b32.xlu0 %v763, 112
        %v769 = vpop.permute.xlu0 %768
        %771 = vrot.lane.b32.xlu0 %v763, 96
        %v772 = vpop.permute.xlu0 %771
        %774 = vrot.lane.b32.xlu0 %v763, 80
        %v775 = vpop.permute.xlu0 %774
        %777 = vrot.lane.b32.xlu0 %v763, 64
        %v778 = vpop.permute.xlu0 %777
        %780 = vrot.lane.b32.xlu0 %v763, 48
        %v781 = vpop.permute.xlu0 %780
        %783 = vrot.lane.b32.xlu0 %v763, 32
        %v784 = vpop.permute.xlu0 %783
        %786 = vrot.lane.b32.xlu0 %v763, 16
        %v787 = vpop.permute.xlu0 %786
        %790 = vrot.lane.b32.xlu0 %v765, 112
        %v791 = vpop.permute.xlu0 %790
        %793 = vrot.lane.b32.xlu0 %v765, 96
        %v794 = vpop.permute.xlu0 %793
        %796 = vrot.lane.b32.xlu0 %v765, 80
        %v797 = vpop.permute.xlu0 %796
        %799 = vrot.lane.b32.xlu0 %v765, 64
        %v800 = vpop.permute.xlu0 %799
        %802 = vrot.lane.b32.xlu0 %v765, 48
        %v803 = vpop.permute.xlu0 %802
        %805 = vrot.lane.b32.xlu0 %v765, 32
        %v806 = vpop.permute.xlu0 %805
        %808 = vrot.lane.b32.xlu0 %v765, 16
        %v809 = vpop.permute.xlu0 %808
        %v811 = vcombine.low %v763, %v772
        %v813 = vunpack.c.l.s4 1983009808
        %v814 = vunpack.c.0.s8 %v813
        %v815 = vlaneseq
        %v816 = vshrl.u32 %v815, 7
        %v817 = vsub.s32 %v814, %v816
        %v818 = vrot.slane %v811, %v817
        %v819 = vcombine.low %v769, %v775
        %v821 = vunpack.c.l.s4 1983009808
        %v822 = vunpack.c.0.s8 %v821
        %v823 = vlaneseq
        %v824 = vshrl.u32 %v823, 7
        %v825 = vsub.s32 %v822, %v824
        %v826 = vrot.slane %v819, %v825
        %v827 = vcombine.low %v778, %v784
        %v829 = vunpack.c.l.s4 1983009808
        %v830 = vunpack.c.0.s8 %v829
        %v831 = vlaneseq
        %v832 = vshrl.u32 %v831, 7
        %v833 = vsub.s32 %v830, %v832
        %v834 = vrot.slane %v827, %v833
        %v835 = vcombine.low %v781, %v787
        %v837 = vunpack.c.l.s4 1983009808
        %v838 = vunpack.c.0.s8 %v837
        %v839 = vlaneseq
        %v840 = vshrl.u32 %v839, 7
        %v841 = vsub.s32 %v838, %v840
        %v842 = vrot.slane %v835, %v841
        %v843 = vcombine.low %v818, %v826
        %v845 = vunpack.c.l.s4 1934713408
        %v846 = vunpack.c.0.s8 %v845
        %v847 = vlaneseq
        %v848 = vshrl.u32 %v847, 7
        %v849 = vsub.s32 %v846, %v848
        %v850 = vrot.slane %v843, %v849
        %v851 = vcombine.low %v834, %v842
        %v853 = vunpack.c.l.s4 1934713408
        %v854 = vunpack.c.0.s8 %v853
        %v855 = vlaneseq
        %v856 = vshrl.u32 %v855, 7
        %v857 = vsub.s32 %v854, %v856
        %v858 = vrot.slane %v851, %v857
        %v859 = vcombine.low %v850, %v858
        %v860 = vcombine.high %v850, %v858
        %v861 = vcombine.low %v765, %v794
        %v863 = vunpack.c.l.s4 1983009808
        %v864 = vunpack.c.0.s8 %v863
        %v865 = vlaneseq
        %v866 = vshrl.u32 %v865, 7
        %v867 = vsub.s32 %v864, %v866
        %v868 = vrot.slane %v861, %v867
        %v869 = vcombine.low %v791, %v797
        %v871 = vunpack.c.l.s4 1983009808
        %v872 = vunpack.c.0.s8 %v871
        %v873 = vlaneseq
        %v874 = vshrl.u32 %v873, 7
        %v875 = vsub.s32 %v872, %v874
        %v876 = vrot.slane %v869, %v875
        %v877 = vcombine.low %v800, %v806
        %v879 = vunpack.c.l.s4 1983009808
        %v880 = vunpack.c.0.s8 %v879
        %v881 = vlaneseq
        %v882 = vshrl.u32 %v881, 7
        %v883 = vsub.s32 %v880, %v882
        %v884 = vrot.slane %v877, %v883
        %v885 = vcombine.low %v803, %v809
        %v887 = vunpack.c.l.s4 1983009808
        %v888 = vunpack.c.0.s8 %v887
        %v889 = vlaneseq
        %v890 = vshrl.u32 %v889, 7
        %v891 = vsub.s32 %v888, %v890
        %v892 = vrot.slane %v885, %v891
        %v893 = vcombine.low %v868, %v876
        %v895 = vunpack.c.l.s4 1934713408
        %v896 = vunpack.c.0.s8 %v895
        %v897 = vlaneseq
        %v898 = vshrl.u32 %v897, 7
        %v899 = vsub.s32 %v896, %v898
        %v900 = vrot.slane %v893, %v899
        %v901 = vcombine.low %v884, %v892
        %v903 = vunpack.c.l.s4 1934713408
        %v904 = vunpack.c.0.s8 %v903
        %v905 = vlaneseq
        %v906 = vshrl.u32 %v905, 7
        %v907 = vsub.s32 %v904, %v906
        %v908 = vrot.slane %v901, %v907
        %v909 = vcombine.low %v900, %v908
        %v910 = vcombine.high %v900, %v908
        %v911 = vld [vmem:[#allocation7] sm:$0xff]
        %v912 = vld [vmem:[#allocation7 + $0x8] sm:$0xff]
        %v914 = vsel %vm563, %v859, 0
        %v917 = vsel %vm563, %v909, 0
        %v920 = vsel %vm563, %v860, 0
        %v923 = vsel %vm563, %v910, 0
        %925 = vmatprep.subr.mxu0 0.0
        %926 = vmatpush1.msra.mxu0 0.0
        %927 = vmatprep.subr.mxu0 0.0
        %928 = vmatpush1.msra.mxu0 0.0
        %929 = vmatprep.subr.mxu0 0.0
        %930 = vmatpush1.msra.mxu0 0.0
        %931 = vmatprep.subr.mxu0 0.0
        %932 = vmatpush1.msra.mxu0 0.0
        %933 = vmatprep.subr.mxu0 0.0
        %934 = vmatpush1.msra.mxu0 0.0
        %935 = vmatprep.subr.mxu0 0.0
        %936 = vmatpush1.msra.mxu0 0.0
        %937 = vmatprep.subr.mxu0 0.0
        %938 = vmatpush1.msra.mxu0 0.0
        %939 = vmatprep.subr.mxu0 0.0
        %940 = vmatpush1.msra.mxu0 0.0
        %941 = vmatprep.subr.mxu0 0.0
        %942 = vmatpush1.msra.mxu0 0.0
        %943 = vmatprep.subr.mxu0 0.0
        %944 = vmatpush1.msra.mxu0 0.0
        %945 = vmatprep.subr.mxu0 0.0
        %946 = vmatpush1.msra.mxu0 0.0
        %947 = vmatprep.subr.mxu0 0.0
        %948 = vmatpush1.msra.mxu0 0.0
        %949 = vmatprep.subr.mxu0 0.0
        %950 = vmatpush1.msra.mxu0 0.0
        %951 = vmatprep.subr.mxu0 0.0
        %952 = vmatpush1.msra.mxu0 0.0
        %953 = vmatprep.subr.mxu0 0.0
        %954 = vmatpush1.msra.mxu0 %v912
        %955 = vmatprep.subr.mxu0 0.0
        %956 = vmatpush1.msra.mxu0 %v911
        %957 = vmatprep.subr.mxu0 0.0
        %958 = vmatpush2.msra.mxu0 0.0
        %959 = vmatprep.subr.mxu0 0.0
        %960 = vmatpush2.msra.mxu0 0.0
        %961 = vmatprep.subr.mxu0 0.0
        %962 = vmatpush2.msra.mxu0 0.0
        %963 = vmatprep.subr.mxu0 0.0
        %964 = vmatpush2.msra.mxu0 0.0
        %965 = vmatprep.subr.mxu0 0.0
        %966 = vmatpush2.msra.mxu0 0.0
        %967 = vmatprep.subr.mxu0 0.0
        %968 = vmatpush2.msra.mxu0 0.0
        %969 = vmatprep.subr.mxu0 0.0
        %970 = vmatpush2.msra.mxu0 0.0
        %971 = vmatprep.subr.mxu0 0.0
        %972 = vmatpush2.msra.mxu0 0.0
        %973 = vmatprep.subr.mxu0 0.0
        %974 = vmatpush2.msra.mxu0 0.0
        %975 = vmatprep.subr.mxu0 0.0
        %976 = vmatpush2.msra.mxu0 0.0
        %977 = vmatprep.subr.mxu0 0.0
        %978 = vmatpush2.msra.mxu0 0.0
        %979 = vmatprep.subr.mxu0 0.0
        %980 = vmatpush2.msra.mxu0 0.0
        %981 = vmatprep.subr.mxu0 0.0
        %982 = vmatpush2.msra.mxu0 0.0
        %983 = vmatprep.subr.mxu0 0.0
        %984 = vmatpush2.msra.mxu0 0.0
        %985 = vmatprep.subr.mxu0 0.0
        %986 = vmatpush2.msra.mxu0 0.0
        %987 = vmatprep.subr.mxu0 0.0
        %988 = vmatpush2.msra.mxu0 0.0
        %989 = vmatprep.mubr.f32.mxu0 0.0
        %990 = vmatmul.mubr.f32.gmra.mxu0 %v914
        %v991 = vpop.f32.mrf.mxu0
        %v992 = vadd.f32 0.0, %v991
        %v993 = vpop.f32.mrf.mxu0
        %994 = vmatprep.mubr.f32.mxu0 0.0
        %995 = vmatmul.mubr.f32.gmra.mxu0 %v917
        %v996 = vpop.f32.mrf.mxu0
        %v997 = vadd.f32 0.0, %v996
        %v998 = vpop.f32.mrf.mxu0
        %999 = vmatprep.mubr.f32.mxu0 0.0
        %1000 = vmatmul.mubr.f32.gmra.mxu0 %v920
        %v1001 = vpop.f32.mrf.mxu0
        %v1002 = vadd.f32 0.0, %v1001
        %v1003 = vpop.f32.mrf.mxu0
        %1004 = vmatprep.mubr.f32.mxu0 0.0
        %1005 = vmatmul.mubr.f32.gmra.mxu0 %v923
        %v1006 = vpop.f32.mrf.mxu0
        %v1007 = vadd.f32 0.0, %v1006
        %v1008 = vpop.f32.mrf.mxu0
        %1009 = vdwg.mxu0
        %1010 = vst.msk [vmem:[%s318] sm:$0xff] %vm569, %v992
        %1011 = vst.msk [vmem:[%s318 + $0x8] sm:$0xff] %vm569, %v997
        %1012 = vst.msk [vmem:[%s318 + $0x10] sm:$0xff] %vm569, %v1002
        %1013 = vst.msk [vmem:[%s318 + $0x18] sm:$0xff] %vm569, %v1007
        %v1014 = vld [vmem:[%s283] sm:$0xff]
        %v1015 = vld [vmem:[%s283 + $0x8] sm:$0xff]
        %v1016 = vld [vmem:[%s283 + $0x10] sm:$0xff]
        %v1017 = vld [vmem:[%s283 + $0x18] sm:$0xff]
        %s1018 = scalar_lea.vmem %s318, 32 [#allocation8]
        %1019 = vst.msk [vmem:[%s1018] sm:$0xff] %vm569, %v1014
        %1020 = vst.msk [vmem:[%s1018 + $0x8] sm:$0xff] %vm569, %v1015
        %1021 = vst.msk [vmem:[%s1018 + $0x10] sm:$0xff] %vm569, %v1016
        %1022 = vst.msk [vmem:[%s1018 + $0x18] sm:$0xff] %vm569, %v1017
        %s1023 = sand.u32 %s166, 1
        %s1024 = scalar_lea.sflag [#allocation4], %s1023
        %s1025 = sand.u32 %s166, 1
        %s1026 = smul.addr %s1025, 64
        %s1027 = scalar_lea.vmem [#allocation8], %s1026
        // Predicated region
        $region53: #{tpu_custom_call.1} parent=39 // pred_check
          %p1028 = pneg %p176
        $region54: #{tpu_custom_call.1} parent=39 // pred_check_branch
          %1030 = sbr.rel (%p1028) target = $region56
        $region55: #{tpu_custom_call.1} parent=39 // pred_region
          %s1031 = smul.u32 2, %s30
          %s1033 = ssub.s32 1024, 1024
          %1034 = vsyncadd %s1024, %s1033
          %s1035 = smul.addr %s29, 8
          %s1036 = sadd.s32 %s1031, %s1035
          %s1037 = smul.addr %s1036, 128
          %s1038 = scalar_lea.hbm %s5, %s1037
          %s1039 = sshll.u32 %s1027, 4
          %s1040 = int_to_ptr.vmem [resolvable:$true] %s1039
          %1045 = dma.vmem_to_hbm [thread:$0]  %s1040, 1024, %s1038, %s1024, 128, 128, 8
        $region56: #{tpu_custom_call.1} parent=39 // pred_fallthru
          _
      $region40: #{tpu_custom_call.1} parent=5 // pred_fallthru
        _
      %p1046 = scmp.le.s32.totalorder 2, %s20
      // Predicated region
      $region57: #{tpu_custom_call.1} parent=5 // pred_check
        %p1047 = pneg %p1046
      $region58: #{tpu_custom_call.1} parent=5 // pred_check_branch
        %1049 = sbr.rel (%p1047) target = $region60
      $region59: #{tpu_custom_call.1} parent=5 // pred_region
        %s1050 = ssub.s32 %s20, 2
        // Predicated region
        $region61: #{tpu_custom_call.1} parent=59 // pred_check
          %p1051 = pneg %p182
        $region62: #{tpu_custom_call.1} parent=59 // pred_check_branch
          %1053 = sbr.rel (%p1051) target = $region64
        $region63: #{tpu_custom_call.1} parent=59 // pred_region
          %s1054 = sand.u32 %s167, 1
          %s1055 = scalar_lea.sflag [#allocation4], %s1054
          %s1056 = sand.u32 %s167, 1
          %s1057 = smul.addr %s1056, 64
          %s1058 = scalar_lea.vmem [#allocation8], %s1057
          %1059 = dma.done %s1055, 1024
        $region64: #{tpu_custom_call.1} parent=59 // pred_fallthru
          _
      $region60: #{tpu_custom_call.1} parent=5 // pred_fallthru
        _
    $region6: #{tpu_custom_call.1} parent=1 // loop_footer
      %s24 = sadd.s32 1, %s20
    $region7: #{tpu_custom_call.1} parent=1 // loop_footer_branch
      %19 = sbr.rel target = $region3
    $region8: #{tpu_custom_call.1} parent=1 // loop_exit
      _
    %1060 = vsyncpa [#allocation3], 1
    %s1061 = scalar_lea.sflag [#allocation3], 1
    %1062 = vsyncpa %s1061, 1
    %1063 = vsyncpa [#allocation6], 1
    %s1064 = scalar_lea.sflag [#allocation6], 1
    %1065 = vsyncpa %s1064, 1
    %1066 = vsyncpa [#allocation4], 1
    %s1067 = scalar_lea.sflag [#allocation4], 1
    %1068 = vsyncpa %s1067, 1

// kernel: tpu_custom_call.1
$region0: #{tpu_custom_call.1}
  #allocation0 [shape = 'u32[]', space=smem, size = 0x4, offset = 0x4, fixed_abs, tag = 'smem constant byte address 0x4 - core index']
  #allocation1 [shape = 'u32[144,128]{1,0:T(1,128)}', space=vmem, size = 0x12000, scoped, tag = 'internal scratch']
  %s0 = inlined_call_operand.hbm [shape: f32[2,4,16,16], index: 0, kind: input, shape index: {}]
  %s1 = inlined_call_operand.hbm [shape: f32[2,2,16,64], index: 1, kind: input, shape index: {}]
  %s2 = inlined_call_operand.vmem [shape: f32[2,4], index: 2, kind: input, shape index: {}]
  %s3 = inlined_call_operand.vmem [shape: f32[2,1], index: 3, kind: input, shape index: {}]
  %s4 = inlined_call_operand.hbm [shape: f32[16,64], index: 4, kind: input, shape index: {}]
  %s5 = inlined_call_operand.hbm [shape: f32[2,4,16,64], index: 5, kind: output, shape index: {}]
  %s6 = sld [smem:[#allocation0]]
  $region65: #{tpu_custom_call.1} parent=0
    _
  %s8 = ssub.s32 1, %s6
  %s9 = scalar_select 0, %s8, %s6
  $region1: #{tpu_custom_call.1} parent=0
    #allocation2 [shape = 'u8[65536]{0}', space=vmem, size = 0x10000, scoped, tag = 'input window, operand 0']
    #allocation3 [shape = 's32[2]{0}', space=sflag, size = 0x8, scoped, tag = 'scoped memory for tpu_custom_call.1']
    #allocation4 [shape = 's32[2]{0}', space=sflag, size = 0x8, scoped, tag = 'scoped memory for tpu_custom_call.1']
    #allocation5 [shape = 'u8[32768]{0}', space=vmem, size = 0x8000, scoped, tag = 'input window, operand 1']
    #allocation6 [shape = 's32[2]{0}', space=sflag, size = 0x8, scoped, tag = 'scoped memory for tpu_custom_call.1']
    #allocation7 [shape = 'u8[8192]{0}', space=vmem, size = 0x2000, scoped, tag = 'input window, operand 4, single buffered']
    #allocation8 [shape = 'u8[65536]{0}', space=vmem, size = 0x10000, scoped, tag = 'output window, operand 0']
    %10 = vsyncpa [#allocation3], 0
    %s11 = scalar_lea.sflag [#allocation3], 1
    %12 = vsyncpa %s11, 0
    %13 = vsyncpa [#allocation6], 0
    %s14 = scalar_lea.sflag [#allocation6], 1
    %15 = vsyncpa %s14, 0
    %16 = vsyncpa [#allocation4], 0
    %s17 = scalar_lea.sflag [#allocation4], 1
    %18 = vsyncpa %s17, 0
    loop: start=0, step=1, limit=4
    $region2: #{tpu_custom_call.1} parent=1 // loop_pre_header
      _
    $region3: #{tpu_custom_call.1} parent=1 // loop_header
      %s20 = sphi 0, %s24
      %p21 = scmp.ge.s32.totalorder %s20, 4
      %s27 = sphi 0, %s39
      %s28 = sphi 0, %s35
      %s29 = sphi 0, %s27
      %s30 = sphi 0, %s28
      %s31 = sphi 0, %s29
      %s32 = sphi 0, %s30
      %s44 = sphi 0, %s46
      %s47 = sphi 0, %s44
      %s48 = sphi 0, %s47
      %s64 = sphi 0, %s48
      %s72 = sphi 0, %s74
      %s75 = sphi 0, %s72
      %s76 = sphi 0, %s75
      %s92 = sphi 0, %s76
      %s96 = sphi 0, %s96
      %s98 = sphi 0, %s96
      %s99 = sphi 0, %s98
      %s113 = sphi 0, %s99
      %s117 = sphi 0, %s117
      %s119 = sphi 0, %s117
      %s120 = sphi 0, %s119
      %s134 = sphi 0, %s120
      %s138 = sphi 0, %s138
      %s140 = sphi 0, %s138
      %s141 = sphi 0, %s140
      %s155 = sphi 0, %s141
      %s163 = sphi 0, %s165
      %s166 = sphi 0, %s163
      %s167 = sphi 0, %s166
      %s183 = sphi 0, %s167
    $region4: #{tpu_custom_call.1} parent=1 // loop_header_branch
      %23 = sbr.rel (%p21) target = $region8
    $region5: #{tpu_custom_call.1} parent=1 // loop_body
      %s25 = ssub.s32 %s20, 1
      %s26 = ssub.s32 %s20, 2
      %s33 = sadd.s32 1, %s28
      %p34 = scmp.ge.s32.totalorder %s33, 1
      %s35 = scalar_select %p34, 0, %s33
      %s36 = sadd.s32 1, %s27
      %s37 = scalar_select %p34, %s36, %s27
      %p38 = scmp.ge.s32.totalorder %s37, 2
      %s39 = scalar_select %p38, 0, %s37
      %s40 = ssub.s32 %s27, %s39
      %s41 = ssub.s32 %s28, %s35
      %s42 = sor.u32 %s40, %s41
      %p43 = scmp.eq.s32.totalorder %s42, 0
      %s45 = sadd.s32 %s44, 1
      %s46 = scalar_select %p43, %s44, %s45
      %p49 = pneg %p43
      %p50 = scmp.eq.s32.totalorder %s20, 1
      %p51 = por %p49, %p50
      %p52 = scmp.ne.s32.totalorder %s44, %s47
      %p53 = scmp.eq.s32.totalorder %s20, 0
      %p54 = por %p52, %p53
      %p55 = scmp.ne.s32.totalorder %s44, %s47
      %p56 = scmp.eq.s32.totalorder %s25, 1
      %p57 = por %p55, %p56
      %p58 = scmp.ne.s32.totalorder %s47, %s48
      %p59 = scmp.eq.s32.totalorder %s25, 0
      %p60 = por %p58, %p59
      %p61 = scmp.ne.s32.totalorder %s47, %s48
      %p62 = scmp.eq.s32.totalorder %s26, 1
      %p63 = por %p61, %p62
      %p65 = scmp.ne.s32.totalorder %s48, %s64
      %p66 = scmp.eq.s32.totalorder %s26, 0
      %p67 = por %p65, %p66
      %s68 = ssub.s32 %s27, %s39
      %s69 = ssub.s32 %s28, %s35
      %s70 = sor.u32 %s68, %s69
      %p71 = scmp.eq.s32.totalorder %s70, 0
      %s73 = sadd.s32 %s72, 1
      %s74 = scalar_select %p71, %s72, %s73
      %p77 = pneg %p71
      %p78 = scmp.eq.s32.totalorder %s20, 1
      %p79 = por %p77, %p78
      %p80 = scmp.ne.s32.totalorder %s72, %s75
      %p81 = scmp.eq.s32.totalorder %s20, 0
      %p82 = por %p80, %p81
      %p83 = scmp.ne.s32.totalorder %s72, %s75
      %p84 = scmp.eq.s32.totalorder %s25, 1
      %p85 = por %p83, %p84
      %p86 = scmp.ne.s32.totalorder %s75, %s76
      %p87 = scmp.eq.s32.totalorder %s25, 0
      %p88 = por %p86, %p87
      %p89 = scmp.ne.s32.totalorder %s75, %s76
      %p90 = scmp.eq.s32.totalorder %s26, 1
      %p91 = por %p89, %p90
      %p93 = scmp.ne.s32.totalorder %s76, %s92
      %p94 = scmp.eq.s32.totalorder %s26, 0
      %p95 = por %p93, %p94
      %s97 = sadd.s32 %s96, 1
      %p100 = scmp.eq.s32.totalorder %s20, 1
      %p101 = scmp.ne.s32.totalorder %s96, %s98
      %p102 = scmp.eq.s32.totalorder %s20, 0
      %p103 = por %p101, %p102
      %p104 = scmp.ne.s32.totalorder %s96, %s98
      %p105 = scmp.eq.s32.totalorder %s25, 1
      %p106 = por %p104, %p105
      %p107 = scmp.ne.s32.totalorder %s98, %s99
      %p108 = scmp.eq.s32.totalorder %s25, 0
      %p109 = por %p107, %p108
      %p110 = scmp.ne.s32.totalorder %s98, %s99
      %p111 = scmp.eq.s32.totalorder %s26, 1
      %p112 = por %p110, %p111
      %p114 = scmp.ne.s32.totalorder %s99, %s113
      %p115 = scmp.eq.s32.totalorder %s26, 0
      %p116 = por %p114, %p115
      %s118 = sadd.s32 %s117, 1
      %p121 = scmp.eq.s32.totalorder %s20, 1
      %p122 = scmp.ne.s32.totalorder %s117, %s119
      %p123 = scmp.eq.s32.totalorder %s20, 0
      %p124 = por %p122, %p123
      %p125 = scmp.ne.s32.totalorder %s117, %s119
      %p126 = scmp.eq.s32.totalorder %s25, 1
      %p127 = por %p125, %p126
      %p128 = scmp.ne.s32.totalorder %s119, %s120
      %p129 = scmp.eq.s32.totalorder %s25, 0
      %p130 = por %p128, %p129
      %p131 = scmp.ne.s32.totalorder %s119, %s120
      %p132 = scmp.eq.s32.totalorder %s26, 1
      %p133 = por %p131, %p132
      %p135 = scmp.ne.s32.totalorder %s120, %s134
      %p136 = scmp.eq.s32.totalorder %s26, 0
      %p137 = por %p135, %p136
      %s139 = sadd.s32 %s138, 1
      %p142 = scmp.eq.s32.totalorder %s20, 1
      %p143 = scmp.ne.s32.totalorder %s138, %s140
      %p144 = scmp.eq.s32.totalorder %s20, 0
      %p145 = por %p143, %p144
      %p146 = scmp.ne.s32.totalorder %s138, %s140
      %p147 = scmp.eq.s32.totalorder %s25, 1
      %p148 = por %p146, %p147
      %p149 = scmp.ne.s32.totalorder %s140, %s141
      %p150 = scmp.eq.s32.totalorder %s25, 0
      %p151 = por %p149, %p150
      %p152 = scmp.ne.s32.totalorder %s140, %s141
      %p153 = scmp.eq.s32.totalorder %s26, 1
      %p154 = por %p152, %p153
      %p156 = scmp.ne.s32.totalorder %s141, %s155
      %p157 = scmp.eq.s32.totalorder %s26, 0
      %p158 = por %p156, %p157
      %s159 = ssub.s32 %s27, %s39
      %s160 = ssub.s32 %s28, %s35
      %s161 = sor.u32 %s159, %s160
      %p162 = scmp.eq.s32.totalorder %s161, 0
      %s164 = sadd.s32 %s163, 1
      %s165 = scalar_select %p162, %s163, %s164
      %p168 = pneg %p162
      %p169 = scmp.eq.s32.totalorder %s20, 1
      %p170 = por %p168, %p169
      %p171 = scmp.ne.s32.totalorder %s163, %s166
      %p172 = scmp.eq.s32.totalorder %s20, 0
      %p173 = por %p171, %p172
      %p174 = scmp.ne.s32.totalorder %s163, %s166
      %p175 = scmp.eq.s32.totalorder %s25, 1
      %p176 = por %p174, %p175
      %p177 = scmp.ne.s32.totalorder %s166, %s167
      %p178 = scmp.eq.s32.totalorder %s25, 0
      %p179 = por %p177, %p178
      %p180 = scmp.ne.s32.totalorder %s166, %s167
      %p181 = scmp.eq.s32.totalorder %s26, 1
      %p182 = por %p180, %p181
      %p184 = scmp.ne.s32.totalorder %s167, %s183
      %p185 = scmp.eq.s32.totalorder %s26, 0
      %p186 = por %p184, %p185
      %p187 = scmp.le.s32.totalorder 1, %s20
      %p188 = scmp.lt.s32.totalorder %s20, 3
      %p189 = pnand %p187, %p188
      %p190 = pneg %p189
      // Predicated region
      $region9: #{tpu_custom_call.1} parent=5 // pred_check
        _
      $region10: #{tpu_custom_call.1} parent=5 // pred_check_branch
        %192 = sbr.rel (%p189) target = $region12
      $region11: #{tpu_custom_call.1} parent=5 // pred_region
        %s193 = ssub.s32 %s20, 1
        // Predicated region
        $region13: #{tpu_custom_call.1} parent=11 // pred_check
          %p194 = pneg %p109
        $region14: #{tpu_custom_call.1} parent=11 // pred_check_branch
          %196 = sbr.rel (%p194) target = $region16
        $region15: #{tpu_custom_call.1} parent=11 // pred_region
          _
        $region16: #{tpu_custom_call.1} parent=11 // pred_fallthru
          _
        // Predicated region
        $region17: #{tpu_custom_call.1} parent=11 // pred_check
          %p197 = pneg %p130
        $region18: #{tpu_custom_call.1} parent=11 // pred_check_branch
          %199 = sbr.rel (%p197) target = $region20
        $region19: #{tpu_custom_call.1} parent=11 // pred_region
          _
        $region20: #{tpu_custom_call.1} parent=11 // pred_fallthru
          _
        // Predicated region
        $region21: #{tpu_custom_call.1} parent=11 // pred_check
          %p200 = pneg %p151
        $region22: #{tpu_custom_call.1} parent=11 // pred_check_branch
          %202 = sbr.rel (%p200) target = $region24
        $region23: #{tpu_custom_call.1} parent=11 // pred_region
          %s204 = ssub.s32 256, 256
          %205 = vsyncadd [#allocation6], %s204
          %s206 = sshll.u32 [#allocation7], 4
          %s207 = int_to_ptr.vmem [resolvable:$true] %s206
          %212 = dma.hbm_to_vmem [thread:$0]  %s4, 256, %s207, [#allocation6], 128, 128, 8
        $region24: #{tpu_custom_call.1} parent=11 // pred_fallthru
          _
      $region12: #{tpu_custom_call.1} parent=5 // pred_fallthru
        _
      %p213 = scmp.lt.s32.totalorder %s20, 2
      // Predicated region
      $region25: #{tpu_custom_call.1} parent=5 // pred_check
        %p214 = pneg %p213
      $region26: #{tpu_custom_call.1} parent=5 // pred_check_branch
        %216 = sbr.rel (%p214) target = $region28
      $region27: #{tpu_custom_call.1} parent=5 // pred_region
        // Predicated region
        $region29: #{tpu_custom_call.1} parent=27 // pred_check
          %p217 = pneg %p54
        $region30: #{tpu_custom_call.1} parent=27 // pred_check_branch
          %219 = sbr.rel (%p217) target = $region32
        $region31: #{tpu_custom_call.1} parent=27 // pred_region
          %s220 = sand.u32 %s44, 1
          %s221 = scalar_lea.sflag [#allocation3], %s220
          %s222 = sand.u32 %s44, 1
          %s223 = smul.addr %s222, 64
          %s224 = scalar_lea.vmem [#allocation2], %s223
          %s225 = smul.u32 2, %s28
          %s227 = ssub.s32 1024, 1024
          %228 = vsyncadd %s221, %s227
          %s229 = smul.addr %s27, 8
          %s230 = sadd.s32 %s225, %s229
          %s231 = smul.addr %s230, 128
          %s232 = scalar_lea.hbm %s0, %s231
          %s233 = sshll.u32 %s224, 4
          %s234 = int_to_ptr.vmem [resolvable:$true] %s233
          %239 = dma.hbm_to_vmem [thread:$0]  %s232, 1024, %s234, %s221, 128, 128, 8
        $region32: #{tpu_custom_call.1} parent=27 // pred_fallthru
          _
        // Predicated region
        $region33: #{tpu_custom_call.1} parent=27 // pred_check
          %p240 = pneg %p82
        $region34: #{tpu_custom_call.1} parent=27 // pred_check_branch
          %242 = sbr.rel (%p240) target = $region36
        $region35: #{tpu_custom_call.1} parent=27 // pred_region
          %s243 = sand.u32 %s20, 1
          %s244 = scalar_lea.sflag [#allocation6], %s243
          %s245 = sand.u32 %s72, 1
          %s246 = smul.addr %s245, 32
          %s247 = scalar_lea.vmem [#allocation5], %s246
          %s248 = smul.u32 2, %s28
          %s250 = ssub.s32 512, 512
          %251 = vsyncadd %s244, %s250
          %s252 = smul.addr %s27, 4
          %s253 = sadd.s32 %s248, %s252
          %s254 = smul.addr %s253, 128
          %s255 = scalar_lea.hbm %s1, %s254
          %s256 = sshll.u32 %s247, 4
          %s257 = int_to_ptr.vmem [resolvable:$true] %s256
          %262 = dma.hbm_to_vmem [thread:$0]  %s255, 512, %s257, %s244, 128, 128, 8
        $region36: #{tpu_custom_call.1} parent=27 // pred_fallthru
          _
      $region28: #{tpu_custom_call.1} parent=5 // pred_fallthru
        _
      %p263 = scmp.le.s32.totalorder 1, %s20
      %p264 = scmp.lt.s32.totalorder %s20, 3
      %p265 = pnand %p263, %p264
      %p266 = pneg %p265
      // Predicated region
      $region37: #{tpu_custom_call.1} parent=5 // pred_check
        _
      $region38: #{tpu_custom_call.1} parent=5 // pred_check_branch
        %268 = sbr.rel (%p265) target = $region40
      $region39: #{tpu_custom_call.1} parent=5 // pred_region
        %s269 = ssub.s32 %s20, 1
        %s270 = sand.u32 %s47, 1
        %s271 = scalar_lea.sflag [#allocation3], %s270
        %s272 = sand.u32 %s47, 1
        %s273 = smul.addr %s272, 64
        %s274 = scalar_lea.vmem [#allocation2], %s273
        // Predicated region
        $region41: #{tpu_custom_call.1} parent=39 // pred_check
          %p275 = pneg %p60
        $region42: #{tpu_custom_call.1} parent=39 // pred_check_branch
          %277 = sbr.rel (%p275) target = $region44
        $region43: #{tpu_custom_call.1} parent=39 // pred_region
          %278 = dma.done %s271, 1024
        $region44: #{tpu_custom_call.1} parent=39 // pred_fallthru
          _
        %s279 = sand.u32 %s25, 1
        %s280 = scalar_lea.sflag [#allocation6], %s279
        %s281 = sand.u32 %s75, 1
        %s282 = smul.addr %s281, 32
        %s283 = scalar_lea.vmem [#allocation5], %s282
        // Predicated region
        $region45: #{tpu_custom_call.1} parent=39 // pred_check
          %p284 = pneg %p88
        $region46: #{tpu_custom_call.1} parent=39 // pred_check_branch
          %286 = sbr.rel (%p284) target = $region48
        $region47: #{tpu_custom_call.1} parent=39 // pred_region
          %287 = dma.done %s280, 512
        $region48: #{tpu_custom_call.1} parent=39 // pred_fallthru
          _
        // Predicated region
        $region49: #{tpu_custom_call.1} parent=39 // pred_check
          %p288 = pneg %p151
        $region50: #{tpu_custom_call.1} parent=39 // pred_check_branch
          %290 = sbr.rel (%p288) target = $region52
        $region51: #{tpu_custom_call.1} parent=39 // pred_region
          %291 = dma.done [#allocation6], 256
        $region52: #{tpu_custom_call.1} parent=39 // pred_fallthru
          _
        %s292 = sand.u32 %s47, 1
        %s293 = scalar_lea.sflag [#allocation3], %s292
        %s294 = sand.u32 %s47, 1
        %s295 = smul.addr %s294, 64
        %s296 = scalar_lea.vmem [#allocation2], %s295
        %p297 = pneg %p60
        %p298 = pneg %p57
        %s299 = sand.u32 %s25, 1
        %s300 = scalar_lea.sflag [#allocation6], %s299
        %s301 = sand.u32 %s75, 1
        %s302 = smul.addr %s301, 32
        %s303 = scalar_lea.vmem [#allocation5], %s302
        %p304 = pneg %p88
        %p305 = pneg %p85
        %p306 = pneg %p109
        %p307 = pneg %p106
        %p308 = pneg %p130
        %p309 = pneg %p127
        %p310 = pneg %p151
        %p311 = pneg %p148
        %p312 = pneg %p179
        %p313 = pneg %p176
        %s314 = sand.u32 %s166, 1
        %s315 = scalar_lea.sflag [#allocation4], %s314
        %s316 = sand.u32 %s166, 1
        %s317 = smul.addr %s316, 64
        %s318 = scalar_lea.vmem [#allocation8], %s317
        %s319 = smul.u32 2, %s30
        %s320 = smul.u32 2, %s30
        %s321 = smul.u32 2, %s30
        %v322 = vld [vmem:[%s2] sm:$0x3]
        %v323 = vld [vmem:[#allocation7] sm:$0xff]
        %v324 = vld [vmem:[#allocation7 + $0x8] sm:$0xff]
        %v325 = vld [vmem:[%s3] sm:$0x3]
        %327 = vset.pattern.permute.xlu0 0
        %328 = vperm.xlu0 %327, %v325
        %v329 = vpop.permute.xlu0 %328
        %v331 = vld [vmem:[%s274] sm:$0x1]
        %v332 = vld [vmem:[%s274 + $0x10] sm:$0x1]
        %v333 = vld [vmem:[%s274 + $0x20] sm:$0x1]
        %v334 = vld [vmem:[%s274 + $0x30] sm:$0x1]
        %v339 = vrot.slane %v332, 7
        %vm340 = vcmask 1041409
        %v341 = vsel %vm340, %v339, %v331
        %v342 = vrot.slane %v333, 6
        %vm343 = vcmask 1042434
        %v344 = vsel %vm343, %v342, %v341
        %v345 = vrot.slane %v334, 5
        %vm346 = vcmask 1043459
        %v347 = vsel %vm346, %v345, %v344
        %vm348 = vcmask 31744
        %v350 = vsel %vm348, %v322, 0
        %vm352 = vcmask 1043456
        %v353 = vsel %vm352, %v347, 0
        %355 = vmatprep.subr.mxu0 0.0
        %356 = vmatpush1.msra.mxu0 0.0
        %357 = vmatprep.subr.mxu0 0.0
        %358 = vmatpush1.msra.mxu0 0.0
        %359 = vmatprep.subr.mxu0 0.0
        %360 = vmatpush1.msra.mxu0 0.0
        %361 = vmatprep.subr.mxu0 0.0
        %362 = vmatpush1.msra.mxu0 0.0
        %363 = vmatprep.subr.mxu0 0.0
        %364 = vmatpush1.msra.mxu0 0.0
        %365 = vmatprep.subr.mxu0 0.0
        %366 = vmatpush1.msra.mxu0 0.0
        %367 = vmatprep.subr.mxu0 0.0
        %368 = vmatpush1.msra.mxu0 0.0
        %369 = vmatprep.subr.mxu0 0.0
        %370 = vmatpush1.msra.mxu0 0.0
        %371 = vmatprep.subr.mxu0 0.0
        %372 = vmatpush1.msra.mxu0 0.0
        %373 = vmatprep.subr.mxu0 0.0
        %374 = vmatpush1.msra.mxu0 0.0
        %375 = vmatprep.subr.mxu0 0.0
        %376 = vmatpush1.msra.mxu0 0.0
        %377 = vmatprep.subr.mxu0 0.0
        %378 = vmatpush1.msra.mxu0 0.0
        %379 = vmatprep.subr.mxu0 0.0
        %380 = vmatpush1.msra.mxu0 0.0
        %381 = vmatprep.subr.mxu0 0.0
        %382 = vmatpush1.msra.mxu0 0.0
        %383 = vmatprep.subr.mxu0 0.0
        %384 = vmatpush1.msra.mxu0 0.0
        %385 = vmatprep.subr.mxu0 0.0
        %386 = vmatpush1.msra.mxu0 %v353
        %387 = vmatprep.subr.mxu0 0.0
        %388 = vmatpush2.msra.mxu0 0.0
        %389 = vmatprep.subr.mxu0 0.0
        %390 = vmatpush2.msra.mxu0 0.0
        %391 = vmatprep.subr.mxu0 0.0
        %392 = vmatpush2.msra.mxu0 0.0
        %393 = vmatprep.subr.mxu0 0.0
        %394 = vmatpush2.msra.mxu0 0.0
        %395 = vmatprep.subr.mxu0 0.0
        %396 = vmatpush2.msra.mxu0 0.0
        %397 = vmatprep.subr.mxu0 0.0
        %398 = vmatpush2.msra.mxu0 0.0
        %399 = vmatprep.subr.mxu0 0.0
        %400 = vmatpush2.msra.mxu0 0.0
        %401 = vmatprep.subr.mxu0 0.0
        %402 = vmatpush2.msra.mxu0 0.0
        %403 = vmatprep.subr.mxu0 0.0
        %404 = vmatpush2.msra.mxu0 0.0
        %405 = vmatprep.subr.mxu0 0.0
        %406 = vmatpush2.msra.mxu0 0.0
        %407 = vmatprep.subr.mxu0 0.0
        %408 = vmatpush2.msra.mxu0 0.0
        %409 = vmatprep.subr.mxu0 0.0
        %410 = vmatpush2.msra.mxu0 0.0
        %411 = vmatprep.subr.mxu0 0.0
        %412 = vmatpush2.msra.mxu0 0.0
        %413 = vmatprep.subr.mxu0 0.0
        %414 = vmatpush2.msra.mxu0 0.0
        %415 = vmatprep.subr.mxu0 0.0
        %416 = vmatpush2.msra.mxu0 0.0
        %417 = vmatprep.subr.mxu0 0.0
        %418 = vmatpush2.msra.mxu0 0.0
        %419 = vmatprep.mubr.f32.mxu0 0.0
        %420 = vmatmul.mubr.f32.gmra.mxu0 %v350
        %v421 = vpop.f32.mrf.mxu0
        %v422 = vadd.f32 %v329, %v421
        %v423 = vpop.f32.mrf.mxu0
        %424 = vdwg.mxu0
        %vm425 = vcmask 130048
        %v427 = vsel %vm425, %v422, 0
        %429 = vmatprep.subr.mxu0 0.0
        %430 = vmatpush1.msra.mxu0 0.0
        %431 = vmatprep.subr.mxu0 0.0
        %432 = vmatpush1.msra.mxu0 0.0
        %433 = vmatprep.subr.mxu0 0.0
        %434 = vmatpush1.msra.mxu0 0.0
        %435 = vmatprep.subr.mxu0 0.0
        %436 = vmatpush1.msra.mxu0 0.0
        %437 = vmatprep.subr.mxu0 0.0
        %438 = vmatpush1.msra.mxu0 0.0
        %439 = vmatprep.subr.mxu0 0.0
        %440 = vmatpush1.msra.mxu0 0.0
        %441 = vmatprep.subr.mxu0 0.0
        %442 = vmatpush1.msra.mxu0 0.0
        %443 = vmatprep.subr.mxu0 0.0
        %444 = vmatpush1.msra.mxu0 0.0
        %445 = vmatprep.subr.mxu0 0.0
        %446 = vmatpush1.msra.mxu0 0.0
        %447 = vmatprep.subr.mxu0 0.0
        %448 = vmatpush1.msra.mxu0 0.0
        %449 = vmatprep.subr.mxu0 0.0
        %450 = vmatpush1.msra.mxu0 0.0
        %451 = vmatprep.subr.mxu0 0.0
        %452 = vmatpush1.msra.mxu0 0.0
        %453 = vmatprep.subr.mxu0 0.0
        %454 = vmatpush1.msra.mxu0 0.0
        %455 = vmatprep.subr.mxu0 0.0
        %456 = vmatpush1.msra.mxu0 0.0
        %457 = vmatprep.subr.mxu0 0.0
        %458 = vmatpush1.msra.mxu0 %v324
        %459 = vmatprep.subr.mxu0 0.0
        %460 = vmatpush1.msra.mxu0 %v323
        %461 = vmatprep.subr.mxu0 0.0
        %462 = vmatpush2.msra.mxu0 0.0
        %463 = vmatprep.subr.mxu0 0.0
        %464 = vmatpush2.msra.mxu0 0.0
        %465 = vmatprep.subr.mxu0 0.0
        %466 = vmatpush2.msra.mxu0 0.0
        %467 = vmatprep.subr.mxu0 0.0
        %468 = vmatpush2.msra.mxu0 0.0
        %469 = vmatprep.subr.mxu0 0.0
        %470 = vmatpush2.msra.mxu0 0.0
        %471 = vmatprep.subr.mxu0 0.0
        %472 = vmatpush2.msra.mxu0 0.0
        %473 = vmatprep.subr.mxu0 0.0
        %474 = vmatpush2.msra.mxu0 0.0
        %475 = vmatprep.subr.mxu0 0.0
        %476 = vmatpush2.msra.mxu0 0.0
        %477 = vmatprep.subr.mxu0 0.0
        %478 = vmatpush2.msra.mxu0 0.0
        %479 = vmatprep.subr.mxu0 0.0
        %480 = vmatpush2.msra.mxu0 0.0
        %481 = vmatprep.subr.mxu0 0.0
        %482 = vmatpush2.msra.mxu0 0.0
        %483 = vmatprep.subr.mxu0 0.0
        %484 = vmatpush2.msra.mxu0 0.0
        %485 = vmatprep.subr.mxu0 0.0
        %486 = vmatpush2.msra.mxu0 0.0
        %487 = vmatprep.subr.mxu0 0.0
        %488 = vmatpush2.msra.mxu0 0.0
        %489 = vmatprep.subr.mxu0 0.0
        %490 = vmatpush2.msra.mxu0 0.0
        %491 = vmatprep.subr.mxu0 0.0
        %492 = vmatpush2.msra.mxu0 0.0
        %493 = vmatprep.mubr.f32.mxu0 0.0
        %494 = vmatmul.mubr.f32.gmra.mxu0 %v427
        %v495 = vpop.f32.mrf.mxu0
        %v496 = vadd.f32 0.0, %v495
        %v497 = vpop.f32.mrf.mxu0
        %498 = vdwg.mxu0
        %v501 = vunpack.c.l.s4 1966171168
        %v502 = vunpack.c.0.s8 %v501
        %v503 = vlaneseq
        %v504 = vshrl.u32 %v503, 7
        %v505 = vsub.s32 %v502, %v504
        %v506 = vrot.slane %v496, %v505
        %v507 = vcombine.high %v506, %v506
        %v509 = vunpack.c.l.s4 1966171168
        %v510 = vunpack.c.0.s8 %v509
        %v511 = vlaneseq
        %v512 = vshrl.u32 %v511, 7
        %v513 = vsub.s32 %v510, %v512
        %v514 = vrot.slane %v506, %v513
        %v516 = vunpack.c.l.s4 1966171168
        %v517 = vunpack.c.0.s8 %v516
        %v518 = vlaneseq
        %v519 = vshrl.u32 %v518, 7
        %v520 = vsub.s32 %v517, %v519
        %v521 = vrot.slane %v507, %v520
        %vm524 = vcmask 516096
        %525 = vst.msk [vmem:[%s318] sm:$0x1] %vm524, %v514
        %526 = vst.msk [vmem:[%s318 + $0x10] sm:$0x1] %vm524, %v521
        %v527 = vld [vmem:[%s274 + $0x1] sm:$0x1]
        %v528 = vld [vmem:[%s274 + $0x11] sm:$0x1]
        %v529 = vld [vmem:[%s274 + $0x21] sm:$0x1]
        %v530 = vld [vmem:[%s274 + $0x31] sm:$0x1]
        %v535 = vrot.slane %v528, 7
        %v536 = vsel %vm340, %v535, %v527
        %v537 = vrot.slane %v529, 6
        %v538 = vsel %vm343, %v537, %v536
        %v539 = vrot.slane %v530, 5
        %v540 = vsel %vm346, %v539, %v538
        %v541 = vsel %vm352, %v540, 0
        %543 = vmatprep.subr.mxu0 0.0
        %544 = vmatpush1.msra.mxu0 0.0
        %545 = vmatprep.subr.mxu0 0.0
        %546 = vmatpush1.msra.mxu0 0.0
        %547 = vmatprep.subr.mxu0 0.0
        %548 = vmatpush1.msra.mxu0 0.0
        %549 = vmatprep.subr.mxu0 0.0
        %550 = vmatpush1.msra.mxu0 0.0
        %551 = vmatprep.subr.mxu0 0.0
        %552 = vmatpush1.msra.mxu0 0.0
        %553 = vmatprep.subr.mxu0 0.0
        %554 = vmatpush1.msra.mxu0 0.0
        %555 = vmatprep.subr.mxu0 0.0
        %556 = vmatpush1.msra.mxu0 0.0
        %557 = vmatprep.subr.mxu0 0.0
        %558 = vmatpush1.msra.mxu0 0.0
        %559 = vmatprep.subr.mxu0 0.0
        %560 = vmatpush1.msra.mxu0 0.0
        %561 = vmatprep.subr.mxu0 0.0
        %562 = vmatpush1.msra.mxu0 0.0
        %563 = vmatprep.subr.mxu0 0.0
        %564 = vmatpush1.msra.mxu0 0.0
        %565 = vmatprep.subr.mxu0 0.0
        %566 = vmatpush1.msra.mxu0 0.0
        %567 = vmatprep.subr.mxu0 0.0
        %568 = vmatpush1.msra.mxu0 0.0
        %569 = vmatprep.subr.mxu0 0.0
        %570 = vmatpush1.msra.mxu0 0.0
        %571 = vmatprep.subr.mxu0 0.0
        %572 = vmatpush1.msra.mxu0 0.0
        %573 = vmatprep.subr.mxu0 0.0
        %574 = vmatpush1.msra.mxu0 %v541
        %575 = vmatprep.subr.mxu0 0.0
        %576 = vmatpush2.msra.mxu0 0.0
        %577 = vmatprep.subr.mxu0 0.0
        %578 = vmatpush2.msra.mxu0 0.0
        %579 = vmatprep.subr.mxu0 0.0
        %580 = vmatpush2.msra.mxu0 0.0
        %581 = vmatprep.subr.mxu0 0.0
        %582 = vmatpush2.msra.mxu0 0.0
        %583 = vmatprep.subr.mxu0 0.0
        %584 = vmatpush2.msra.mxu0 0.0
        %585 = vmatprep.subr.mxu0 0.0
        %586 = vmatpush2.msra.mxu0 0.0
        %587 = vmatprep.subr.mxu0 0.0
        %588 = vmatpush2.msra.mxu0 0.0
        %589 = vmatprep.subr.mxu0 0.0
        %590 = vmatpush2.msra.mxu0 0.0
        %591 = vmatprep.subr.mxu0 0.0
        %592 = vmatpush2.msra.mxu0 0.0
        %593 = vmatprep.subr.mxu0 0.0
        %594 = vmatpush2.msra.mxu0 0.0
        %595 = vmatprep.subr.mxu0 0.0
        %596 = vmatpush2.msra.mxu0 0.0
        %597 = vmatprep.subr.mxu0 0.0
        %598 = vmatpush2.msra.mxu0 0.0
        %599 = vmatprep.subr.mxu0 0.0
        %600 = vmatpush2.msra.mxu0 0.0
        %601 = vmatprep.subr.mxu0 0.0
        %602 = vmatpush2.msra.mxu0 0.0
        %603 = vmatprep.subr.mxu0 0.0
        %604 = vmatpush2.msra.mxu0 0.0
        %605 = vmatprep.subr.mxu0 0.0
        %606 = vmatpush2.msra.mxu0 0.0
        %607 = vmatprep.mubr.f32.mxu0 0.0
        %608 = vmatmul.mubr.f32.gmra.mxu0 %v350
        %v609 = vpop.f32.mrf.mxu0
        %v610 = vadd.f32 %v329, %v609
        %v611 = vpop.f32.mrf.mxu0
        %612 = vdwg.mxu0
        %v614 = vsel %vm425, %v610, 0
        %616 = vmatprep.subr.mxu0 0.0
        %617 = vmatpush1.msra.mxu0 0.0
        %618 = vmatprep.subr.mxu0 0.0
        %619 = vmatpush1.msra.mxu0 0.0
        %620 = vmatprep.subr.mxu0 0.0
        %621 = vmatpush1.msra.mxu0 0.0
        %622 = vmatprep.subr.mxu0 0.0
        %623 = vmatpush1.msra.mxu0 0.0
        %624 = vmatprep.subr.mxu0 0.0
        %625 = vmatpush1.msra.mxu0 0.0
        %626 = vmatprep.subr.mxu0 0.0
        %627 = vmatpush1.msra.mxu0 0.0
        %628 = vmatprep.subr.mxu0 0.0
        %629 = vmatpush1.msra.mxu0 0.0
        %630 = vmatprep.subr.mxu0 0.0
        %631 = vmatpush1.msra.mxu0 0.0
        %632 = vmatprep.subr.mxu0 0.0
        %633 = vmatpush1.msra.mxu0 0.0
        %634 = vmatprep.subr.mxu0 0.0
        %635 = vmatpush1.msra.mxu0 0.0
        %636 = vmatprep.subr.mxu0 0.0
        %637 = vmatpush1.msra.mxu0 0.0
        %638 = vmatprep.subr.mxu0 0.0
        %639 = vmatpush1.msra.mxu0 0.0
        %640 = vmatprep.subr.mxu0 0.0
        %641 = vmatpush1.msra.mxu0 0.0
        %642 = vmatprep.subr.mxu0 0.0
        %643 = vmatpush1.msra.mxu0 0.0
        %644 = vmatprep.subr.mxu0 0.0
        %645 = vmatpush1.msra.mxu0 %v324
        %646 = vmatprep.subr.mxu0 0.0
        %647 = vmatpush1.msra.mxu0 %v323
        %648 = vmatprep.subr.mxu0 0.0
        %649 = vmatpush2.msra.mxu0 0.0
        %650 = vmatprep.subr.mxu0 0.0
        %651 = vmatpush2.msra.mxu0 0.0
        %652 = vmatprep.subr.mxu0 0.0
        %653 = vmatpush2.msra.mxu0 0.0
        %654 = vmatprep.subr.mxu0 0.0
        %655 = vmatpush2.msra.mxu0 0.0
        %656 = vmatprep.subr.mxu0 0.0
        %657 = vmatpush2.msra.mxu0 0.0
        %658 = vmatprep.subr.mxu0 0.0
        %659 = vmatpush2.msra.mxu0 0.0
        %660 = vmatprep.subr.mxu0 0.0
        %661 = vmatpush2.msra.mxu0 0.0
        %662 = vmatprep.subr.mxu0 0.0
        %663 = vmatpush2.msra.mxu0 0.0
        %664 = vmatprep.subr.mxu0 0.0
        %665 = vmatpush2.msra.mxu0 0.0
        %666 = vmatprep.subr.mxu0 0.0
        %667 = vmatpush2.msra.mxu0 0.0
        %668 = vmatprep.subr.mxu0 0.0
        %669 = vmatpush2.msra.mxu0 0.0
        %670 = vmatprep.subr.mxu0 0.0
        %671 = vmatpush2.msra.mxu0 0.0
        %672 = vmatprep.subr.mxu0 0.0
        %673 = vmatpush2.msra.mxu0 0.0
        %674 = vmatprep.subr.mxu0 0.0
        %675 = vmatpush2.msra.mxu0 0.0
        %676 = vmatprep.subr.mxu0 0.0
        %677 = vmatpush2.msra.mxu0 0.0
        %678 = vmatprep.subr.mxu0 0.0
        %679 = vmatpush2.msra.mxu0 0.0
        %680 = vmatprep.mubr.f32.mxu0 0.0
        %681 = vmatmul.mubr.f32.gmra.mxu0 %v614
        %v682 = vpop.f32.mrf.mxu0
        %v683 = vadd.f32 0.0, %v682
        %v684 = vpop.f32.mrf.mxu0
        %685 = vdwg.mxu0
        %v688 = vunpack.c.l.s4 1966171168
        %v689 = vunpack.c.0.s8 %v688
        %v690 = vlaneseq
        %v691 = vshrl.u32 %v690, 7
        %v692 = vsub.s32 %v689, %v691
        %v693 = vrot.slane %v683, %v692
        %v694 = vcombine.high %v693, %v693
        %v696 = vunpack.c.l.s4 1966171168
        %v697 = vunpack.c.0.s8 %v696
        %v698 = vlaneseq
        %v699 = vshrl.u32 %v698, 7
        %v700 = vsub.s32 %v697, %v699
        %v701 = vrot.slane %v693, %v700
        %v703 = vunpack.c.l.s4 1966171168
        %v704 = vunpack.c.0.s8 %v703
        %v705 = vlaneseq
        %v706 = vshrl.u32 %v705, 7
        %v707 = vsub.s32 %v704, %v706
        %v708 = vrot.slane %v694, %v707
        %711 = vst.msk [vmem:[%s318 + $0x1] sm:$0x1] %vm524, %v701
        %712 = vst.msk [vmem:[%s318 + $0x11] sm:$0x1] %vm524, %v708
        %v713 = vld [vmem:[%s274 + $0x2] sm:$0x1]
        %v714 = vld [vmem:[%s274 + $0x12] sm:$0x1]
        %v715 = vld [vmem:[%s274 + $0x22] sm:$0x1]
        %v716 = vld [vmem:[%s274 + $0x32] sm:$0x1]
        %v721 = vrot.slane %v714, 7
        %v722 = vsel %vm340, %v721, %v713
        %v723 = vrot.slane %v715, 6
        %v724 = vsel %vm343, %v723, %v722
        %v725 = vrot.slane %v716, 5
        %v726 = vsel %vm346, %v725, %v724
        %v727 = vsel %vm352, %v726, 0
        %729 = vmatprep.subr.mxu0 0.0
        %730 = vmatpush1.msra.mxu0 0.0
        %731 = vmatprep.subr.mxu0 0.0
        %732 = vmatpush1.msra.mxu0 0.0
        %733 = vmatprep.subr.mxu0 0.0
        %734 = vmatpush1.msra.mxu0 0.0
        %735 = vmatprep.subr.mxu0 0.0
        %736 = vmatpush1.msra.mxu0 0.0
        %737 = vmatprep.subr.mxu0 0.0
        %738 = vmatpush1.msra.mxu0 0.0
        %739 = vmatprep.subr.mxu0 0.0
        %740 = vmatpush1.msra.mxu0 0.0
        %741 = vmatprep.subr.mxu0 0.0
        %742 = vmatpush1.msra.mxu0 0.0
        %743 = vmatprep.subr.mxu0 0.0
        %744 = vmatpush1.msra.mxu0 0.0
        %745 = vmatprep.subr.mxu0 0.0
        %746 = vmatpush1.msra.mxu0 0.0
        %747 = vmatprep.subr.mxu0 0.0
        %748 = vmatpush1.msra.mxu0 0.0
        %749 = vmatprep.subr.mxu0 0.0
        %750 = vmatpush1.msra.mxu0 0.0
        %751 = vmatprep.subr.mxu0 0.0
        %752 = vmatpush1.msra.mxu0 0.0
        %753 = vmatprep.subr.mxu0 0.0
        %754 = vmatpush1.msra.mxu0 0.0
        %755 = vmatprep.subr.mxu0 0.0
        %756 = vmatpush1.msra.mxu0 0.0
        %757 = vmatprep.subr.mxu0 0.0
        %758 = vmatpush1.msra.mxu0 0.0
        %759 = vmatprep.subr.mxu0 0.0
        %760 = vmatpush1.msra.mxu0 %v727
        %761 = vmatprep.subr.mxu0 0.0
        %762 = vmatpush2.msra.mxu0 0.0
        %763 = vmatprep.subr.mxu0 0.0
        %764 = vmatpush2.msra.mxu0 0.0
        %765 = vmatprep.subr.mxu0 0.0
        %766 = vmatpush2.msra.mxu0 0.0
        %767 = vmatprep.subr.mxu0 0.0
        %768 = vmatpush2.msra.mxu0 0.0
        %769 = vmatprep.subr.mxu0 0.0
        %770 = vmatpush2.msra.mxu0 0.0
        %771 = vmatprep.subr.mxu0 0.0
        %772 = vmatpush2.msra.mxu0 0.0
        %773 = vmatprep.subr.mxu0 0.0
        %774 = vmatpush2.msra.mxu0 0.0
        %775 = vmatprep.subr.mxu0 0.0
        %776 = vmatpush2.msra.mxu0 0.0
        %777 = vmatprep.subr.mxu0 0.0
        %778 = vmatpush2.msra.mxu0 0.0
        %779 = vmatprep.subr.mxu0 0.0
        %780 = vmatpush2.msra.mxu0 0.0
        %781 = vmatprep.subr.mxu0 0.0
        %782 = vmatpush2.msra.mxu0 0.0
        %783 = vmatprep.subr.mxu0 0.0
        %784 = vmatpush2.msra.mxu0 0.0
        %785 = vmatprep.subr.mxu0 0.0
        %786 = vmatpush2.msra.mxu0 0.0
        %787 = vmatprep.subr.mxu0 0.0
        %788 = vmatpush2.msra.mxu0 0.0
        %789 = vmatprep.subr.mxu0 0.0
        %790 = vmatpush2.msra.mxu0 0.0
        %791 = vmatprep.subr.mxu0 0.0
        %792 = vmatpush2.msra.mxu0 0.0
        %793 = vmatprep.mubr.f32.mxu0 0.0
        %794 = vmatmul.mubr.f32.gmra.mxu0 %v350
        %v795 = vpop.f32.mrf.mxu0
        %v796 = vadd.f32 %v329, %v795
        %v797 = vpop.f32.mrf.mxu0
        %798 = vdwg.mxu0
        %v800 = vsel %vm425, %v796, 0
        %802 = vmatprep.subr.mxu0 0.0
        %803 = vmatpush1.msra.mxu0 0.0
        %804 = vmatprep.subr.mxu0 0.0
        %805 = vmatpush1.msra.mxu0 0.0
        %806 = vmatprep.subr.mxu0 0.0
        %807 = vmatpush1.msra.mxu0 0.0
        %808 = vmatprep.subr.mxu0 0.0
        %809 = vmatpush1.msra.mxu0 0.0
        %810 = vmatprep.subr.mxu0 0.0
        %811 = vmatpush1.msra.mxu0 0.0
        %812 = vmatprep.subr.mxu0 0.0
        %813 = vmatpush1.msra.mxu0 0.0
        %814 = vmatprep.subr.mxu0 0.0
        %815 = vmatpush1.msra.mxu0 0.0
        %816 = vmatprep.subr.mxu0 0.0
        %817 = vmatpush1.msra.mxu0 0.0
        %818 = vmatprep.subr.mxu0 0.0
        %819 = vmatpush1.msra.mxu0 0.0
        %820 = vmatprep.subr.mxu0 0.0
        %821 = vmatpush1.msra.mxu0 0.0
        %822 = vmatprep.subr.mxu0 0.0
        %823 = vmatpush1.msra.mxu0 0.0
        %824 = vmatprep.subr.mxu0 0.0
        %825 = vmatpush1.msra.mxu0 0.0
        %826 = vmatprep.subr.mxu0 0.0
        %827 = vmatpush1.msra.mxu0 0.0
        %828 = vmatprep.subr.mxu0 0.0
        %829 = vmatpush1.msra.mxu0 0.0
        %830 = vmatprep.subr.mxu0 0.0
        %831 = vmatpush1.msra.mxu0 %v324
        %832 = vmatprep.subr.mxu0 0.0
        %833 = vmatpush1.msra.mxu0 %v323
        %834 = vmatprep.subr.mxu0 0.0
        %835 = vmatpush2.msra.mxu0 0.0
        %836 = vmatprep.subr.mxu0 0.0
        %837 = vmatpush2.msra.mxu0 0.0
        %838 = vmatprep.subr.mxu0 0.0
        %839 = vmatpush2.msra.mxu0 0.0
        %840 = vmatprep.subr.mxu0 0.0
        %841 = vmatpush2.msra.mxu0 0.0
        %842 = vmatprep.subr.mxu0 0.0
        %843 = vmatpush2.msra.mxu0 0.0
        %844 = vmatprep.subr.mxu0 0.0
        %845 = vmatpush2.msra.mxu0 0.0
        %846 = vmatprep.subr.mxu0 0.0
        %847 = vmatpush2.msra.mxu0 0.0
        %848 = vmatprep.subr.mxu0 0.0
        %849 = vmatpush2.msra.mxu0 0.0
        %850 = vmatprep.subr.mxu0 0.0
        %851 = vmatpush2.msra.mxu0 0.0
        %852 = vmatprep.subr.mxu0 0.0
        %853 = vmatpush2.msra.mxu0 0.0
        %854 = vmatprep.subr.mxu0 0.0
        %855 = vmatpush2.msra.mxu0 0.0
        %856 = vmatprep.subr.mxu0 0.0
        %857 = vmatpush2.msra.mxu0 0.0
        %858 = vmatprep.subr.mxu0 0.0
        %859 = vmatpush2.msra.mxu0 0.0
        %860 = vmatprep.subr.mxu0 0.0
        %861 = vmatpush2.msra.mxu0 0.0
        %862 = vmatprep.subr.mxu0 0.0
        %863 = vmatpush2.msra.mxu0 0.0
        %864 = vmatprep.subr.mxu0 0.0
        %865 = vmatpush2.msra.mxu0 0.0
        %866 = vmatprep.mubr.f32.mxu0 0.0
        %867 = vmatmul.mubr.f32.gmra.mxu0 %v800
        %v868 = vpop.f32.mrf.mxu0
        %v869 = vadd.f32 0.0, %v868
        %v870 = vpop.f32.mrf.mxu0
        %871 = vdwg.mxu0
        %v874 = vunpack.c.l.s4 1966171168
        %v875 = vunpack.c.0.s8 %v874
        %v876 = vlaneseq
        %v877 = vshrl.u32 %v876, 7
        %v878 = vsub.s32 %v875, %v877
        %v879 = vrot.slane %v869, %v878
        %v880 = vcombine.high %v879, %v879
        %v882 = vunpack.c.l.s4 1966171168
        %v883 = vunpack.c.0.s8 %v882
        %v884 = vlaneseq
        %v885 = vshrl.u32 %v884, 7
        %v886 = vsub.s32 %v883, %v885
        %v887 = vrot.slane %v879, %v886
        %v889 = vunpack.c.l.s4 1966171168
        %v890 = vunpack.c.0.s8 %v889
        %v891 = vlaneseq
        %v892 = vshrl.u32 %v891, 7
        %v893 = vsub.s32 %v890, %v892
        %v894 = vrot.slane %v880, %v893
        %897 = vst.msk [vmem:[%s318 + $0x2] sm:$0x1] %vm524, %v887
        %898 = vst.msk [vmem:[%s318 + $0x12] sm:$0x1] %vm524, %v894
        %v899 = vld [vmem:[%s274 + $0x3] sm:$0x1]
        %v900 = vld [vmem:[%s274 + $0x13] sm:$0x1]
        %v901 = vld [vmem:[%s274 + $0x23] sm:$0x1]
        %v902 = vld [vmem:[%s274 + $0x33] sm:$0x1]
        %v907 = vrot.slane %v900, 7
        %v908 = vsel %vm340, %v907, %v899
        %v909 = vrot.slane %v901, 6
        %v910 = vsel %vm343, %v909, %v908
        %v911 = vrot.slane %v902, 5
        %v912 = vsel %vm346, %v911, %v910
        %v913 = vsel %vm352, %v912, 0
        %915 = vmatprep.subr.mxu0 0.0
        %916 = vmatpush1.msra.mxu0 0.0
        %917 = vmatprep.subr.mxu0 0.0
        %918 = vmatpush1.msra.mxu0 0.0
        %919 = vmatprep.subr.mxu0 0.0
        %920 = vmatpush1.msra.mxu0 0.0
        %921 = vmatprep.subr.mxu0 0.0
        %922 = vmatpush1.msra.mxu0 0.0
        %923 = vmatprep.subr.mxu0 0.0
        %924 = vmatpush1.msra.mxu0 0.0
        %925 = vmatprep.subr.mxu0 0.0
        %926 = vmatpush1.msra.mxu0 0.0
        %927 = vmatprep.subr.mxu0 0.0
        %928 = vmatpush1.msra.mxu0 0.0
        %929 = vmatprep.subr.mxu0 0.0
        %930 = vmatpush1.msra.mxu0 0.0
        %931 = vmatprep.subr.mxu0 0.0
        %932 = vmatpush1.msra.mxu0 0.0
        %933 = vmatprep.subr.mxu0 0.0
        %934 = vmatpush1.msra.mxu0 0.0
        %935 = vmatprep.subr.mxu0 0.0
        %936 = vmatpush1.msra.mxu0 0.0
        %937 = vmatprep.subr.mxu0 0.0
        %938 = vmatpush1.msra.mxu0 0.0
        %939 = vmatprep.subr.mxu0 0.0
        %940 = vmatpush1.msra.mxu0 0.0
        %941 = vmatprep.subr.mxu0 0.0
        %942 = vmatpush1.msra.mxu0 0.0
        %943 = vmatprep.subr.mxu0 0.0
        %944 = vmatpush1.msra.mxu0 0.0
        %945 = vmatprep.subr.mxu0 0.0
        %946 = vmatpush1.msra.mxu0 %v913
        %947 = vmatprep.subr.mxu0 0.0
        %948 = vmatpush2.msra.mxu0 0.0
        %949 = vmatprep.subr.mxu0 0.0
        %950 = vmatpush2.msra.mxu0 0.0
        %951 = vmatprep.subr.mxu0 0.0
        %952 = vmatpush2.msra.mxu0 0.0
        %953 = vmatprep.subr.mxu0 0.0
        %954 = vmatpush2.msra.mxu0 0.0
        %955 = vmatprep.subr.mxu0 0.0
        %956 = vmatpush2.msra.mxu0 0.0
        %957 = vmatprep.subr.mxu0 0.0
        %958 = vmatpush2.msra.mxu0 0.0
        %959 = vmatprep.subr.mxu0 0.0
        %960 = vmatpush2.msra.mxu0 0.0
        %961 = vmatprep.subr.mxu0 0.0
        %962 = vmatpush2.msra.mxu0 0.0
        %963 = vmatprep.subr.mxu0 0.0
        %964 = vmatpush2.msra.mxu0 0.0
        %965 = vmatprep.subr.mxu0 0.0
        %966 = vmatpush2.msra.mxu0 0.0
        %967 = vmatprep.subr.mxu0 0.0
        %968 = vmatpush2.msra.mxu0 0.0
        %969 = vmatprep.subr.mxu0 0.0
        %970 = vmatpush2.msra.mxu0 0.0
        %971 = vmatprep.subr.mxu0 0.0
        %972 = vmatpush2.msra.mxu0 0.0
        %973 = vmatprep.subr.mxu0 0.0
        %974 = vmatpush2.msra.mxu0 0.0
        %975 = vmatprep.subr.mxu0 0.0
        %976 = vmatpush2.msra.mxu0 0.0
        %977 = vmatprep.subr.mxu0 0.0
        %978 = vmatpush2.msra.mxu0 0.0
        %979 = vmatprep.mubr.f32.mxu0 0.0
        %980 = vmatmul.mubr.f32.gmra.mxu0 %v350
        %v981 = vpop.f32.mrf.mxu0
        %v982 = vadd.f32 %v329, %v981
        %v983 = vpop.f32.mrf.mxu0
        %984 = vdwg.mxu0
        %v986 = vsel %vm425, %v982, 0
        %988 = vmatprep.subr.mxu0 0.0
        %989 = vmatpush1.msra.mxu0 0.0
        %990 = vmatprep.subr.mxu0 0.0
        %991 = vmatpush1.msra.mxu0 0.0
        %992 = vmatprep.subr.mxu0 0.0
        %993 = vmatpush1.msra.mxu0 0.0
        %994 = vmatprep.subr.mxu0 0.0
        %995 = vmatpush1.msra.mxu0 0.0
        %996 = vmatprep.subr.mxu0 0.0
        %997 = vmatpush1.msra.mxu0 0.0
        %998 = vmatprep.subr.mxu0 0.0
        %999 = vmatpush1.msra.mxu0 0.0
        %1000 = vmatprep.subr.mxu0 0.0
        %1001 = vmatpush1.msra.mxu0 0.0
        %1002 = vmatprep.subr.mxu0 0.0
        %1003 = vmatpush1.msra.mxu0 0.0
        %1004 = vmatprep.subr.mxu0 0.0
        %1005 = vmatpush1.msra.mxu0 0.0
        %1006 = vmatprep.subr.mxu0 0.0
        %1007 = vmatpush1.msra.mxu0 0.0
        %1008 = vmatprep.subr.mxu0 0.0
        %1009 = vmatpush1.msra.mxu0 0.0
        %1010 = vmatprep.subr.mxu0 0.0
        %1011 = vmatpush1.msra.mxu0 0.0
        %1012 = vmatprep.subr.mxu0 0.0
        %1013 = vmatpush1.msra.mxu0 0.0
        %1014 = vmatprep.subr.mxu0 0.0
        %1015 = vmatpush1.msra.mxu0 0.0
        %1016 = vmatprep.subr.mxu0 0.0
        %1017 = vmatpush1.msra.mxu0 %v324
        %1018 = vmatprep.subr.mxu0 0.0
        %1019 = vmatpush1.msra.mxu0 %v323
        %1020 = vmatprep.subr.mxu0 0.0
        %1021 = vmatpush2.msra.mxu0 0.0
        %1022 = vmatprep.subr.mxu0 0.0
        %1023 = vmatpush2.msra.mxu0 0.0
        %1024 = vmatprep.subr.mxu0 0.0
        %1025 = vmatpush2.msra.mxu0 0.0
        %1026 = vmatprep.subr.mxu0 0.0
        %1027 = vmatpush2.msra.mxu0 0.0
        %1028 = vmatprep.subr.mxu0 0.0
        %1029 = vmatpush2.msra.mxu0 0.0
        %1030 = vmatprep.subr.mxu0 0.0
        %1031 = vmatpush2.msra.mxu0 0.0
        %1032 = vmatprep.subr.mxu0 0.0
        %1033 = vmatpush2.msra.mxu0 0.0
        %1034 = vmatprep.subr.mxu0 0.0
        %1035 = vmatpush2.msra.mxu0 0.0
        %1036 = vmatprep.subr.mxu0 0.0
        %1037 = vmatpush2.msra.mxu0 0.0
        %1038 = vmatprep.subr.mxu0 0.0
        %1039 = vmatpush2.msra.mxu0 0.0
        %1040 = vmatprep.subr.mxu0 0.0
        %1041 = vmatpush2.msra.mxu0 0.0
        %1042 = vmatprep.subr.mxu0 0.0
        %1043 = vmatpush2.msra.mxu0 0.0
        %1044 = vmatprep.subr.mxu0 0.0
        %1045 = vmatpush2.msra.mxu0 0.0
        %1046 = vmatprep.subr.mxu0 0.0
        %1047 = vmatpush2.msra.mxu0 0.0
        %1048 = vmatprep.subr.mxu0 0.0
        %1049 = vmatpush2.msra.mxu0 0.0
        %1050 = vmatprep.subr.mxu0 0.0
        %1051 = vmatpush2.msra.mxu0 0.0
        %1052 = vmatprep.mubr.f32.mxu0 0.0
        %1053 = vmatmul.mubr.f32.gmra.mxu0 %v986
        %v1054 = vpop.f32.mrf.mxu0
        %v1055 = vadd.f32 0.0, %v1054
        %v1056 = vpop.f32.mrf.mxu0
        %1057 = vdwg.mxu0
        %v1060 = vunpack.c.l.s4 1966171168
        %v1061 = vunpack.c.0.s8 %v1060
        %v1062 = vlaneseq
        %v1063 = vshrl.u32 %v1062, 7
        %v1064 = vsub.s32 %v1061, %v1063
        %v1065 = vrot.slane %v1055, %v1064
        %v1066 = vcombine.high %v1065, %v1065
        %v1068 = vunpack.c.l.s4 1966171168
        %v1069 = vunpack.c.0.s8 %v1068
        %v1070 = vlaneseq
        %v1071 = vshrl.u32 %v1070, 7
        %v1072 = vsub.s32 %v1069, %v1071
        %v1073 = vrot.slane %v1065, %v1072
        %v1075 = vunpack.c.l.s4 1966171168
        %v1076 = vunpack.c.0.s8 %v1075
        %v1077 = vlaneseq
        %v1078 = vshrl.u32 %v1077, 7
        %v1079 = vsub.s32 %v1076, %v1078
        %v1080 = vrot.slane %v1066, %v1079
        %1083 = vst.msk [vmem:[%s318 + $0x3] sm:$0x1] %vm524, %v1073
        %1084 = vst.msk [vmem:[%s318 + $0x13] sm:$0x1] %vm524, %v1080
        %v1085 = vld [vmem:[%s274 + $0x4] sm:$0x1]
        %v1086 = vld [vmem:[%s274 + $0x14] sm:$0x1]
        %v1087 = vld [vmem:[%s274 + $0x24] sm:$0x1]
        %v1088 = vld [vmem:[%s274 + $0x34] sm:$0x1]
        %v1093 = vrot.slane %v1086, 7
        %v1094 = vsel %vm340, %v1093, %v1085
        %v1095 = vrot.slane %v1087, 6
        %v1096 = vsel %vm343, %v1095, %v1094
        %v1097 = vrot.slane %v1088, 5
        %v1098 = vsel %vm346, %v1097, %v1096
        %v1099 = vsel %vm352, %v1098, 0
        %1101 = vmatprep.subr.mxu0 0.0
        %1102 = vmatpush1.msra.mxu0 0.0
        %1103 = vmatprep.subr.mxu0 0.0
        %1104 = vmatpush1.msra.mxu0 0.0
        %1105 = vmatprep.subr.mxu0 0.0
        %1106 = vmatpush1.msra.mxu0 0.0
        %1107 = vmatprep.subr.mxu0 0.0
        %1108 = vmatpush1.msra.mxu0 0.0
        %1109 = vmatprep.subr.mxu0 0.0
        %1110 = vmatpush1.msra.mxu0 0.0
        %1111 = vmatprep.subr.mxu0 0.0
        %1112 = vmatpush1.msra.mxu0 0.0
        %1113 = vmatprep.subr.mxu0 0.0
        %1114 = vmatpush1.msra.mxu0 0.0
        %1115 = vmatprep.subr.mxu0 0.0
        %1116 = vmatpush1.msra.mxu0 0.0
        %1117 = vmatprep.subr.mxu0 0.0
        %1118 = vmatpush1.msra.mxu0 0.0
        %1119 = vmatprep.subr.mxu0 0.0
        %1120 = vmatpush1.msra.mxu0 0.0
        %1121 = vmatprep.subr.mxu0 0.0
        %1122 = vmatpush1.msra.mxu0 0.0
        %1123 = vmatprep.subr.mxu0 0.0
        %1124 = vmatpush1.msra.mxu0 0.0
        %1125 = vmatprep.subr.mxu0 0.0
        %1126 = vmatpush1.msra.mxu0 0.0
        %1127 = vmatprep.subr.mxu0 0.0
        %1128 = vmatpush1.msra.mxu0 0.0
        %1129 = vmatprep.subr.mxu0 0.0
        %1130 = vmatpush1.msra.mxu0 0.0
        %1131 = vmatprep.subr.mxu0 0.0
        %1132 = vmatpush1.msra.mxu0 %v1099
        %1133 = vmatprep.subr.mxu0 0.0
        %1134 = vmatpush2.msra.mxu0 0.0
        %1135 = vmatprep.subr.mxu0 0.0
        %1136 = vmatpush2.msra.mxu0 0.0
        %1137 = vmatprep.subr.mxu0 0.0
        %1138 = vmatpush2.msra.mxu0 0.0
        %1139 = vmatprep.subr.mxu0 0.0
        %1140 = vmatpush2.msra.mxu0 0.0
        %1141 = vmatprep.subr.mxu0 0.0
        %1142 = vmatpush2.msra.mxu0 0.0
        %1143 = vmatprep.subr.mxu0 0.0
        %1144 = vmatpush2.msra.mxu0 0.0
        %1145 = vmatprep.subr.mxu0 0.0
        %1146 = vmatpush2.msra.mxu0 0.0
        %1147 = vmatprep.subr.mxu0 0.0
        %1148 = vmatpush2.msra.mxu0 0.0
        %1149 = vmatprep.subr.mxu0 0.0
        %1150 = vmatpush2.msra.mxu0 0.0
        %1151 = vmatprep.subr.mxu0 0.0
        %1152 = vmatpush2.msra.mxu0 0.0
        %1153 = vmatprep.subr.mxu0 0.0
        %1154 = vmatpush2.msra.mxu0 0.0
        %1155 = vmatprep.subr.mxu0 0.0
        %1156 = vmatpush2.msra.mxu0 0.0
        %1157 = vmatprep.subr.mxu0 0.0
        %1158 = vmatpush2.msra.mxu0 0.0
        %1159 = vmatprep.subr.mxu0 0.0
        %1160 = vmatpush2.msra.mxu0 0.0
        %1161 = vmatprep.subr.mxu0 0.0
        %1162 = vmatpush2.msra.mxu0 0.0
        %1163 = vmatprep.subr.mxu0 0.0
        %1164 = vmatpush2.msra.mxu0 0.0
        %1165 = vmatprep.mubr.f32.mxu0 0.0
        %1166 = vmatmul.mubr.f32.gmra.mxu0 %v350
        %v1167 = vpop.f32.mrf.mxu0
        %v1168 = vadd.f32 %v329, %v1167
        %v1169 = vpop.f32.mrf.mxu0
        %1170 = vdwg.mxu0
        %v1172 = vsel %vm425, %v1168, 0
        %1174 = vmatprep.subr.mxu0 0.0
        %1175 = vmatpush1.msra.mxu0 0.0
        %1176 = vmatprep.subr.mxu0 0.0
        %1177 = vmatpush1.msra.mxu0 0.0
        %1178 = vmatprep.subr.mxu0 0.0
        %1179 = vmatpush1.msra.mxu0 0.0
        %1180 = vmatprep.subr.mxu0 0.0
        %1181 = vmatpush1.msra.mxu0 0.0
        %1182 = vmatprep.subr.mxu0 0.0
        %1183 = vmatpush1.msra.mxu0 0.0
        %1184 = vmatprep.subr.mxu0 0.0
        %1185 = vmatpush1.msra.mxu0 0.0
        %1186 = vmatprep.subr.mxu0 0.0
        %1187 = vmatpush1.msra.mxu0 0.0
        %1188 = vmatprep.subr.mxu0 0.0
        %1189 = vmatpush1.msra.mxu0 0.0
        %1190 = vmatprep.subr.mxu0 0.0
        %1191 = vmatpush1.msra.mxu0 0.0
        %1192 = vmatprep.subr.mxu0 0.0
        %1193 = vmatpush1.msra.mxu0 0.0
        %1194 = vmatprep.subr.mxu0 0.0
        %1195 = vmatpush1.msra.mxu0 0.0
        %1196 = vmatprep.subr.mxu0 0.0
        %1197 = vmatpush1.msra.mxu0 0.0
        %1198 = vmatprep.subr.mxu0 0.0
        %1199 = vmatpush1.msra.mxu0 0.0
        %1200 = vmatprep.subr.mxu0 0.0
        %1201 = vmatpush1.msra.mxu0 0.0
        %1202 = vmatprep.subr.mxu0 0.0
        %1203 = vmatpush1.msra.mxu0 %v324
        %1204 = vmatprep.subr.mxu0 0.0
        %1205 = vmatpush1.msra.mxu0 %v323
        %1206 = vmatprep.subr.mxu0 0.0
        %1207 = vmatpush2.msra.mxu0 0.0
        %1208 = vmatprep.subr.mxu0 0.0
        %1209 = vmatpush2.msra.mxu0 0.0
        %1210 = vmatprep.subr.mxu0 0.0
        %1211 = vmatpush2.msra.mxu0 0.0
        %1212 = vmatprep.subr.mxu0 0.0
        %1213 = vmatpush2.msra.mxu0 0.0
        %1214 = vmatprep.subr.mxu0 0.0
        %1215 = vmatpush2.msra.mxu0 0.0
        %1216 = vmatprep.subr.mxu0 0.0
        %1217 = vmatpush2.msra.mxu0 0.0
        %1218 = vmatprep.subr.mxu0 0.0
        %1219 = vmatpush2.msra.mxu0 0.0
        %1220 = vmatprep.subr.mxu0 0.0
        %1221 = vmatpush2.msra.mxu0 0.0
        %1222 = vmatprep.subr.mxu0 0.0
        %1223 = vmatpush2.msra.mxu0 0.0
        %1224 = vmatprep.subr.mxu0 0.0
        %1225 = vmatpush2.msra.mxu0 0.0
        %1226 = vmatprep.subr.mxu0 0.0
        %1227 = vmatpush2.msra.mxu0 0.0
        %1228 = vmatprep.subr.mxu0 0.0
        %1229 = vmatpush2.msra.mxu0 0.0
        %1230 = vmatprep.subr.mxu0 0.0
        %1231 = vmatpush2.msra.mxu0 0.0
        %1232 = vmatprep.subr.mxu0 0.0
        %1233 = vmatpush2.msra.mxu0 0.0
        %1234 = vmatprep.subr.mxu0 0.0
        %1235 = vmatpush2.msra.mxu0 0.0
        %1236 = vmatprep.subr.mxu0 0.0
        %1237 = vmatpush2.msra.mxu0 0.0
        %1238 = vmatprep.mubr.f32.mxu0 0.0
        %1239 = vmatmul.mubr.f32.gmra.mxu0 %v1172
        %v1240 = vpop.f32.mrf.mxu0
        %v1241 = vadd.f32 0.0, %v1240
        %v1242 = vpop.f32.mrf.mxu0
        %1243 = vdwg.mxu0
        %v1246 = vunpack.c.l.s4 1966171168
        %v1247 = vunpack.c.0.s8 %v1246
        %v1248 = vlaneseq
        %v1249 = vshrl.u32 %v1248, 7
        %v1250 = vsub.s32 %v1247, %v1249
        %v1251 = vrot.slane %v1241, %v1250
        %v1252 = vcombine.high %v1251, %v1251
        %v1254 = vunpack.c.l.s4 1966171168
        %v1255 = vunpack.c.0.s8 %v1254
        %v1256 = vlaneseq
        %v1257 = vshrl.u32 %v1256, 7
        %v1258 = vsub.s32 %v1255, %v1257
        %v1259 = vrot.slane %v1251, %v1258
        %v1261 = vunpack.c.l.s4 1966171168
        %v1262 = vunpack.c.0.s8 %v1261
        %v1263 = vlaneseq
        %v1264 = vshrl.u32 %v1263, 7
        %v1265 = vsub.s32 %v1262, %v1264
        %v1266 = vrot.slane %v1252, %v1265
        %1269 = vst.msk [vmem:[%s318 + $0x4] sm:$0x1] %vm524, %v1259
        %1270 = vst.msk [vmem:[%s318 + $0x14] sm:$0x1] %vm524, %v1266
        %v1271 = vld [vmem:[%s274 + $0x5] sm:$0x1]
        %v1272 = vld [vmem:[%s274 + $0x15] sm:$0x1]
        %v1273 = vld [vmem:[%s274 + $0x25] sm:$0x1]
        %v1274 = vld [vmem:[%s274 + $0x35] sm:$0x1]
        %v1279 = vrot.slane %v1272, 7
        %v1280 = vsel %vm340, %v1279, %v1271
        %v1281 = vrot.slane %v1273, 6
        %v1282 = vsel %vm343, %v1281, %v1280
        %v1283 = vrot.slane %v1274, 5
        %v1284 = vsel %vm346, %v1283, %v1282
        %v1285 = vsel %vm352, %v1284, 0
        %1287 = vmatprep.subr.mxu0 0.0
        %1288 = vmatpush1.msra.mxu0 0.0
        %1289 = vmatprep.subr.mxu0 0.0
        %1290 = vmatpush1.msra.mxu0 0.0
        %1291 = vmatprep.subr.mxu0 0.0
        %1292 = vmatpush1.msra.mxu0 0.0
        %1293 = vmatprep.subr.mxu0 0.0
        %1294 = vmatpush1.msra.mxu0 0.0
        %1295 = vmatprep.subr.mxu0 0.0
        %1296 = vmatpush1.msra.mxu0 0.0
        %1297 = vmatprep.subr.mxu0 0.0
        %1298 = vmatpush1.msra.mxu0 0.0
        %1299 = vmatprep.subr.mxu0 0.0
        %1300 = vmatpush1.msra.mxu0 0.0
        %1301 = vmatprep.subr.mxu0 0.0
        %1302 = vmatpush1.msra.mxu0 0.0
        %1303 = vmatprep.subr.mxu0 0.0
        %1304 = vmatpush1.msra.mxu0 0.0
        %1305 = vmatprep.subr.mxu0 0.0
        %1306 = vmatpush1.msra.mxu0 0.0
        %1307 = vmatprep.subr.mxu0 0.0
        %1308 = vmatpush1.msra.mxu0 0.0
        %1309 = vmatprep.subr.mxu0 0.0
        %1310 = vmatpush1.msra.mxu0 0.0
        %1311 = vmatprep.subr.mxu0 0.0
        %1312 = vmatpush1.msra.mxu0 0.0
        %1313 = vmatprep.subr.mxu0 0.0
        %1314 = vmatpush1.msra.mxu0 0.0
        %1315 = vmatprep.subr.mxu0 0.0
        %1316 = vmatpush1.msra.mxu0 0.0
        %1317 = vmatprep.subr.mxu0 0.0
        %1318 = vmatpush1.msra.mxu0 %v1285
        %1319 = vmatprep.subr.mxu0 0.0
        %1320 = vmatpush2.msra.mxu0 0.0
        %1321 = vmatprep.subr.mxu0 0.0
        %1322 = vmatpush2.msra.mxu0 0.0
        %1323 = vmatprep.subr.mxu0 0.0
        %1324 = vmatpush2.msra.mxu0 0.0
        %1325 = vmatprep.subr.mxu0 0.0
        %1326 = vmatpush2.msra.mxu0 0.0
        %1327 = vmatprep.subr.mxu0 0.0
        %1328 = vmatpush2.msra.mxu0 0.0
        %1329 = vmatprep.subr.mxu0 0.0
        %1330 = vmatpush2.msra.mxu0 0.0
        %1331 = vmatprep.subr.mxu0 0.0
        %1332 = vmatpush2.msra.mxu0 0.0
        %1333 = vmatprep.subr.mxu0 0.0
        %1334 = vmatpush2.msra.mxu0 0.0
        %1335 = vmatprep.subr.mxu0 0.0
        %1336 = vmatpush2.msra.mxu0 0.0
        %1337 = vmatprep.subr.mxu0 0.0
        %1338 = vmatpush2.msra.mxu0 0.0
        %1339 = vmatprep.subr.mxu0 0.0
        %1340 = vmatpush2.msra.mxu0 0.0
        %1341 = vmatprep.subr.mxu0 0.0
        %1342 = vmatpush2.msra.mxu0 0.0
        %1343 = vmatprep.subr.mxu0 0.0
        %1344 = vmatpush2.msra.mxu0 0.0
        %1345 = vmatprep.subr.mxu0 0.0
        %1346 = vmatpush2.msra.mxu0 0.0
        %1347 = vmatprep.subr.mxu0 0.0
        %1348 = vmatpush2.msra.mxu0 0.0
        %1349 = vmatprep.subr.mxu0 0.0
        %1350 = vmatpush2.msra.mxu0 0.0
        %1351 = vmatprep.mubr.f32.mxu0 0.0
        %1352 = vmatmul.mubr.f32.gmra.mxu0 %v350
        %v1353 = vpop.f32.mrf.mxu0
        %v1354 = vadd.f32 %v329, %v1353
        %v1355 = vpop.f32.mrf.mxu0
        %1356 = vdwg.mxu0
        %v1358 = vsel %vm425, %v1354, 0
        %1360 = vmatprep.subr.mxu0 0.0
        %1361 = vmatpush1.msra.mxu0 0.0
        %1362 = vmatprep.subr.mxu0 0.0
        %1363 = vmatpush1.msra.mxu0 0.0
        %1364 = vmatprep.subr.mxu0 0.0
        %1365 = vmatpush1.msra.mxu0 0.0
        %1366 = vmatprep.subr.mxu0 0.0
        %1367 = vmatpush1.msra.mxu0 0.0
        %1368 = vmatprep.subr.mxu0 0.0
        %1369 = vmatpush1.msra.mxu0 0.0
        %1370 = vmatprep.subr.mxu0 0.0
        %1371 = vmatpush1.msra.mxu0 0.0
        %1372 = vmatprep.subr.mxu0 0.0
        %1373 = vmatpush1.msra.mxu0 0.0
        %1374 = vmatprep.subr.mxu0 0.0
        %1375 = vmatpush1.msra.mxu0 0.0
        %1376 = vmatprep.subr.mxu0 0.0
        %1377 = vmatpush1.msra.mxu0 0.0
        %1378 = vmatprep.subr.mxu0 0.0
        %1379 = vmatpush1.msra.mxu0 0.0
        %1380 = vmatprep.subr.mxu0 0.0
        %1381 = vmatpush1.msra.mxu0 0.0
        %1382 = vmatprep.subr.mxu0 0.0
        %1383 = vmatpush1.msra.mxu0 0.0
        %1384 = vmatprep.subr.mxu0 0.0
        %1385 = vmatpush1.msra.mxu0 0.0
        %1386 = vmatprep.subr.mxu0 0.0
        %1387 = vmatpush1.msra.mxu0 0.0
        %1388 = vmatprep.subr.mxu0 0.0
        %1389 = vmatpush1.msra.mxu0 %v324
        %1390 = vmatprep.subr.mxu0 0.0
        %1391 = vmatpush1.msra.mxu0 %v323
        %1392 = vmatprep.subr.mxu0 0.0
        %1393 = vmatpush2.msra.mxu0 0.0
        %1394 = vmatprep.subr.mxu0 0.0
        %1395 = vmatpush2.msra.mxu0 0.0
        %1396 = vmatprep.subr.mxu0 0.0
        %1397 = vmatpush2.msra.mxu0 0.0
        %1398 = vmatprep.subr.mxu0 0.0
        %1399 = vmatpush2.msra.mxu0 0.0
        %1400 = vmatprep.subr.mxu0 0.0
        %1401 = vmatpush2.msra.mxu0 0.0
        %1402 = vmatprep.subr.mxu0 0.0
        %1403 = vmatpush2.msra.mxu0 0.0
        %1404 = vmatprep.subr.mxu0 0.0
        %1405 = vmatpush2.msra.mxu0 0.0
        %1406 = vmatprep.subr.mxu0 0.0
        %1407 = vmatpush2.msra.mxu0 0.0
        %1408 = vmatprep.subr.mxu0 0.0
        %1409 = vmatpush2.msra.mxu0 0.0
        %1410 = vmatprep.subr.mxu0 0.0
        %1411 = vmatpush2.msra.mxu0 0.0
        %1412 = vmatprep.subr.mxu0 0.0
        %1413 = vmatpush2.msra.mxu0 0.0
        %1414 = vmatprep.subr.mxu0 0.0
        %1415 = vmatpush2.msra.mxu0 0.0
        %1416 = vmatprep.subr.mxu0 0.0
        %1417 = vmatpush2.msra.mxu0 0.0
        %1418 = vmatprep.subr.mxu0 0.0
        %1419 = vmatpush2.msra.mxu0 0.0
        %1420 = vmatprep.subr.mxu0 0.0
        %1421 = vmatpush2.msra.mxu0 0.0
        %1422 = vmatprep.subr.mxu0 0.0
        %1423 = vmatpush2.msra.mxu0 0.0
        %1424 = vmatprep.mubr.f32.mxu0 0.0
        %1425 = vmatmul.mubr.f32.gmra.mxu0 %v1358
        %v1426 = vpop.f32.mrf.mxu0
        %v1427 = vadd.f32 0.0, %v1426
        %v1428 = vpop.f32.mrf.mxu0
        %1429 = vdwg.mxu0
        %v1432 = vunpack.c.l.s4 1966171168
        %v1433 = vunpack.c.0.s8 %v1432
        %v1434 = vlaneseq
        %v1435 = vshrl.u32 %v1434, 7
        %v1436 = vsub.s32 %v1433, %v1435
        %v1437 = vrot.slane %v1427, %v1436
        %v1438 = vcombine.high %v1437, %v1437
        %v1440 = vunpack.c.l.s4 1966171168
        %v1441 = vunpack.c.0.s8 %v1440
        %v1442 = vlaneseq
        %v1443 = vshrl.u32 %v1442, 7
        %v1444 = vsub.s32 %v1441, %v1443
        %v1445 = vrot.slane %v1437, %v1444
        %v1447 = vunpack.c.l.s4 1966171168
        %v1448 = vunpack.c.0.s8 %v1447
        %v1449 = vlaneseq
        %v1450 = vshrl.u32 %v1449, 7
        %v1451 = vsub.s32 %v1448, %v1450
        %v1452 = vrot.slane %v1438, %v1451
        %1455 = vst.msk [vmem:[%s318 + $0x5] sm:$0x1] %vm524, %v1445
        %1456 = vst.msk [vmem:[%s318 + $0x15] sm:$0x1] %vm524, %v1452
        %v1457 = vld [vmem:[%s274 + $0x6] sm:$0x1]
        %v1458 = vld [vmem:[%s274 + $0x16] sm:$0x1]
        %v1459 = vld [vmem:[%s274 + $0x26] sm:$0x1]
        %v1460 = vld [vmem:[%s274 + $0x36] sm:$0x1]
        %v1465 = vrot.slane %v1458, 7
        %v1466 = vsel %vm340, %v1465, %v1457
        %v1467 = vrot.slane %v1459, 6
        %v1468 = vsel %vm343, %v1467, %v1466
        %v1469 = vrot.slane %v1460, 5
        %v1470 = vsel %vm346, %v1469, %v1468
        %v1471 = vsel %vm352, %v1470, 0
        %1473 = vmatprep.subr.mxu0 0.0
        %1474 = vmatpush1.msra.mxu0 0.0
        %1475 = vmatprep.subr.mxu0 0.0
        %1476 = vmatpush1.msra.mxu0 0.0
        %1477 = vmatprep.subr.mxu0 0.0
        %1478 = vmatpush1.msra.mxu0 0.0
        %1479 = vmatprep.subr.mxu0 0.0
        %1480 = vmatpush1.msra.mxu0 0.0
        %1481 = vmatprep.subr.mxu0 0.0
        %1482 = vmatpush1.msra.mxu0 0.0
        %1483 = vmatprep.subr.mxu0 0.0
        %1484 = vmatpush1.msra.mxu0 0.0
        %1485 = vmatprep.subr.mxu0 0.0
        %1486 = vmatpush1.msra.mxu0 0.0
        %1487 = vmatprep.subr.mxu0 0.0
        %1488 = vmatpush1.msra.mxu0 0.0
        %1489 = vmatprep.subr.mxu0 0.0
        %1490 = vmatpush1.msra.mxu0 0.0
        %1491 = vmatprep.subr.mxu0 0.0
        %1492 = vmatpush1.msra.mxu0 0.0
        %1493 = vmatprep.subr.mxu0 0.0
        %1494 = vmatpush1.msra.mxu0 0.0
        %1495 = vmatprep.subr.mxu0 0.0
        %1496 = vmatpush1.msra.mxu0 0.0
        %1497 = vmatprep.subr.mxu0 0.0
        %1498 = vmatpush1.msra.mxu0 0.0
        %1499 = vmatprep.subr.mxu0 0.0
        %1500 = vmatpush1.msra.mxu0 0.0
        %1501 = vmatprep.subr.mxu0 0.0
        %1502 = vmatpush1.msra.mxu0 0.0
        %1503 = vmatprep.subr.mxu0 0.0
        %1504 = vmatpush1.msra.mxu0 %v1471
        %1505 = vmatprep.subr.mxu0 0.0
        %1506 = vmatpush2.msra.mxu0 0.0
        %1507 = vmatprep.subr.mxu0 0.0
        %1508 = vmatpush2.msra.mxu0 0.0
        %1509 = vmatprep.subr.mxu0 0.0
        %1510 = vmatpush2.msra.mxu0 0.0
        %1511 = vmatprep.subr.mxu0 0.0
        %1512 = vmatpush2.msra.mxu0 0.0
        %1513 = vmatprep.subr.mxu0 0.0
        %1514 = vmatpush2.msra.mxu0 0.0
        %1515 = vmatprep.subr.mxu0 0.0
        %1516 = vmatpush2.msra.mxu0 0.0
        %1517 = vmatprep.subr.mxu0 0.0
        %1518 = vmatpush2.msra.mxu0 0.0
        %1519 = vmatprep.subr.mxu0 0.0
        %1520 = vmatpush2.msra.mxu0 0.0
        %1521 = vmatprep.subr.mxu0 0.0
        %1522 = vmatpush2.msra.mxu0 0.0
        %1523 = vmatprep.subr.mxu0 0.0
        %1524 = vmatpush2.msra.mxu0 0.0
        %1525 = vmatprep.subr.mxu0 0.0
        %1526 = vmatpush2.msra.mxu0 0.0
        %1527 = vmatprep.subr.mxu0 0.0
        %1528 = vmatpush2.msra.mxu0 0.0
        %1529 = vmatprep.subr.mxu0 0.0
        %1530 = vmatpush2.msra.mxu0 0.0
        %1531 = vmatprep.subr.mxu0 0.0
        %1532 = vmatpush2.msra.mxu0 0.0
        %1533 = vmatprep.subr.mxu0 0.0
        %1534 = vmatpush2.msra.mxu0 0.0
        %1535 = vmatprep.subr.mxu0 0.0
        %1536 = vmatpush2.msra.mxu0 0.0
        %1537 = vmatprep.mubr.f32.mxu0 0.0
        %1538 = vmatmul.mubr.f32.gmra.mxu0 %v350
        %v1539 = vpop.f32.mrf.mxu0
        %v1540 = vadd.f32 %v329, %v1539
        %v1541 = vpop.f32.mrf.mxu0
        %1542 = vdwg.mxu0
        %v1544 = vsel %vm425, %v1540, 0
        %1546 = vmatprep.subr.mxu0 0.0
        %1547 = vmatpush1.msra.mxu0 0.0
        %1548 = vmatprep.subr.mxu0 0.0
        %1549 = vmatpush1.msra.mxu0 0.0
        %1550 = vmatprep.subr.mxu0 0.0
        %1551 = vmatpush1.msra.mxu0 0.0
        %1552 = vmatprep.subr.mxu0 0.0
        %1553 = vmatpush1.msra.mxu0 0.0
        %1554 = vmatprep.subr.mxu0 0.0
        %1555 = vmatpush1.msra.mxu0 0.0
        %1556 = vmatprep.subr.mxu0 0.0
        %1557 = vmatpush1.msra.mxu0 0.0
        %1558 = vmatprep.subr.mxu0 0.0
        %1559 = vmatpush1.msra.mxu0 0.0
        %1560 = vmatprep.subr.mxu0 0.0
        %1561 = vmatpush1.msra.mxu0 0.0
        %1562 = vmatprep.subr.mxu0 0.0
        %1563 = vmatpush1.msra.mxu0 0.0
        %1564 = vmatprep.subr.mxu0 0.0
        %1565 = vmatpush1.msra.mxu0 0.0
        %1566 = vmatprep.subr.mxu0 0.0
        %1567 = vmatpush1.msra.mxu0 0.0
        %1568 = vmatprep.subr.mxu0 0.0
        %1569 = vmatpush1.msra.mxu0 0.0
        %1570 = vmatprep.subr.mxu0 0.0
        %1571 = vmatpush1.msra.mxu0 0.0
        %1572 = vmatprep.subr.mxu0 0.0
        %1573 = vmatpush1.msra.mxu0 0.0
        %1574 = vmatprep.subr.mxu0 0.0
        %1575 = vmatpush1.msra.mxu0 %v324
        %1576 = vmatprep.subr.mxu0 0.0
        %1577 = vmatpush1.msra.mxu0 %v323
        %1578 = vmatprep.subr.mxu0 0.0
        %1579 = vmatpush2.msra.mxu0 0.0
        %1580 = vmatprep.subr.mxu0 0.0
        %1581 = vmatpush2.msra.mxu0 0.0
        %1582 = vmatprep.subr.mxu0 0.0
        %1583 = vmatpush2.msra.mxu0 0.0
        %1584 = vmatprep.subr.mxu0 0.0
        %1585 = vmatpush2.msra.mxu0 0.0
        %1586 = vmatprep.subr.mxu0 0.0
        %1587 = vmatpush2.msra.mxu0 0.0
        %1588 = vmatprep.subr.mxu0 0.0
        %1589 = vmatpush2.msra.mxu0 0.0
        %1590 = vmatprep.subr.mxu0 0.0
        %1591 = vmatpush2.msra.mxu0 0.0
        %1592 = vmatprep.subr.mxu0 0.0
        %1593 = vmatpush2.msra.mxu0 0.0
        %1594 = vmatprep.subr.mxu0 0.0
        %1595 = vmatpush2.msra.mxu0 0.0
        %1596 = vmatprep.subr.mxu0 0.0
        %1597 = vmatpush2.msra.mxu0 0.0
        %1598 = vmatprep.subr.mxu0 0.0
        %1599 = vmatpush2.msra.mxu0 0.0
        %1600 = vmatprep.subr.mxu0 0.0
        %1601 = vmatpush2.msra.mxu0 0.0
        %1602 = vmatprep.subr.mxu0 0.0
        %1603 = vmatpush2.msra.mxu0 0.0
        %1604 = vmatprep.subr.mxu0 0.0
        %1605 = vmatpush2.msra.mxu0 0.0
        %1606 = vmatprep.subr.mxu0 0.0
        %1607 = vmatpush2.msra.mxu0 0.0
        %1608 = vmatprep.subr.mxu0 0.0
        %1609 = vmatpush2.msra.mxu0 0.0
        %1610 = vmatprep.mubr.f32.mxu0 0.0
        %1611 = vmatmul.mubr.f32.gmra.mxu0 %v1544
        %v1612 = vpop.f32.mrf.mxu0
        %v1613 = vadd.f32 0.0, %v1612
        %v1614 = vpop.f32.mrf.mxu0
        %1615 = vdwg.mxu0
        %v1618 = vunpack.c.l.s4 1966171168
        %v1619 = vunpack.c.0.s8 %v1618
        %v1620 = vlaneseq
        %v1621 = vshrl.u32 %v1620, 7
        %v1622 = vsub.s32 %v1619, %v1621
        %v1623 = vrot.slane %v1613, %v1622
        %v1624 = vcombine.high %v1623, %v1623
        %v1626 = vunpack.c.l.s4 1966171168
        %v1627 = vunpack.c.0.s8 %v1626
        %v1628 = vlaneseq
        %v1629 = vshrl.u32 %v1628, 7
        %v1630 = vsub.s32 %v1627, %v1629
        %v1631 = vrot.slane %v1623, %v1630
        %v1633 = vunpack.c.l.s4 1966171168
        %v1634 = vunpack.c.0.s8 %v1633
        %v1635 = vlaneseq
        %v1636 = vshrl.u32 %v1635, 7
        %v1637 = vsub.s32 %v1634, %v1636
        %v1638 = vrot.slane %v1624, %v1637
        %1641 = vst.msk [vmem:[%s318 + $0x6] sm:$0x1] %vm524, %v1631
        %1642 = vst.msk [vmem:[%s318 + $0x16] sm:$0x1] %vm524, %v1638
        %v1643 = vld [vmem:[%s274 + $0x7] sm:$0x1]
        %v1644 = vld [vmem:[%s274 + $0x17] sm:$0x1]
        %v1645 = vld [vmem:[%s274 + $0x27] sm:$0x1]
        %v1646 = vld [vmem:[%s274 + $0x37] sm:$0x1]
        %v1651 = vrot.slane %v1644, 7
        %v1652 = vsel %vm340, %v1651, %v1643
        %v1653 = vrot.slane %v1645, 6
        %v1654 = vsel %vm343, %v1653, %v1652
        %v1655 = vrot.slane %v1646, 5
        %v1656 = vsel %vm346, %v1655, %v1654
        %v1657 = vsel %vm352, %v1656, 0
        %1659 = vmatprep.subr.mxu0 0.0
        %1660 = vmatpush1.msra.mxu0 0.0
        %1661 = vmatprep.subr.mxu0 0.0
        %1662 = vmatpush1.msra.mxu0 0.0
        %1663 = vmatprep.subr.mxu0 0.0
        %1664 = vmatpush1.msra.mxu0 0.0
        %1665 = vmatprep.subr.mxu0 0.0
        %1666 = vmatpush1.msra.mxu0 0.0
        %1667 = vmatprep.subr.mxu0 0.0
        %1668 = vmatpush1.msra.mxu0 0.0
        %1669 = vmatprep.subr.mxu0 0.0
        %1670 = vmatpush1.msra.mxu0 0.0
        %1671 = vmatprep.subr.mxu0 0.0
        %1672 = vmatpush1.msra.mxu0 0.0
        %1673 = vmatprep.subr.mxu0 0.0
        %1674 = vmatpush1.msra.mxu0 0.0
        %1675 = vmatprep.subr.mxu0 0.0
        %1676 = vmatpush1.msra.mxu0 0.0
        %1677 = vmatprep.subr.mxu0 0.0
        %1678 = vmatpush1.msra.mxu0 0.0
        %1679 = vmatprep.subr.mxu0 0.0
        %1680 = vmatpush1.msra.mxu0 0.0
        %1681 = vmatprep.subr.mxu0 0.0
        %1682 = vmatpush1.msra.mxu0 0.0
        %1683 = vmatprep.subr.mxu0 0.0
        %1684 = vmatpush1.msra.mxu0 0.0
        %1685 = vmatprep.subr.mxu0 0.0
        %1686 = vmatpush1.msra.mxu0 0.0
        %1687 = vmatprep.subr.mxu0 0.0
        %1688 = vmatpush1.msra.mxu0 0.0
        %1689 = vmatprep.subr.mxu0 0.0
        %1690 = vmatpush1.msra.mxu0 %v1657
        %1691 = vmatprep.subr.mxu0 0.0
        %1692 = vmatpush2.msra.mxu0 0.0
        %1693 = vmatprep.subr.mxu0 0.0
        %1694 = vmatpush2.msra.mxu0 0.0
        %1695 = vmatprep.subr.mxu0 0.0
        %1696 = vmatpush2.msra.mxu0 0.0
        %1697 = vmatprep.subr.mxu0 0.0
        %1698 = vmatpush2.msra.mxu0 0.0
        %1699 = vmatprep.subr.mxu0 0.0
        %1700 = vmatpush2.msra.mxu0 0.0
        %1701 = vmatprep.subr.mxu0 0.0
        %1702 = vmatpush2.msra.mxu0 0.0
        %1703 = vmatprep.subr.mxu0 0.0
        %1704 = vmatpush2.msra.mxu0 0.0
        %1705 = vmatprep.subr.mxu0 0.0
        %1706 = vmatpush2.msra.mxu0 0.0
        %1707 = vmatprep.subr.mxu0 0.0
        %1708 = vmatpush2.msra.mxu0 0.0
        %1709 = vmatprep.subr.mxu0 0.0
        %1710 = vmatpush2.msra.mxu0 0.0
        %1711 = vmatprep.subr.mxu0 0.0
        %1712 = vmatpush2.msra.mxu0 0.0
        %1713 = vmatprep.subr.mxu0 0.0
        %1714 = vmatpush2.msra.mxu0 0.0
        %1715 = vmatprep.subr.mxu0 0.0
        %1716 = vmatpush2.msra.mxu0 0.0
        %1717 = vmatprep.subr.mxu0 0.0
        %1718 = vmatpush2.msra.mxu0 0.0
        %1719 = vmatprep.subr.mxu0 0.0
        %1720 = vmatpush2.msra.mxu0 0.0
        %1721 = vmatprep.subr.mxu0 0.0
        %1722 = vmatpush2.msra.mxu0 0.0
        %1723 = vmatprep.mubr.f32.mxu0 0.0
        %1724 = vmatmul.mubr.f32.gmra.mxu0 %v350
        %v1725 = vpop.f32.mrf.mxu0
        %v1726 = vadd.f32 %v329, %v1725
        %v1727 = vpop.f32.mrf.mxu0
        %1728 = vdwg.mxu0
        %v1730 = vsel %vm425, %v1726, 0
        %1732 = vmatprep.subr.mxu0 0.0
        %1733 = vmatpush1.msra.mxu0 0.0
        %1734 = vmatprep.subr.mxu0 0.0
        %1735 = vmatpush1.msra.mxu0 0.0
        %1736 = vmatprep.subr.mxu0 0.0
        %1737 = vmatpush1.msra.mxu0 0.0
        %1738 = vmatprep.subr.mxu0 0.0
        %1739 = vmatpush1.msra.mxu0 0.0
        %1740 = vmatprep.subr.mxu0 0.0
        %1741 = vmatpush1.msra.mxu0 0.0
        %1742 = vmatprep.subr.mxu0 0.0
        %1743 = vmatpush1.msra.mxu0 0.0
        %1744 = vmatprep.subr.mxu0 0.0
        %1745 = vmatpush1.msra.mxu0 0.0
        %1746 = vmatprep.subr.mxu0 0.0
        %1747 = vmatpush1.msra.mxu0 0.0
        %1748 = vmatprep.subr.mxu0 0.0
        %1749 = vmatpush1.msra.mxu0 0.0
        %1750 = vmatprep.subr.mxu0 0.0
        %1751 = vmatpush1.msra.mxu0 0.0
        %1752 = vmatprep.subr.mxu0 0.0
        %1753 = vmatpush1.msra.mxu0 0.0
        %1754 = vmatprep.subr.mxu0 0.0
        %1755 = vmatpush1.msra.mxu0 0.0
        %1756 = vmatprep.subr.mxu0 0.0
        %1757 = vmatpush1.msra.mxu0 0.0
        %1758 = vmatprep.subr.mxu0 0.0
        %1759 = vmatpush1.msra.mxu0 0.0
        %1760 = vmatprep.subr.mxu0 0.0
        %1761 = vmatpush1.msra.mxu0 %v324
        %1762 = vmatprep.subr.mxu0 0.0
        %1763 = vmatpush1.msra.mxu0 %v323
        %1764 = vmatprep.subr.mxu0 0.0
        %1765 = vmatpush2.msra.mxu0 0.0
        %1766 = vmatprep.subr.mxu0 0.0
        %1767 = vmatpush2.msra.mxu0 0.0
        %1768 = vmatprep.subr.mxu0 0.0
        %1769 = vmatpush2.msra.mxu0 0.0
        %1770 = vmatprep.subr.mxu0 0.0
        %1771 = vmatpush2.msra.mxu0 0.0
        %1772 = vmatprep.subr.mxu0 0.0
        %1773 = vmatpush2.msra.mxu0 0.0
        %1774 = vmatprep.subr.mxu0 0.0
        %1775 = vmatpush2.msra.mxu0 0.0
        %1776 = vmatprep.subr.mxu0 0.0
        %1777 = vmatpush2.msra.mxu0 0.0
        %1778 = vmatprep.subr.mxu0 0.0
        %1779 = vmatpush2.msra.mxu0 0.0
        %1780 = vmatprep.subr.mxu0 0.0
        %1781 = vmatpush2.msra.mxu0 0.0
        %1782 = vmatprep.subr.mxu0 0.0
        %1783 = vmatpush2.msra.mxu0 0.0
        %1784 = vmatprep.subr.mxu0 0.0
        %1785 = vmatpush2.msra.mxu0 0.0
        %1786 = vmatprep.subr.mxu0 0.0
        %1787 = vmatpush2.msra.mxu0 0.0
        %1788 = vmatprep.subr.mxu0 0.0
        %1789 = vmatpush2.msra.mxu0 0.0
        %1790 = vmatprep.subr.mxu0 0.0
        %1791 = vmatpush2.msra.mxu0 0.0
        %1792 = vmatprep.subr.mxu0 0.0
        %1793 = vmatpush2.msra.mxu0 0.0
        %1794 = vmatprep.subr.mxu0 0.0
        %1795 = vmatpush2.msra.mxu0 0.0
        %1796 = vmatprep.mubr.f32.mxu0 0.0
        %1797 = vmatmul.mubr.f32.gmra.mxu0 %v1730
        %v1798 = vpop.f32.mrf.mxu0
        %v1799 = vadd.f32 0.0, %v1798
        %v1800 = vpop.f32.mrf.mxu0
        %1801 = vdwg.mxu0
        %v1804 = vunpack.c.l.s4 1966171168
        %v1805 = vunpack.c.0.s8 %v1804
        %v1806 = vlaneseq
        %v1807 = vshrl.u32 %v1806, 7
        %v1808 = vsub.s32 %v1805, %v1807
        %v1809 = vrot.slane %v1799, %v1808
        %v1810 = vcombine.high %v1809, %v1809
        %v1812 = vunpack.c.l.s4 1966171168
        %v1813 = vunpack.c.0.s8 %v1812
        %v1814 = vlaneseq
        %v1815 = vshrl.u32 %v1814, 7
        %v1816 = vsub.s32 %v1813, %v1815
        %v1817 = vrot.slane %v1809, %v1816
        %v1819 = vunpack.c.l.s4 1966171168
        %v1820 = vunpack.c.0.s8 %v1819
        %v1821 = vlaneseq
        %v1822 = vshrl.u32 %v1821, 7
        %v1823 = vsub.s32 %v1820, %v1822
        %v1824 = vrot.slane %v1810, %v1823
        %1827 = vst.msk [vmem:[%s318 + $0x7] sm:$0x1] %vm524, %v1817
        %1828 = vst.msk [vmem:[%s318 + $0x17] sm:$0x1] %vm524, %v1824
        %v1829 = vld [vmem:[%s274 + $0x8] sm:$0x1]
        %v1830 = vld [vmem:[%s274 + $0x18] sm:$0x1]
        %v1831 = vld [vmem:[%s274 + $0x28] sm:$0x1]
        %v1832 = vld [vmem:[%s274 + $0x38] sm:$0x1]
        %v1837 = vrot.slane %v1830, 7
        %v1838 = vsel %vm340, %v1837, %v1829
        %v1839 = vrot.slane %v1831, 6
        %v1840 = vsel %vm343, %v1839, %v1838
        %v1841 = vrot.slane %v1832, 5
        %v1842 = vsel %vm346, %v1841, %v1840
        %v1843 = vsel %vm352, %v1842, 0
        %1845 = vmatprep.subr.mxu0 0.0
        %1846 = vmatpush1.msra.mxu0 0.0
        %1847 = vmatprep.subr.mxu0 0.0
        %1848 = vmatpush1.msra.mxu0 0.0
        %1849 = vmatprep.subr.mxu0 0.0
        %1850 = vmatpush1.msra.mxu0 0.0
        %1851 = vmatprep.subr.mxu0 0.0
        %1852 = vmatpush1.msra.mxu0 0.0
        %1853 = vmatprep.subr.mxu0 0.0
        %1854 = vmatpush1.msra.mxu0 0.0
        %1855 = vmatprep.subr.mxu0 0.0
        %1856 = vmatpush1.msra.mxu0 0.0
        %1857 = vmatprep.subr.mxu0 0.0
        %1858 = vmatpush1.msra.mxu0 0.0
        %1859 = vmatprep.subr.mxu0 0.0
        %1860 = vmatpush1.msra.mxu0 0.0
        %1861 = vmatprep.subr.mxu0 0.0
        %1862 = vmatpush1.msra.mxu0 0.0
        %1863 = vmatprep.subr.mxu0 0.0
        %1864 = vmatpush1.msra.mxu0 0.0
        %1865 = vmatprep.subr.mxu0 0.0
        %1866 = vmatpush1.msra.mxu0 0.0
        %1867 = vmatprep.subr.mxu0 0.0
        %1868 = vmatpush1.msra.mxu0 0.0
        %1869 = vmatprep.subr.mxu0 0.0
        %1870 = vmatpush1.msra.mxu0 0.0
        %1871 = vmatprep.subr.mxu0 0.0
        %1872 = vmatpush1.msra.mxu0 0.0
        %1873 = vmatprep.subr.mxu0 0.0
        %1874 = vmatpush1.msra.mxu0 0.0
        %1875 = vmatprep.subr.mxu0 0.0
        %1876 = vmatpush1.msra.mxu0 %v1843
        %1877 = vmatprep.subr.mxu0 0.0
        %1878 = vmatpush2.msra.mxu0 0.0
        %1879 = vmatprep.subr.mxu0 0.0
        %1880 = vmatpush2.msra.mxu0 0.0
        %1881 = vmatprep.subr.mxu0 0.0
        %1882 = vmatpush2.msra.mxu0 0.0
        %1883 = vmatprep.subr.mxu0 0.0
        %1884 = vmatpush2.msra.mxu0 0.0
        %1885 = vmatprep.subr.mxu0 0.0
        %1886 = vmatpush2.msra.mxu0 0.0
        %1887 = vmatprep.subr.mxu0 0.0
        %1888 = vmatpush2.msra.mxu0 0.0
        %1889 = vmatprep.subr.mxu0 0.0
        %1890 = vmatpush2.msra.mxu0 0.0
        %1891 = vmatprep.subr.mxu0 0.0
        %1892 = vmatpush2.msra.mxu0 0.0
        %1893 = vmatprep.subr.mxu0 0.0
        %1894 = vmatpush2.msra.mxu0 0.0
        %1895 = vmatprep.subr.mxu0 0.0
        %1896 = vmatpush2.msra.mxu0 0.0
        %1897 = vmatprep.subr.mxu0 0.0
        %1898 = vmatpush2.msra.mxu0 0.0
        %1899 = vmatprep.subr.mxu0 0.0
        %1900 = vmatpush2.msra.mxu0 0.0
        %1901 = vmatprep.subr.mxu0 0.0
        %1902 = vmatpush2.msra.mxu0 0.0
        %1903 = vmatprep.subr.mxu0 0.0
        %1904 = vmatpush2.msra.mxu0 0.0
        %1905 = vmatprep.subr.mxu0 0.0
        %1906 = vmatpush2.msra.mxu0 0.0
        %1907 = vmatprep.subr.mxu0 0.0
        %1908 = vmatpush2.msra.mxu0 0.0
        %1909 = vmatprep.mubr.f32.mxu0 0.0
        %1910 = vmatmul.mubr.f32.gmra.mxu0 %v350
        %v1911 = vpop.f32.mrf.mxu0
        %v1912 = vadd.f32 %v329, %v1911
        %v1913 = vpop.f32.mrf.mxu0
        %1914 = vdwg.mxu0
        %v1916 = vsel %vm425, %v1912, 0
        %1918 = vmatprep.subr.mxu0 0.0
        %1919 = vmatpush1.msra.mxu0 0.0
        %1920 = vmatprep.subr.mxu0 0.0
        %1921 = vmatpush1.msra.mxu0 0.0
        %1922 = vmatprep.subr.mxu0 0.0
        %1923 = vmatpush1.msra.mxu0 0.0
        %1924 = vmatprep.subr.mxu0 0.0
        %1925 = vmatpush1.msra.mxu0 0.0
        %1926 = vmatprep.subr.mxu0 0.0
        %1927 = vmatpush1.msra.mxu0 0.0
        %1928 = vmatprep.subr.mxu0 0.0
        %1929 = vmatpush1.msra.mxu0 0.0
        %1930 = vmatprep.subr.mxu0 0.0
        %1931 = vmatpush1.msra.mxu0 0.0
        %1932 = vmatprep.subr.mxu0 0.0
        %1933 = vmatpush1.msra.mxu0 0.0
        %1934 = vmatprep.subr.mxu0 0.0
        %1935 = vmatpush1.msra.mxu0 0.0
        %1936 = vmatprep.subr.mxu0 0.0
        %1937 = vmatpush1.msra.mxu0 0.0
        %1938 = vmatprep.subr.mxu0 0.0
        %1939 = vmatpush1.msra.mxu0 0.0
        %1940 = vmatprep.subr.mxu0 0.0
        %1941 = vmatpush1.msra.mxu0 0.0
        %1942 = vmatprep.subr.mxu0 0.0
        %1943 = vmatpush1.msra.mxu0 0.0
        %1944 = vmatprep.subr.mxu0 0.0
        %1945 = vmatpush1.msra.mxu0 0.0
        %1946 = vmatprep.subr.mxu0 0.0
        %1947 = vmatpush1.msra.mxu0 %v324
        %1948 = vmatprep.subr.mxu0 0.0
        %1949 = vmatpush1.msra.mxu0 %v323
        %1950 = vmatprep.subr.mxu0 0.0
        %1951 = vmatpush2.msra.mxu0 0.0
        %1952 = vmatprep.subr.mxu0 0.0
        %1953 = vmatpush2.msra.mxu0 0.0
        %1954 = vmatprep.subr.mxu0 0.0
        %1955 = vmatpush2.msra.mxu0 0.0
        %1956 = vmatprep.subr.mxu0 0.0
        %1957 = vmatpush2.msra.mxu0 0.0
        %1958 = vmatprep.subr.mxu0 0.0
        %1959 = vmatpush2.msra.mxu0 0.0
        %1960 = vmatprep.subr.mxu0 0.0
        %1961 = vmatpush2.msra.mxu0 0.0
        %1962 = vmatprep.subr.mxu0 0.0
        %1963 = vmatpush2.msra.mxu0 0.0
        %1964 = vmatprep.subr.mxu0 0.0
        %1965 = vmatpush2.msra.mxu0 0.0
        %1966 = vmatprep.subr.mxu0 0.0
        %1967 = vmatpush2.msra.mxu0 0.0
        %1968 = vmatprep.subr.mxu0 0.0
        %1969 = vmatpush2.msra.mxu0 0.0
        %1970 = vmatprep.subr.mxu0 0.0
        %1971 = vmatpush2.msra.mxu0 0.0
        %1972 = vmatprep.subr.mxu0 0.0
        %1973 = vmatpush2.msra.mxu0 0.0
        %1974 = vmatprep.subr.mxu0 0.0
        %1975 = vmatpush2.msra.mxu0 0.0
        %1976 = vmatprep.subr.mxu0 0.0
        %1977 = vmatpush2.msra.mxu0 0.0
        %1978 = vmatprep.subr.mxu0 0.0
        %1979 = vmatpush2.msra.mxu0 0.0
        %1980 = vmatprep.subr.mxu0 0.0
        %1981 = vmatpush2.msra.mxu0 0.0
        %1982 = vmatprep.mubr.f32.mxu0 0.0
        %1983 = vmatmul.mubr.f32.gmra.mxu0 %v1916
        %v1984 = vpop.f32.mrf.mxu0
        %v1985 = vadd.f32 0.0, %v1984
        %v1986 = vpop.f32.mrf.mxu0
        %1987 = vdwg.mxu0
        %v1990 = vunpack.c.l.s4 1966171168
        %v1991 = vunpack.c.0.s8 %v1990
        %v1992 = vlaneseq
        %v1993 = vshrl.u32 %v1992, 7
        %v1994 = vsub.s32 %v1991, %v1993
        %v1995 = vrot.slane %v1985, %v1994
        %v1996 = vcombine.high %v1995, %v1995
        %v1998 = vunpack.c.l.s4 1966171168
        %v1999 = vunpack.c.0.s8 %v1998
        %v2000 = vlaneseq
        %v2001 = vshrl.u32 %v2000, 7
        %v2002 = vsub.s32 %v1999, %v2001
        %v2003 = vrot.slane %v1995, %v2002
        %v2005 = vunpack.c.l.s4 1966171168
        %v2006 = vunpack.c.0.s8 %v2005
        %v2007 = vlaneseq
        %v2008 = vshrl.u32 %v2007, 7
        %v2009 = vsub.s32 %v2006, %v2008
        %v2010 = vrot.slane %v1996, %v2009
        %2013 = vst.msk [vmem:[%s318 + $0x8] sm:$0x1] %vm524, %v2003
        %2014 = vst.msk [vmem:[%s318 + $0x18] sm:$0x1] %vm524, %v2010
        %v2015 = vld [vmem:[%s274 + $0x9] sm:$0x1]
        %v2016 = vld [vmem:[%s274 + $0x19] sm:$0x1]
        %v2017 = vld [vmem:[%s274 + $0x29] sm:$0x1]
        %v2018 = vld [vmem:[%s274 + $0x39] sm:$0x1]
        %v2023 = vrot.slane %v2016, 7
        %v2024 = vsel %vm340, %v2023, %v2015
        %v2025 = vrot.slane %v2017, 6
        %v2026 = vsel %vm343, %v2025, %v2024
        %v2027 = vrot.slane %v2018, 5
        %v2028 = vsel %vm346, %v2027, %v2026
        %v2029 = vsel %vm352, %v2028, 0
        %2031 = vmatprep.subr.mxu0 0.0
        %2032 = vmatpush1.msra.mxu0 0.0
        %2033 = vmatprep.subr.mxu0 0.0
        %2034 = vmatpush1.msra.mxu0 0.0
        %2035 = vmatprep.subr.mxu0 0.0
        %2036 = vmatpush1.msra.mxu0 0.0
        %2037 = vmatprep.subr.mxu0 0.0
        %2038 = vmatpush1.msra.mxu0 0.0
        %2039 = vmatprep.subr.mxu0 0.0
        %2040 = vmatpush1.msra.mxu0 0.0
        %2041 = vmatprep.subr.mxu0 0.0
        %2042 = vmatpush1.msra.mxu0 0.0
        %2043 = vmatprep.subr.mxu0 0.0
        %2044 = vmatpush1.msra.mxu0 0.0
        %2045 = vmatprep.subr.mxu0 0.0
        %2046 = vmatpush1.msra.mxu0 0.0
        %2047 = vmatprep.subr.mxu0 0.0
        %2048 = vmatpush1.msra.mxu0 0.0
        %2049 = vmatprep.subr.mxu0 0.0
        %2050 = vmatpush1.msra.mxu0 0.0
        %2051 = vmatprep.subr.mxu0 0.0
        %2052 = vmatpush1.msra.mxu0 0.0
        %2053 = vmatprep.subr.mxu0 0.0
        %2054 = vmatpush1.msra.mxu0 0.0
        %2055 = vmatprep.subr.mxu0 0.0
        %2056 = vmatpush1.msra.mxu0 0.0
        %2057 = vmatprep.subr.mxu0 0.0
        %2058 = vmatpush1.msra.mxu0 0.0
        %2059 = vmatprep.subr.mxu0 0.0
        %2060 = vmatpush1.msra.mxu0 0.0
        %2061 = vmatprep.subr.mxu0 0.0
        %2062 = vmatpush1.msra.mxu0 %v2029
        %2063 = vmatprep.subr.mxu0 0.0
        %2064 = vmatpush2.msra.mxu0 0.0
        %2065 = vmatprep.subr.mxu0 0.0
        %2066 = vmatpush2.msra.mxu0 0.0
        %2067 = vmatprep.subr.mxu0 0.0
        %2068 = vmatpush2.msra.mxu0 0.0
        %2069 = vmatprep.subr.mxu0 0.0
        %2070 = vmatpush2.msra.mxu0 0.0
        %2071 = vmatprep.subr.mxu0 0.0
        %2072 = vmatpush2.msra.mxu0 0.0
        %2073 = vmatprep.subr.mxu0 0.0
        %2074 = vmatpush2.msra.mxu0 0.0
        %2075 = vmatprep.subr.mxu0 0.0
        %2076 = vmatpush2.msra.mxu0 0.0
        %2077 = vmatprep.subr.mxu0 0.0
        %2078 = vmatpush2.msra.mxu0 0.0
        %2079 = vmatprep.subr.mxu0 0.0
        %2080 = vmatpush2.msra.mxu0 0.0
        %2081 = vmatprep.subr.mxu0 0.0
        %2082 = vmatpush2.msra.mxu0 0.0
        %2083 = vmatprep.subr.mxu0 0.0
        %2084 = vmatpush2.msra.mxu0 0.0
        %2085 = vmatprep.subr.mxu0 0.0
        %2086 = vmatpush2.msra.mxu0 0.0
        %2087 = vmatprep.subr.mxu0 0.0
        %2088 = vmatpush2.msra.mxu0 0.0
        %2089 = vmatprep.subr.mxu0 0.0
        %2090 = vmatpush2.msra.mxu0 0.0
        %2091 = vmatprep.subr.mxu0 0.0
        %2092 = vmatpush2.msra.mxu0 0.0
        %2093 = vmatprep.subr.mxu0 0.0
        %2094 = vmatpush2.msra.mxu0 0.0
        %2095 = vmatprep.mubr.f32.mxu0 0.0
        %2096 = vmatmul.mubr.f32.gmra.mxu0 %v350
        %v2097 = vpop.f32.mrf.mxu0
        %v2098 = vadd.f32 %v329, %v2097
        %v2099 = vpop.f32.mrf.mxu0
        %2100 = vdwg.mxu0
        %v2102 = vsel %vm425, %v2098, 0
        %2104 = vmatprep.subr.mxu0 0.0
        %2105 = vmatpush1.msra.mxu0 0.0
        %2106 = vmatprep.subr.mxu0 0.0
        %2107 = vmatpush1.msra.mxu0 0.0
        %2108 = vmatprep.subr.mxu0 0.0
        %2109 = vmatpush1.msra.mxu0 0.0
        %2110 = vmatprep.subr.mxu0 0.0
        %2111 = vmatpush1.msra.mxu0 0.0
        %2112 = vmatprep.subr.mxu0 0.0
        %2113 = vmatpush1.msra.mxu0 0.0
        %2114 = vmatprep.subr.mxu0 0.0
        %2115 = vmatpush1.msra.mxu0 0.0
        %2116 = vmatprep.subr.mxu0 0.0
        %2117 = vmatpush1.msra.mxu0 0.0
        %2118 = vmatprep.subr.mxu0 0.0
        %2119 = vmatpush1.msra.mxu0 0.0
        %2120 = vmatprep.subr.mxu0 0.0
        %2121 = vmatpush1.msra.mxu0 0.0
        %2122 = vmatprep.subr.mxu0 0.0
        %2123 = vmatpush1.msra.mxu0 0.0
        %2124 = vmatprep.subr.mxu0 0.0
        %2125 = vmatpush1.msra.mxu0 0.0
        %2126 = vmatprep.subr.mxu0 0.0
        %2127 = vmatpush1.msra.mxu0 0.0
        %2128 = vmatprep.subr.mxu0 0.0
        %2129 = vmatpush1.msra.mxu0 0.0
        %2130 = vmatprep.subr.mxu0 0.0
        %2131 = vmatpush1.msra.mxu0 0.0
        %2132 = vmatprep.subr.mxu0 0.0
        %2133 = vmatpush1.msra.mxu0 %v324
        %2134 = vmatprep.subr.mxu0 0.0
        %2135 = vmatpush1.msra.mxu0 %v323
        %2136 = vmatprep.subr.mxu0 0.0
        %2137 = vmatpush2.msra.mxu0 0.0
        %2138 = vmatprep.subr.mxu0 0.0
        %2139 = vmatpush2.msra.mxu0 0.0
        %2140 = vmatprep.subr.mxu0 0.0
        %2141 = vmatpush2.msra.mxu0 0.0
        %2142 = vmatprep.subr.mxu0 0.0
        %2143 = vmatpush2.msra.mxu0 0.0
        %2144 = vmatprep.subr.mxu0 0.0
        %2145 = vmatpush2.msra.mxu0 0.0
        %2146 = vmatprep.subr.mxu0 0.0
        %2147 = vmatpush2.msra.mxu0 0.0
        %2148 = vmatprep.subr.mxu0 0.0
        %2149 = vmatpush2.msra.mxu0 0.0
        %2150 = vmatprep.subr.mxu0 0.0
        %2151 = vmatpush2.msra.mxu0 0.0
        %2152 = vmatprep.subr.mxu0 0.0
        %2153 = vmatpush2.msra.mxu0 0.0
        %2154 = vmatprep.subr.mxu0 0.0
        %2155 = vmatpush2.msra.mxu0 0.0
        %2156 = vmatprep.subr.mxu0 0.0
        %2157 = vmatpush2.msra.mxu0 0.0
        %2158 = vmatprep.subr.mxu0 0.0
        %2159 = vmatpush2.msra.mxu0 0.0
        %2160 = vmatprep.subr.mxu0 0.0
        %2161 = vmatpush2.msra.mxu0 0.0
        %2162 = vmatprep.subr.mxu0 0.0
        %2163 = vmatpush2.msra.mxu0 0.0
        %2164 = vmatprep.subr.mxu0 0.0
        %2165 = vmatpush2.msra.mxu0 0.0
        %2166 = vmatprep.subr.mxu0 0.0
        %2167 = vmatpush2.msra.mxu0 0.0
        %2168 = vmatprep.mubr.f32.mxu0 0.0
        %2169 = vmatmul.mubr.f32.gmra.mxu0 %v2102
        %v2170 = vpop.f32.mrf.mxu0
        %v2171 = vadd.f32 0.0, %v2170
        %v2172 = vpop.f32.mrf.mxu0
        %2173 = vdwg.mxu0
        %v2176 = vunpack.c.l.s4 1966171168
        %v2177 = vunpack.c.0.s8 %v2176
        %v2178 = vlaneseq
        %v2179 = vshrl.u32 %v2178, 7
        %v2180 = vsub.s32 %v2177, %v2179
        %v2181 = vrot.slane %v2171, %v2180
        %v2182 = vcombine.high %v2181, %v2181
        %v2184 = vunpack.c.l.s4 1966171168
        %v2185 = vunpack.c.0.s8 %v2184
        %v2186 = vlaneseq
        %v2187 = vshrl.u32 %v2186, 7
        %v2188 = vsub.s32 %v2185, %v2187
        %v2189 = vrot.slane %v2181, %v2188
        %v2191 = vunpack.c.l.s4 1966171168
        %v2192 = vunpack.c.0.s8 %v2191
        %v2193 = vlaneseq
        %v2194 = vshrl.u32 %v2193, 7
        %v2195 = vsub.s32 %v2192, %v2194
        %v2196 = vrot.slane %v2182, %v2195
        %2199 = vst.msk [vmem:[%s318 + $0x9] sm:$0x1] %vm524, %v2189
        %2200 = vst.msk [vmem:[%s318 + $0x19] sm:$0x1] %vm524, %v2196
        %v2201 = vld [vmem:[%s274 + $0xa] sm:$0x1]
        %v2202 = vld [vmem:[%s274 + $0x1a] sm:$0x1]
        %v2203 = vld [vmem:[%s274 + $0x2a] sm:$0x1]
        %v2204 = vld [vmem:[%s274 + $0x3a] sm:$0x1]
        %v2209 = vrot.slane %v2202, 7
        %v2210 = vsel %vm340, %v2209, %v2201
        %v2211 = vrot.slane %v2203, 6
        %v2212 = vsel %vm343, %v2211, %v2210
        %v2213 = vrot.slane %v2204, 5
        %v2214 = vsel %vm346, %v2213, %v2212
        %v2215 = vsel %vm352, %v2214, 0
        %2217 = vmatprep.subr.mxu0 0.0
        %2218 = vmatpush1.msra.mxu0 0.0
        %2219 = vmatprep.subr.mxu0 0.0
        %2220 = vmatpush1.msra.mxu0 0.0
        %2221 = vmatprep.subr.mxu0 0.0
        %2222 = vmatpush1.msra.mxu0 0.0
        %2223 = vmatprep.subr.mxu0 0.0
        %2224 = vmatpush1.msra.mxu0 0.0
        %2225 = vmatprep.subr.mxu0 0.0
        %2226 = vmatpush1.msra.mxu0 0.0
        %2227 = vmatprep.subr.mxu0 0.0
        %2228 = vmatpush1.msra.mxu0 0.0
        %2229 = vmatprep.subr.mxu0 0.0
        %2230 = vmatpush1.msra.mxu0 0.0
        %2231 = vmatprep.subr.mxu0 0.0
        %2232 = vmatpush1.msra.mxu0 0.0
        %2233 = vmatprep.subr.mxu0 0.0
        %2234 = vmatpush1.msra.mxu0 0.0
        %2235 = vmatprep.subr.mxu0 0.0
        %2236 = vmatpush1.msra.mxu0 0.0
        %2237 = vmatprep.subr.mxu0 0.0
        %2238 = vmatpush1.msra.mxu0 0.0
        %2239 = vmatprep.subr.mxu0 0.0
        %2240 = vmatpush1.msra.mxu0 0.0
        %2241 = vmatprep.subr.mxu0 0.0
        %2242 = vmatpush1.msra.mxu0 0.0
        %2243 = vmatprep.subr.mxu0 0.0
        %2244 = vmatpush1.msra.mxu0 0.0
        %2245 = vmatprep.subr.mxu0 0.0
        %2246 = vmatpush1.msra.mxu0 0.0
        %2247 = vmatprep.subr.mxu0 0.0
        %2248 = vmatpush1.msra.mxu0 %v2215
        %2249 = vmatprep.subr.mxu0 0.0
        %2250 = vmatpush2.msra.mxu0 0.0
        %2251 = vmatprep.subr.mxu0 0.0
        %2252 = vmatpush2.msra.mxu0 0.0
        %2253 = vmatprep.subr.mxu0 0.0
        %2254 = vmatpush2.msra.mxu0 0.0
        %2255 = vmatprep.subr.mxu0 0.0
        %2256 = vmatpush2.msra.mxu0 0.0
        %2257 = vmatprep.subr.mxu0 0.0
        %2258 = vmatpush2.msra.mxu0 0.0
        %2259 = vmatprep.subr.mxu0 0.0
        %2260 = vmatpush2.msra.mxu0 0.0
        %2261 = vmatprep.subr.mxu0 0.0
        %2262 = vmatpush2.msra.mxu0 0.0
        %2263 = vmatprep.subr.mxu0 0.0
        %2264 = vmatpush2.msra.mxu0 0.0
        %2265 = vmatprep.subr.mxu0 0.0
        %2266 = vmatpush2.msra.mxu0 0.0
        %2267 = vmatprep.subr.mxu0 0.0
        %2268 = vmatpush2.msra.mxu0 0.0
        %2269 = vmatprep.subr.mxu0 0.0
        %2270 = vmatpush2.msra.mxu0 0.0
        %2271 = vmatprep.subr.mxu0 0.0
        %2272 = vmatpush2.msra.mxu0 0.0
        %2273 = vmatprep.subr.mxu0 0.0
        %2274 = vmatpush2.msra.mxu0 0.0
        %2275 = vmatprep.subr.mxu0 0.0
        %2276 = vmatpush2.msra.mxu0 0.0
        %2277 = vmatprep.subr.mxu0 0.0
        %2278 = vmatpush2.msra.mxu0 0.0
        %2279 = vmatprep.subr.mxu0 0.0
        %2280 = vmatpush2.msra.mxu0 0.0
        %2281 = vmatprep.mubr.f32.mxu0 0.0
        %2282 = vmatmul.mubr.f32.gmra.mxu0 %v350
        %v2283 = vpop.f32.mrf.mxu0
        %v2284 = vadd.f32 %v329, %v2283
        %v2285 = vpop.f32.mrf.mxu0
        %2286 = vdwg.mxu0
        %v2288 = vsel %vm425, %v2284, 0
        %2290 = vmatprep.subr.mxu0 0.0
        %2291 = vmatpush1.msra.mxu0 0.0
        %2292 = vmatprep.subr.mxu0 0.0
        %2293 = vmatpush1.msra.mxu0 0.0
        %2294 = vmatprep.subr.mxu0 0.0
        %2295 = vmatpush1.msra.mxu0 0.0
        %2296 = vmatprep.subr.mxu0 0.0
        %2297 = vmatpush1.msra.mxu0 0.0
        %2298 = vmatprep.subr.mxu0 0.0
        %2299 = vmatpush1.msra.mxu0 0.0
        %2300 = vmatprep.subr.mxu0 0.0
        %2301 = vmatpush1.msra.mxu0 0.0
        %2302 = vmatprep.subr.mxu0 0.0
        %2303 = vmatpush1.msra.mxu0 0.0
        %2304 = vmatprep.subr.mxu0 0.0
        %2305 = vmatpush1.msra.mxu0 0.0
        %2306 = vmatprep.subr.mxu0 0.0
        %2307 = vmatpush1.msra.mxu0 0.0
        %2308 = vmatprep.subr.mxu0 0.0
        %2309 = vmatpush1.msra.mxu0 0.0
        %2310 = vmatprep.subr.mxu0 0.0
        %2311 = vmatpush1.msra.mxu0 0.0
        %2312 = vmatprep.subr.mxu0 0.0
        %2313 = vmatpush1.msra.mxu0 0.0
        %2314 = vmatprep.subr.mxu0 0.0
        %2315 = vmatpush1.msra.mxu0 0.0
        %2316 = vmatprep.subr.mxu0 0.0
        %2317 = vmatpush1.msra.mxu0 0.0
        %2318 = vmatprep.subr.mxu0 0.0
        %2319 = vmatpush1.msra.mxu0 %v324
        %2320 = vmatprep.subr.mxu0 0.0
        %2321 = vmatpush1.msra.mxu0 %v323
        %2322 = vmatprep.subr.mxu0 0.0
        %2323 = vmatpush2.msra.mxu0 0.0
        %2324 = vmatprep.subr.mxu0 0.0
        %2325 = vmatpush2.msra.mxu0 0.0
        %2326 = vmatprep.subr.mxu0 0.0
        %2327 = vmatpush2.msra.mxu0 0.0
        %2328 = vmatprep.subr.mxu0 0.0
        %2329 = vmatpush2.msra.mxu0 0.0
        %2330 = vmatprep.subr.mxu0 0.0
        %2331 = vmatpush2.msra.mxu0 0.0
        %2332 = vmatprep.subr.mxu0 0.0
        %2333 = vmatpush2.msra.mxu0 0.0
        %2334 = vmatprep.subr.mxu0 0.0
        %2335 = vmatpush2.msra.mxu0 0.0
        %2336 = vmatprep.subr.mxu0 0.0
        %2337 = vmatpush2.msra.mxu0 0.0
        %2338 = vmatprep.subr.mxu0 0.0
        %2339 = vmatpush2.msra.mxu0 0.0
        %2340 = vmatprep.subr.mxu0 0.0
        %2341 = vmatpush2.msra.mxu0 0.0
        %2342 = vmatprep.subr.mxu0 0.0
        %2343 = vmatpush2.msra.mxu0 0.0
        %2344 = vmatprep.subr.mxu0 0.0
        %2345 = vmatpush2.msra.mxu0 0.0
        %2346 = vmatprep.subr.mxu0 0.0
        %2347 = vmatpush2.msra.mxu0 0.0
        %2348 = vmatprep.subr.mxu0 0.0
        %2349 = vmatpush2.msra.mxu0 0.0
        %2350 = vmatprep.subr.mxu0 0.0
        %2351 = vmatpush2.msra.mxu0 0.0
        %2352 = vmatprep.subr.mxu0 0.0
        %2353 = vmatpush2.msra.mxu0 0.0
        %2354 = vmatprep.mubr.f32.mxu0 0.0
        %2355 = vmatmul.mubr.f32.gmra.mxu0 %v2288
        %v2356 = vpop.f32.mrf.mxu0
        %v2357 = vadd.f32 0.0, %v2356
        %v2358 = vpop.f32.mrf.mxu0
        %2359 = vdwg.mxu0
        %v2362 = vunpack.c.l.s4 1966171168
        %v2363 = vunpack.c.0.s8 %v2362
        %v2364 = vlaneseq
        %v2365 = vshrl.u32 %v2364, 7
        %v2366 = vsub.s32 %v2363, %v2365
        %v2367 = vrot.slane %v2357, %v2366
        %v2368 = vcombine.high %v2367, %v2367
        %v2370 = vunpack.c.l.s4 1966171168
        %v2371 = vunpack.c.0.s8 %v2370
        %v2372 = vlaneseq
        %v2373 = vshrl.u32 %v2372, 7
        %v2374 = vsub.s32 %v2371, %v2373
        %v2375 = vrot.slane %v2367, %v2374
        %v2377 = vunpack.c.l.s4 1966171168
        %v2378 = vunpack.c.0.s8 %v2377
        %v2379 = vlaneseq
        %v2380 = vshrl.u32 %v2379, 7
        %v2381 = vsub.s32 %v2378, %v2380
        %v2382 = vrot.slane %v2368, %v2381
        %2385 = vst.msk [vmem:[%s318 + $0xa] sm:$0x1] %vm524, %v2375
        %2386 = vst.msk [vmem:[%s318 + $0x1a] sm:$0x1] %vm524, %v2382
        %v2387 = vld [vmem:[%s274 + $0xb] sm:$0x1]
        %v2388 = vld [vmem:[%s274 + $0x1b] sm:$0x1]
        %v2389 = vld [vmem:[%s274 + $0x2b] sm:$0x1]
        %v2390 = vld [vmem:[%s274 + $0x3b] sm:$0x1]
        %v2395 = vrot.slane %v2388, 7
        %v2396 = vsel %vm340, %v2395, %v2387
        %v2397 = vrot.slane %v2389, 6
        %v2398 = vsel %vm343, %v2397, %v2396
        %v2399 = vrot.slane %v2390, 5
        %v2400 = vsel %vm346, %v2399, %v2398
        %v2401 = vsel %vm352, %v2400, 0
        %2403 = vmatprep.subr.mxu0 0.0
        %2404 = vmatpush1.msra.mxu0 0.0
        %2405 = vmatprep.subr.mxu0 0.0
        %2406 = vmatpush1.msra.mxu0 0.0
        %2407 = vmatprep.subr.mxu0 0.0
        %2408 = vmatpush1.msra.mxu0 0.0
        %2409 = vmatprep.subr.mxu0 0.0
        %2410 = vmatpush1.msra.mxu0 0.0
        %2411 = vmatprep.subr.mxu0 0.0
        %2412 = vmatpush1.msra.mxu0 0.0
        %2413 = vmatprep.subr.mxu0 0.0
        %2414 = vmatpush1.msra.mxu0 0.0
        %2415 = vmatprep.subr.mxu0 0.0
        %2416 = vmatpush1.msra.mxu0 0.0
        %2417 = vmatprep.subr.mxu0 0.0
        %2418 = vmatpush1.msra.mxu0 0.0
        %2419 = vmatprep.subr.mxu0 0.0
        %2420 = vmatpush1.msra.mxu0 0.0
        %2421 = vmatprep.subr.mxu0 0.0
        %2422 = vmatpush1.msra.mxu0 0.0
        %2423 = vmatprep.subr.mxu0 0.0
        %2424 = vmatpush1.msra.mxu0 0.0
        %2425 = vmatprep.subr.mxu0 0.0
        %2426 = vmatpush1.msra.mxu0 0.0
        %2427 = vmatprep.subr.mxu0 0.0
        %2428 = vmatpush1.msra.mxu0 0.0
        %2429 = vmatprep.subr.mxu0 0.0
        %2430 = vmatpush1.msra.mxu0 0.0
        %2431 = vmatprep.subr.mxu0 0.0
        %2432 = vmatpush1.msra.mxu0 0.0
        %2433 = vmatprep.subr.mxu0 0.0
        %2434 = vmatpush1.msra.mxu0 %v2401
        %2435 = vmatprep.subr.mxu0 0.0
        %2436 = vmatpush2.msra.mxu0 0.0
        %2437 = vmatprep.subr.mxu0 0.0
        %2438 = vmatpush2.msra.mxu0 0.0
        %2439 = vmatprep.subr.mxu0 0.0
        %2440 = vmatpush2.msra.mxu0 0.0
        %2441 = vmatprep.subr.mxu0 0.0
        %2442 = vmatpush2.msra.mxu0 0.0
        %2443 = vmatprep.subr.mxu0 0.0
        %2444 = vmatpush2.msra.mxu0 0.0
        %2445 = vmatprep.subr.mxu0 0.0
        %2446 = vmatpush2.msra.mxu0 0.0
        %2447 = vmatprep.subr.mxu0 0.0
        %2448 = vmatpush2.msra.mxu0 0.0
        %2449 = vmatprep.subr.mxu0 0.0
        %2450 = vmatpush2.msra.mxu0 0.0
        %2451 = vmatprep.subr.mxu0 0.0
        %2452 = vmatpush2.msra.mxu0 0.0
        %2453 = vmatprep.subr.mxu0 0.0
        %2454 = vmatpush2.msra.mxu0 0.0
        %2455 = vmatprep.subr.mxu0 0.0
        %2456 = vmatpush2.msra.mxu0 0.0
        %2457 = vmatprep.subr.mxu0 0.0
        %2458 = vmatpush2.msra.mxu0 0.0
        %2459 = vmatprep.subr.mxu0 0.0
        %2460 = vmatpush2.msra.mxu0 0.0
        %2461 = vmatprep.subr.mxu0 0.0
        %2462 = vmatpush2.msra.mxu0 0.0
        %2463 = vmatprep.subr.mxu0 0.0
        %2464 = vmatpush2.msra.mxu0 0.0
        %2465 = vmatprep.subr.mxu0 0.0
        %2466 = vmatpush2.msra.mxu0 0.0
        %2467 = vmatprep.mubr.f32.mxu0 0.0
        %2468 = vmatmul.mubr.f32.gmra.mxu0 %v350
        %v2469 = vpop.f32.mrf.mxu0
        %v2470 = vadd.f32 %v329, %v2469
        %v2471 = vpop.f32.mrf.mxu0
        %2472 = vdwg.mxu0
        %v2474 = vsel %vm425, %v2470, 0
        %2476 = vmatprep.subr.mxu0 0.0
        %2477 = vmatpush1.msra.mxu0 0.0
        %2478 = vmatprep.subr.mxu0 0.0
        %2479 = vmatpush1.msra.mxu0 0.0
        %2480 = vmatprep.subr.mxu0 0.0
        %2481 = vmatpush1.msra.mxu0 0.0
        %2482 = vmatprep.subr.mxu0 0.0
        %2483 = vmatpush1.msra.mxu0 0.0
        %2484 = vmatprep.subr.mxu0 0.0
        %2485 = vmatpush1.msra.mxu0 0.0
        %2486 = vmatprep.subr.mxu0 0.0
        %2487 = vmatpush1.msra.mxu0 0.0
        %2488 = vmatprep.subr.mxu0 0.0
        %2489 = vmatpush1.msra.mxu0 0.0
        %2490 = vmatprep.subr.mxu0 0.0
        %2491 = vmatpush1.msra.mxu0 0.0
        %2492 = vmatprep.subr.mxu0 0.0
        %2493 = vmatpush1.msra.mxu0 0.0
        %2494 = vmatprep.subr.mxu0 0.0
        %2495 = vmatpush1.msra.mxu0 0.0
        %2496 = vmatprep.subr.mxu0 0.0
        %2497 = vmatpush1.msra.mxu0 0.0
        %2498 = vmatprep.subr.mxu0 0.0
        %2499 = vmatpush1.msra.mxu0 0.0
        %2500 = vmatprep.subr.mxu0 0.0
        %2501 = vmatpush1.msra.mxu0 0.0
        %2502 = vmatprep.subr.mxu0 0.0
        %2503 = vmatpush1.msra.mxu0 0.0
        %2504 = vmatprep.subr.mxu0 0.0
        %2505 = vmatpush1.msra.mxu0 %v324
        %2506 = vmatprep.subr.mxu0 0.0
        %2507 = vmatpush1.msra.mxu0 %v323
        %2508 = vmatprep.subr.mxu0 0.0
        %2509 = vmatpush2.msra.mxu0 0.0
        %2510 = vmatprep.subr.mxu0 0.0
        %2511 = vmatpush2.msra.mxu0 0.0
        %2512 = vmatprep.subr.mxu0 0.0
        %2513 = vmatpush2.msra.mxu0 0.0
        %2514 = vmatprep.subr.mxu0 0.0
        %2515 = vmatpush2.msra.mxu0 0.0
        %2516 = vmatprep.subr.mxu0 0.0
        %2517 = vmatpush2.msra.mxu0 0.0
        %2518 = vmatprep.subr.mxu0 0.0
        %2519 = vmatpush2.msra.mxu0 0.0
        %2520 = vmatprep.subr.mxu0 0.0
        %2521 = vmatpush2.msra.mxu0 0.0
        %2522 = vmatprep.subr.mxu0 0.0
        %2523 = vmatpush2.msra.mxu0 0.0
        %2524 = vmatprep.subr.mxu0 0.0
        %2525 = vmatpush2.msra.mxu0 0.0
        %2526 = vmatprep.subr.mxu0 0.0
        %2527 = vmatpush2.msra.mxu0 0.0
        %2528 = vmatprep.subr.mxu0 0.0
        %2529 = vmatpush2.msra.mxu0 0.0
        %2530 = vmatprep.subr.mxu0 0.0
        %2531 = vmatpush2.msra.mxu0 0.0
        %2532 = vmatprep.subr.mxu0 0.0
        %2533 = vmatpush2.msra.mxu0 0.0
        %2534 = vmatprep.subr.mxu0 0.0
        %2535 = vmatpush2.msra.mxu0 0.0
        %2536 = vmatprep.subr.mxu0 0.0
        %2537 = vmatpush2.msra.mxu0 0.0
        %2538 = vmatprep.subr.mxu0 0.0
        %2539 = vmatpush2.msra.mxu0 0.0
        %2540 = vmatprep.mubr.f32.mxu0 0.0
        %2541 = vmatmul.mubr.f32.gmra.mxu0 %v2474
        %v2542 = vpop.f32.mrf.mxu0
        %v2543 = vadd.f32 0.0, %v2542
        %v2544 = vpop.f32.mrf.mxu0
        %2545 = vdwg.mxu0
        %v2548 = vunpack.c.l.s4 1966171168
        %v2549 = vunpack.c.0.s8 %v2548
        %v2550 = vlaneseq
        %v2551 = vshrl.u32 %v2550, 7
        %v2552 = vsub.s32 %v2549, %v2551
        %v2553 = vrot.slane %v2543, %v2552
        %v2554 = vcombine.high %v2553, %v2553
        %v2556 = vunpack.c.l.s4 1966171168
        %v2557 = vunpack.c.0.s8 %v2556
        %v2558 = vlaneseq
        %v2559 = vshrl.u32 %v2558, 7
        %v2560 = vsub.s32 %v2557, %v2559
        %v2561 = vrot.slane %v2553, %v2560
        %v2563 = vunpack.c.l.s4 1966171168
        %v2564 = vunpack.c.0.s8 %v2563
        %v2565 = vlaneseq
        %v2566 = vshrl.u32 %v2565, 7
        %v2567 = vsub.s32 %v2564, %v2566
        %v2568 = vrot.slane %v2554, %v2567
        %2571 = vst.msk [vmem:[%s318 + $0xb] sm:$0x1] %vm524, %v2561
        %2572 = vst.msk [vmem:[%s318 + $0x1b] sm:$0x1] %vm524, %v2568
        %v2573 = vld [vmem:[%s274 + $0xc] sm:$0x1]
        %v2574 = vld [vmem:[%s274 + $0x1c] sm:$0x1]
        %v2575 = vld [vmem:[%s274 + $0x2c] sm:$0x1]
        %v2576 = vld [vmem:[%s274 + $0x3c] sm:$0x1]
        %v2581 = vrot.slane %v2574, 7
        %v2582 = vsel %vm340, %v2581, %v2573
        %v2583 = vrot.slane %v2575, 6
        %v2584 = vsel %vm343, %v2583, %v2582
        %v2585 = vrot.slane %v2576, 5
        %v2586 = vsel %vm346, %v2585, %v2584
        %v2587 = vsel %vm352, %v2586, 0
        %2589 = vmatprep.subr.mxu0 0.0
        %2590 = vmatpush1.msra.mxu0 0.0
        %2591 = vmatprep.subr.mxu0 0.0
        %2592 = vmatpush1.msra.mxu0 0.0
        %2593 = vmatprep.subr.mxu0 0.0
        %2594 = vmatpush1.msra.mxu0 0.0
        %2595 = vmatprep.subr.mxu0 0.0
        %2596 = vmatpush1.msra.mxu0 0.0
        %2597 = vmatprep.subr.mxu0 0.0
        %2598 = vmatpush1.msra.mxu0 0.0
        %2599 = vmatprep.subr.mxu0 0.0
        %2600 = vmatpush1.msra.mxu0 0.0
        %2601 = vmatprep.subr.mxu0 0.0
        %2602 = vmatpush1.msra.mxu0 0.0
        %2603 = vmatprep.subr.mxu0 0.0
        %2604 = vmatpush1.msra.mxu0 0.0
        %2605 = vmatprep.subr.mxu0 0.0
        %2606 = vmatpush1.msra.mxu0 0.0
        %2607 = vmatprep.subr.mxu0 0.0
        %2608 = vmatpush1.msra.mxu0 0.0
        %2609 = vmatprep.subr.mxu0 0.0
        %2610 = vmatpush1.msra.mxu0 0.0
        %2611 = vmatprep.subr.mxu0 0.0
        %2612 = vmatpush1.msra.mxu0 0.0
        %2613 = vmatprep.subr.mxu0 0.0
        %2614 = vmatpush1.msra.mxu0 0.0
        %2615 = vmatprep.subr.mxu0 0.0
        %2616 = vmatpush1.msra.mxu0 0.0
        %2617 = vmatprep.subr.mxu0 0.0
        %2618 = vmatpush1.msra.mxu0 0.0
        %2619 = vmatprep.subr.mxu0 0.0
        %2620 = vmatpush1.msra.mxu0 %v2587
        %2621 = vmatprep.subr.mxu0 0.0
        %2622 = vmatpush2.msra.mxu0 0.0
        %2623 = vmatprep.subr.mxu0 0.0
        %2624 = vmatpush2.msra.mxu0 0.0
        %2625 = vmatprep.subr.mxu0 0.0
        %2626 = vmatpush2.msra.mxu0 0.0
        %2627 = vmatprep.subr.mxu0 0.0
        %2628 = vmatpush2.msra.mxu0 0.0
        %2629 = vmatprep.subr.mxu0 0.0
        %2630 = vmatpush2.msra.mxu0 0.0
        %2631 = vmatprep.subr.mxu0 0.0
        %2632 = vmatpush2.msra.mxu0 0.0
        %2633 = vmatprep.subr.mxu0 0.0
        %2634 = vmatpush2.msra.mxu0 0.0
        %2635 = vmatprep.subr.mxu0 0.0
        %2636 = vmatpush2.msra.mxu0 0.0
        %2637 = vmatprep.subr.mxu0 0.0
        %2638 = vmatpush2.msra.mxu0 0.0
        %2639 = vmatprep.subr.mxu0 0.0
        %2640 = vmatpush2.msra.mxu0 0.0
        %2641 = vmatprep.subr.mxu0 0.0
        %2642 = vmatpush2.msra.mxu0 0.0
        %2643 = vmatprep.subr.mxu0 0.0
        %2644 = vmatpush2.msra.mxu0 0.0
        %2645 = vmatprep.subr.mxu0 0.0
        %2646 = vmatpush2.msra.mxu0 0.0
        %2647 = vmatprep.subr.mxu0 0.0
        %2648 = vmatpush2.msra.mxu0 0.0
        %2649 = vmatprep.subr.mxu0 0.0
        %2650 = vmatpush2.msra.mxu0 0.0
        %2651 = vmatprep.subr.mxu0 0.0
        %2652 = vmatpush2.msra.mxu0 0.0
        %2653 = vmatprep.mubr.f32.mxu0 0.0
        %2654 = vmatmul.mubr.f32.gmra.mxu0 %v350
        %v2655 = vpop.f32.mrf.mxu0
        %v2656 = vadd.f32 %v329, %v2655
        %v2657 = vpop.f32.mrf.mxu0
        %2658 = vdwg.mxu0
        %v2660 = vsel %vm425, %v2656, 0
        %2662 = vmatprep.subr.mxu0 0.0
        %2663 = vmatpush1.msra.mxu0 0.0
        %2664 = vmatprep.subr.mxu0 0.0
        %2665 = vmatpush1.msra.mxu0 0.0
        %2666 = vmatprep.subr.mxu0 0.0
        %2667 = vmatpush1.msra.mxu0 0.0
        %2668 = vmatprep.subr.mxu0 0.0
        %2669 = vmatpush1.msra.mxu0 0.0
        %2670 = vmatprep.subr.mxu0 0.0
        %2671 = vmatpush1.msra.mxu0 0.0
        %2672 = vmatprep.subr.mxu0 0.0
        %2673 = vmatpush1.msra.mxu0 0.0
        %2674 = vmatprep.subr.mxu0 0.0
        %2675 = vmatpush1.msra.mxu0 0.0
        %2676 = vmatprep.subr.mxu0 0.0
        %2677 = vmatpush1.msra.mxu0 0.0
        %2678 = vmatprep.subr.mxu0 0.0
        %2679 = vmatpush1.msra.mxu0 0.0
        %2680 = vmatprep.subr.mxu0 0.0
        %2681 = vmatpush1.msra.mxu0 0.0
        %2682 = vmatprep.subr.mxu0 0.0
        %2683 = vmatpush1.msra.mxu0 0.0
        %2684 = vmatprep.subr.mxu0 0.0
        %2685 = vmatpush1.msra.mxu0 0.0
        %2686 = vmatprep.subr.mxu0 0.0
        %2687 = vmatpush1.msra.mxu0 0.0
        %2688 = vmatprep.subr.mxu0 0.0
        %2689 = vmatpush1.msra.mxu0 0.0
        %2690 = vmatprep.subr.mxu0 0.0
        %2691 = vmatpush1.msra.mxu0 %v324
        %2692 = vmatprep.subr.mxu0 0.0
        %2693 = vmatpush1.msra.mxu0 %v323
        %2694 = vmatprep.subr.mxu0 0.0
        %2695 = vmatpush2.msra.mxu0 0.0
        %2696 = vmatprep.subr.mxu0 0.0
        %2697 = vmatpush2.msra.mxu0 0.0
        %2698 = vmatprep.subr.mxu0 0.0
        %2699 = vmatpush2.msra.mxu0 0.0
        %2700 = vmatprep.subr.mxu0 0.0
        %2701 = vmatpush2.msra.mxu0 0.0
        %2702 = vmatprep.subr.mxu0 0.0
        %2703 = vmatpush2.msra.mxu0 0.0
        %2704 = vmatprep.subr.mxu0 0.0
        %2705 = vmatpush2.msra.mxu0 0.0
        %2706 = vmatprep.subr.mxu0 0.0
        %2707 = vmatpush2.msra.mxu0 0.0
        %2708 = vmatprep.subr.mxu0 0.0
        %2709 = vmatpush2.msra.mxu0 0.0
        %2710 = vmatprep.subr.mxu0 0.0
        %2711 = vmatpush2.msra.mxu0 0.0
        %2712 = vmatprep.subr.mxu0 0.0
        %2713 = vmatpush2.msra.mxu0 0.0
        %2714 = vmatprep.subr.mxu0 0.0
        %2715 = vmatpush2.msra.mxu0 0.0
        %2716 = vmatprep.subr.mxu0 0.0
        %2717 = vmatpush2.msra.mxu0 0.0
        %2718 = vmatprep.subr.mxu0 0.0
        %2719 = vmatpush2.msra.mxu0 0.0
        %2720 = vmatprep.subr.mxu0 0.0
        %2721 = vmatpush2.msra.mxu0 0.0
        %2722 = vmatprep.subr.mxu0 0.0
        %2723 = vmatpush2.msra.mxu0 0.0
        %2724 = vmatprep.subr.mxu0 0.0
        %2725 = vmatpush2.msra.mxu0 0.0
        %2726 = vmatprep.mubr.f32.mxu0 0.0
        %2727 = vmatmul.mubr.f32.gmra.mxu0 %v2660
        %v2728 = vpop.f32.mrf.mxu0
        %v2729 = vadd.f32 0.0, %v2728
        %v2730 = vpop.f32.mrf.mxu0
        %2731 = vdwg.mxu0
        %v2734 = vunpack.c.l.s4 1966171168
        %v2735 = vunpack.c.0.s8 %v2734
        %v2736 = vlaneseq
        %v2737 = vshrl.u32 %v2736, 7
        %v2738 = vsub.s32 %v2735, %v2737
        %v2739 = vrot.slane %v2729, %v2738
        %v2740 = vcombine.high %v2739, %v2739
        %v2742 = vunpack.c.l.s4 1966171168
        %v2743 = vunpack.c.0.s8 %v2742
        %v2744 = vlaneseq
        %v2745 = vshrl.u32 %v2744, 7
        %v2746 = vsub.s32 %v2743, %v2745
        %v2747 = vrot.slane %v2739, %v2746
        %v2749 = vunpack.c.l.s4 1966171168
        %v2750 = vunpack.c.0.s8 %v2749
        %v2751 = vlaneseq
        %v2752 = vshrl.u32 %v2751, 7
        %v2753 = vsub.s32 %v2750, %v2752
        %v2754 = vrot.slane %v2740, %v2753
        %2757 = vst.msk [vmem:[%s318 + $0xc] sm:$0x1] %vm524, %v2747
        %2758 = vst.msk [vmem:[%s318 + $0x1c] sm:$0x1] %vm524, %v2754
        %v2759 = vld [vmem:[%s274 + $0xd] sm:$0x1]
        %v2760 = vld [vmem:[%s274 + $0x1d] sm:$0x1]
        %v2761 = vld [vmem:[%s274 + $0x2d] sm:$0x1]
        %v2762 = vld [vmem:[%s274 + $0x3d] sm:$0x1]
        %v2767 = vrot.slane %v2760, 7
        %v2768 = vsel %vm340, %v2767, %v2759
        %v2769 = vrot.slane %v2761, 6
        %v2770 = vsel %vm343, %v2769, %v2768
        %v2771 = vrot.slane %v2762, 5
        %v2772 = vsel %vm346, %v2771, %v2770
        %v2773 = vsel %vm352, %v2772, 0
        %2775 = vmatprep.subr.mxu0 0.0
        %2776 = vmatpush1.msra.mxu0 0.0
        %2777 = vmatprep.subr.mxu0 0.0
        %2778 = vmatpush1.msra.mxu0 0.0
        %2779 = vmatprep.subr.mxu0 0.0
        %2780 = vmatpush1.msra.mxu0 0.0
        %2781 = vmatprep.subr.mxu0 0.0
        %2782 = vmatpush1.msra.mxu0 0.0
        %2783 = vmatprep.subr.mxu0 0.0
        %2784 = vmatpush1.msra.mxu0 0.0
        %2785 = vmatprep.subr.mxu0 0.0
        %2786 = vmatpush1.msra.mxu0 0.0
        %2787 = vmatprep.subr.mxu0 0.0
        %2788 = vmatpush1.msra.mxu0 0.0
        %2789 = vmatprep.subr.mxu0 0.0
        %2790 = vmatpush1.msra.mxu0 0.0
        %2791 = vmatprep.subr.mxu0 0.0
        %2792 = vmatpush1.msra.mxu0 0.0
        %2793 = vmatprep.subr.mxu0 0.0
        %2794 = vmatpush1.msra.mxu0 0.0
        %2795 = vmatprep.subr.mxu0 0.0
        %2796 = vmatpush1.msra.mxu0 0.0
        %2797 = vmatprep.subr.mxu0 0.0
        %2798 = vmatpush1.msra.mxu0 0.0
        %2799 = vmatprep.subr.mxu0 0.0
        %2800 = vmatpush1.msra.mxu0 0.0
        %2801 = vmatprep.subr.mxu0 0.0
        %2802 = vmatpush1.msra.mxu0 0.0
        %2803 = vmatprep.subr.mxu0 0.0
        %2804 = vmatpush1.msra.mxu0 0.0
        %2805 = vmatprep.subr.mxu0 0.0
        %2806 = vmatpush1.msra.mxu0 %v2773
        %2807 = vmatprep.subr.mxu0 0.0
        %2808 = vmatpush2.msra.mxu0 0.0
        %2809 = vmatprep.subr.mxu0 0.0
        %2810 = vmatpush2.msra.mxu0 0.0
        %2811 = vmatprep.subr.mxu0 0.0
        %2812 = vmatpush2.msra.mxu0 0.0
        %2813 = vmatprep.subr.mxu0 0.0
        %2814 = vmatpush2.msra.mxu0 0.0
        %2815 = vmatprep.subr.mxu0 0.0
        %2816 = vmatpush2.msra.mxu0 0.0
        %2817 = vmatprep.subr.mxu0 0.0
        %2818 = vmatpush2.msra.mxu0 0.0
        %2819 = vmatprep.subr.mxu0 0.0
        %2820 = vmatpush2.msra.mxu0 0.0
        %2821 = vmatprep.subr.mxu0 0.0
        %2822 = vmatpush2.msra.mxu0 0.0
        %2823 = vmatprep.subr.mxu0 0.0
        %2824 = vmatpush2.msra.mxu0 0.0
        %2825 = vmatprep.subr.mxu0 0.0
        %2826 = vmatpush2.msra.mxu0 0.0
        %2827 = vmatprep.subr.mxu0 0.0
        %2828 = vmatpush2.msra.mxu0 0.0
        %2829 = vmatprep.subr.mxu0 0.0
        %2830 = vmatpush2.msra.mxu0 0.0
        %2831 = vmatprep.subr.mxu0 0.0
        %2832 = vmatpush2.msra.mxu0 0.0
        %2833 = vmatprep.subr.mxu0 0.0
        %2834 = vmatpush2.msra.mxu0 0.0
        %2835 = vmatprep.subr.mxu0 0.0
        %2836 = vmatpush2.msra.mxu0 0.0
        %2837 = vmatprep.subr.mxu0 0.0
        %2838 = vmatpush2.msra.mxu0 0.0
        %2839 = vmatprep.mubr.f32.mxu0 0.0
        %2840 = vmatmul.mubr.f32.gmra.mxu0 %v350
        %v2841 = vpop.f32.mrf.mxu0
        %v2842 = vadd.f32 %v329, %v2841
        %v2843 = vpop.f32.mrf.mxu0
        %2844 = vdwg.mxu0
        %v2846 = vsel %vm425, %v2842, 0
        %2848 = vmatprep.subr.mxu0 0.0
        %2849 = vmatpush1.msra.mxu0 0.0
        %2850 = vmatprep.subr.mxu0 0.0
        %2851 = vmatpush1.msra.mxu0 0.0
        %2852 = vmatprep.subr.mxu0 0.0
        %2853 = vmatpush1.msra.mxu0 0.0
        %2854 = vmatprep.subr.mxu0 0.0
        %2855 = vmatpush1.msra.mxu0 0.0
        %2856 = vmatprep.subr.mxu0 0.0
        %2857 = vmatpush1.msra.mxu0 0.0
        %2858 = vmatprep.subr.mxu0 0.0
        %2859 = vmatpush1.msra.mxu0 0.0
        %2860 = vmatprep.subr.mxu0 0.0
        %2861 = vmatpush1.msra.mxu0 0.0
        %2862 = vmatprep.subr.mxu0 0.0
        %2863 = vmatpush1.msra.mxu0 0.0
        %2864 = vmatprep.subr.mxu0 0.0
        %2865 = vmatpush1.msra.mxu0 0.0
        %2866 = vmatprep.subr.mxu0 0.0
        %2867 = vmatpush1.msra.mxu0 0.0
        %2868 = vmatprep.subr.mxu0 0.0
        %2869 = vmatpush1.msra.mxu0 0.0
        %2870 = vmatprep.subr.mxu0 0.0
        %2871 = vmatpush1.msra.mxu0 0.0
        %2872 = vmatprep.subr.mxu0 0.0
        %2873 = vmatpush1.msra.mxu0 0.0
        %2874 = vmatprep.subr.mxu0 0.0
        %2875 = vmatpush1.msra.mxu0 0.0
        %2876 = vmatprep.subr.mxu0 0.0
        %2877 = vmatpush1.msra.mxu0 %v324
        %2878 = vmatprep.subr.mxu0 0.0
        %2879 = vmatpush1.msra.mxu0 %v323
        %2880 = vmatprep.subr.mxu0 0.0
        %2881 = vmatpush2.msra.mxu0 0.0
        %2882 = vmatprep.subr.mxu0 0.0
        %2883 = vmatpush2.msra.mxu0 0.0
        %2884 = vmatprep.subr.mxu0 0.0
        %2885 = vmatpush2.msra.mxu0 0.0
        %2886 = vmatprep.subr.mxu0 0.0
        %2887 = vmatpush2.msra.mxu0 0.0
        %2888 = vmatprep.subr.mxu0 0.0
        %2889 = vmatpush2.msra.mxu0 0.0
        %2890 = vmatprep.subr.mxu0 0.0
        %2891 = vmatpush2.msra.mxu0 0.0
        %2892 = vmatprep.subr.mxu0 0.0
        %2893 = vmatpush2.msra.mxu0 0.0
        %2894 = vmatprep.subr.mxu0 0.0
        %2895 = vmatpush2.msra.mxu0 0.0
        %2896 = vmatprep.subr.mxu0 0.0
        %2897 = vmatpush2.msra.mxu0 0.0
        %2898 = vmatprep.subr.mxu0 0.0
        %2899 = vmatpush2.msra.mxu0 0.0
        %2900 = vmatprep.subr.mxu0 0.0
        %2901 = vmatpush2.msra.mxu0 0.0
        %2902 = vmatprep.subr.mxu0 0.0
        %2903 = vmatpush2.msra.mxu0 0.0
        %2904 = vmatprep.subr.mxu0 0.0
        %2905 = vmatpush2.msra.mxu0 0.0
        %2906 = vmatprep.subr.mxu0 0.0
        %2907 = vmatpush2.msra.mxu0 0.0
        %2908 = vmatprep.subr.mxu0 0.0
        %2909 = vmatpush2.msra.mxu0 0.0
        %2910 = vmatprep.subr.mxu0 0.0
        %2911 = vmatpush2.msra.mxu0 0.0
        %2912 = vmatprep.mubr.f32.mxu0 0.0
        %2913 = vmatmul.mubr.f32.gmra.mxu0 %v2846
        %v2914 = vpop.f32.mrf.mxu0
        %v2915 = vadd.f32 0.0, %v2914
        %v2916 = vpop.f32.mrf.mxu0
        %2917 = vdwg.mxu0
        %v2920 = vunpack.c.l.s4 1966171168
        %v2921 = vunpack.c.0.s8 %v2920
        %v2922 = vlaneseq
        %v2923 = vshrl.u32 %v2922, 7
        %v2924 = vsub.s32 %v2921, %v2923
        %v2925 = vrot.slane %v2915, %v2924
        %v2926 = vcombine.high %v2925, %v2925
        %v2928 = vunpack.c.l.s4 1966171168
        %v2929 = vunpack.c.0.s8 %v2928
        %v2930 = vlaneseq
        %v2931 = vshrl.u32 %v2930, 7
        %v2932 = vsub.s32 %v2929, %v2931
        %v2933 = vrot.slane %v2925, %v2932
        %v2935 = vunpack.c.l.s4 1966171168
        %v2936 = vunpack.c.0.s8 %v2935
        %v2937 = vlaneseq
        %v2938 = vshrl.u32 %v2937, 7
        %v2939 = vsub.s32 %v2936, %v2938
        %v2940 = vrot.slane %v2926, %v2939
        %2943 = vst.msk [vmem:[%s318 + $0xd] sm:$0x1] %vm524, %v2933
        %2944 = vst.msk [vmem:[%s318 + $0x1d] sm:$0x1] %vm524, %v2940
        %v2945 = vld [vmem:[%s274 + $0xe] sm:$0x1]
        %v2946 = vld [vmem:[%s274 + $0x1e] sm:$0x1]
        %v2947 = vld [vmem:[%s274 + $0x2e] sm:$0x1]
        %v2948 = vld [vmem:[%s274 + $0x3e] sm:$0x1]
        %v2953 = vrot.slane %v2946, 7
        %v2954 = vsel %vm340, %v2953, %v2945
        %v2955 = vrot.slane %v2947, 6
        %v2956 = vsel %vm343, %v2955, %v2954
        %v2957 = vrot.slane %v2948, 5
        %v2958 = vsel %vm346, %v2957, %v2956
        %v2959 = vsel %vm352, %v2958, 0
        %2961 = vmatprep.subr.mxu0 0.0
        %2962 = vmatpush1.msra.mxu0 0.0
        %2963 = vmatprep.subr.mxu0 0.0
        %2964 = vmatpush1.msra.mxu0 0.0
        %2965 = vmatprep.subr.mxu0 0.0
        %2966 = vmatpush1.msra.mxu0 0.0
        %2967 = vmatprep.subr.mxu0 0.0
        %2968 = vmatpush1.msra.mxu0 0.0
        %2969 = vmatprep.subr.mxu0 0.0
        %2970 = vmatpush1.msra.mxu0 0.0
        %2971 = vmatprep.subr.mxu0 0.0
        %2972 = vmatpush1.msra.mxu0 0.0
        %2973 = vmatprep.subr.mxu0 0.0
        %2974 = vmatpush1.msra.mxu0 0.0
        %2975 = vmatprep.subr.mxu0 0.0
        %2976 = vmatpush1.msra.mxu0 0.0
        %2977 = vmatprep.subr.mxu0 0.0
        %2978 = vmatpush1.msra.mxu0 0.0
        %2979 = vmatprep.subr.mxu0 0.0
        %2980 = vmatpush1.msra.mxu0 0.0
        %2981 = vmatprep.subr.mxu0 0.0
        %2982 = vmatpush1.msra.mxu0 0.0
        %2983 = vmatprep.subr.mxu0 0.0
        %2984 = vmatpush1.msra.mxu0 0.0
        %2985 = vmatprep.subr.mxu0 0.0
        %2986 = vmatpush1.msra.mxu0 0.0
        %2987 = vmatprep.subr.mxu0 0.0
        %2988 = vmatpush1.msra.mxu0 0.0
        %2989 = vmatprep.subr.mxu0 0.0
        %2990 = vmatpush1.msra.mxu0 0.0
        %2991 = vmatprep.subr.mxu0 0.0
        %2992 = vmatpush1.msra.mxu0 %v2959
        %2993 = vmatprep.subr.mxu0 0.0
        %2994 = vmatpush2.msra.mxu0 0.0
        %2995 = vmatprep.subr.mxu0 0.0
        %2996 = vmatpush2.msra.mxu0 0.0
        %2997 = vmatprep.subr.mxu0 0.0
        %2998 = vmatpush2.msra.mxu0 0.0
        %2999 = vmatprep.subr.mxu0 0.0
        %3000 = vmatpush2.msra.mxu0 0.0
        %3001 = vmatprep.subr.mxu0 0.0
        %3002 = vmatpush2.msra.mxu0 0.0
        %3003 = vmatprep.subr.mxu0 0.0
        %3004 = vmatpush2.msra.mxu0 0.0
        %3005 = vmatprep.subr.mxu0 0.0
        %3006 = vmatpush2.msra.mxu0 0.0
        %3007 = vmatprep.subr.mxu0 0.0
        %3008 = vmatpush2.msra.mxu0 0.0
        %3009 = vmatprep.subr.mxu0 0.0
        %3010 = vmatpush2.msra.mxu0 0.0
        %3011 = vmatprep.subr.mxu0 0.0
        %3012 = vmatpush2.msra.mxu0 0.0
        %3013 = vmatprep.subr.mxu0 0.0
        %3014 = vmatpush2.msra.mxu0 0.0
        %3015 = vmatprep.subr.mxu0 0.0
        %3016 = vmatpush2.msra.mxu0 0.0
        %3017 = vmatprep.subr.mxu0 0.0
        %3018 = vmatpush2.msra.mxu0 0.0
        %3019 = vmatprep.subr.mxu0 0.0
        %3020 = vmatpush2.msra.mxu0 0.0
        %3021 = vmatprep.subr.mxu0 0.0
        %3022 = vmatpush2.msra.mxu0 0.0
        %3023 = vmatprep.subr.mxu0 0.0
        %3024 = vmatpush2.msra.mxu0 0.0
        %3025 = vmatprep.mubr.f32.mxu0 0.0
        %3026 = vmatmul.mubr.f32.gmra.mxu0 %v350
        %v3027 = vpop.f32.mrf.mxu0
        %v3028 = vadd.f32 %v329, %v3027
        %v3029 = vpop.f32.mrf.mxu0
        %3030 = vdwg.mxu0
        %v3032 = vsel %vm425, %v3028, 0
        %3034 = vmatprep.subr.mxu0 0.0
        %3035 = vmatpush1.msra.mxu0 0.0
        %3036 = vmatprep.subr.mxu0 0.0
        %3037 = vmatpush1.msra.mxu0 0.0
        %3038 = vmatprep.subr.mxu0 0.0
        %3039 = vmatpush1.msra.mxu0 0.0
        %3040 = vmatprep.subr.mxu0 0.0
        %3041 = vmatpush1.msra.mxu0 0.0
        %3042 = vmatprep.subr.mxu0 0.0
        %3043 = vmatpush1.msra.mxu0 0.0
        %3044 = vmatprep.subr.mxu0 0.0
        %3045 = vmatpush1.msra.mxu0 0.0
        %3046 = vmatprep.subr.mxu0 0.0
        %3047 = vmatpush1.msra.mxu0 0.0
        %3048 = vmatprep.subr.mxu0 0.0
        %3049 = vmatpush1.msra.mxu0 0.0
        %3050 = vmatprep.subr.mxu0 0.0
        %3051 = vmatpush1.msra.mxu0 0.0
        %3052 = vmatprep.subr.mxu0 0.0
        %3053 = vmatpush1.msra.mxu0 0.0
        %3054 = vmatprep.subr.mxu0 0.0
        %3055 = vmatpush1.msra.mxu0 0.0
        %3056 = vmatprep.subr.mxu0 0.0
        %3057 = vmatpush1.msra.mxu0 0.0
        %3058 = vmatprep.subr.mxu0 0.0
        %3059 = vmatpush1.msra.mxu0 0.0
        %3060 = vmatprep.subr.mxu0 0.0
        %3061 = vmatpush1.msra.mxu0 0.0
        %3062 = vmatprep.subr.mxu0 0.0
        %3063 = vmatpush1.msra.mxu0 %v324
        %3064 = vmatprep.subr.mxu0 0.0
        %3065 = vmatpush1.msra.mxu0 %v323
        %3066 = vmatprep.subr.mxu0 0.0
        %3067 = vmatpush2.msra.mxu0 0.0
        %3068 = vmatprep.subr.mxu0 0.0
        %3069 = vmatpush2.msra.mxu0 0.0
        %3070 = vmatprep.subr.mxu0 0.0
        %3071 = vmatpush2.msra.mxu0 0.0
        %3072 = vmatprep.subr.mxu0 0.0
        %3073 = vmatpush2.msra.mxu0 0.0
        %3074 = vmatprep.subr.mxu0 0.0
        %3075 = vmatpush2.msra.mxu0 0.0
        %3076 = vmatprep.subr.mxu0 0.0
        %3077 = vmatpush2.msra.mxu0 0.0
        %3078 = vmatprep.subr.mxu0 0.0
        %3079 = vmatpush2.msra.mxu0 0.0
        %3080 = vmatprep.subr.mxu0 0.0
        %3081 = vmatpush2.msra.mxu0 0.0
        %3082 = vmatprep.subr.mxu0 0.0
        %3083 = vmatpush2.msra.mxu0 0.0
        %3084 = vmatprep.subr.mxu0 0.0
        %3085 = vmatpush2.msra.mxu0 0.0
        %3086 = vmatprep.subr.mxu0 0.0
        %3087 = vmatpush2.msra.mxu0 0.0
        %3088 = vmatprep.subr.mxu0 0.0
        %3089 = vmatpush2.msra.mxu0 0.0
        %3090 = vmatprep.subr.mxu0 0.0
        %3091 = vmatpush2.msra.mxu0 0.0
        %3092 = vmatprep.subr.mxu0 0.0
        %3093 = vmatpush2.msra.mxu0 0.0
        %3094 = vmatprep.subr.mxu0 0.0
        %3095 = vmatpush2.msra.mxu0 0.0
        %3096 = vmatprep.subr.mxu0 0.0
        %3097 = vmatpush2.msra.mxu0 0.0
        %3098 = vmatprep.mubr.f32.mxu0 0.0
        %3099 = vmatmul.mubr.f32.gmra.mxu0 %v3032
        %v3100 = vpop.f32.mrf.mxu0
        %v3101 = vadd.f32 0.0, %v3100
        %v3102 = vpop.f32.mrf.mxu0
        %3103 = vdwg.mxu0
        %v3106 = vunpack.c.l.s4 1966171168
        %v3107 = vunpack.c.0.s8 %v3106
        %v3108 = vlaneseq
        %v3109 = vshrl.u32 %v3108, 7
        %v3110 = vsub.s32 %v3107, %v3109
        %v3111 = vrot.slane %v3101, %v3110
        %v3112 = vcombine.high %v3111, %v3111
        %v3114 = vunpack.c.l.s4 1966171168
        %v3115 = vunpack.c.0.s8 %v3114
        %v3116 = vlaneseq
        %v3117 = vshrl.u32 %v3116, 7
        %v3118 = vsub.s32 %v3115, %v3117
        %v3119 = vrot.slane %v3111, %v3118
        %v3121 = vunpack.c.l.s4 1966171168
        %v3122 = vunpack.c.0.s8 %v3121
        %v3123 = vlaneseq
        %v3124 = vshrl.u32 %v3123, 7
        %v3125 = vsub.s32 %v3122, %v3124
        %v3126 = vrot.slane %v3112, %v3125
        %3129 = vst.msk [vmem:[%s318 + $0xe] sm:$0x1] %vm524, %v3119
        %3130 = vst.msk [vmem:[%s318 + $0x1e] sm:$0x1] %vm524, %v3126
        %v3131 = vld [vmem:[%s274 + $0xf] sm:$0x1]
        %v3132 = vld [vmem:[%s274 + $0x1f] sm:$0x1]
        %v3133 = vld [vmem:[%s274 + $0x2f] sm:$0x1]
        %v3134 = vld [vmem:[%s274 + $0x3f] sm:$0x1]
        %v3139 = vrot.slane %v3132, 7
        %v3140 = vsel %vm340, %v3139, %v3131
        %v3141 = vrot.slane %v3133, 6
        %v3142 = vsel %vm343, %v3141, %v3140
        %v3143 = vrot.slane %v3134, 5
        %v3144 = vsel %vm346, %v3143, %v3142
        %v3145 = vsel %vm352, %v3144, 0
        %3147 = vmatprep.subr.mxu0 0.0
        %3148 = vmatpush1.msra.mxu0 0.0
        %3149 = vmatprep.subr.mxu0 0.0
        %3150 = vmatpush1.msra.mxu0 0.0
        %3151 = vmatprep.subr.mxu0 0.0
        %3152 = vmatpush1.msra.mxu0 0.0
        %3153 = vmatprep.subr.mxu0 0.0
        %3154 = vmatpush1.msra.mxu0 0.0
        %3155 = vmatprep.subr.mxu0 0.0
        %3156 = vmatpush1.msra.mxu0 0.0
        %3157 = vmatprep.subr.mxu0 0.0
        %3158 = vmatpush1.msra.mxu0 0.0
        %3159 = vmatprep.subr.mxu0 0.0
        %3160 = vmatpush1.msra.mxu0 0.0
        %3161 = vmatprep.subr.mxu0 0.0
        %3162 = vmatpush1.msra.mxu0 0.0
        %3163 = vmatprep.subr.mxu0 0.0
        %3164 = vmatpush1.msra.mxu0 0.0
        %3165 = vmatprep.subr.mxu0 0.0
        %3166 = vmatpush1.msra.mxu0 0.0
        %3167 = vmatprep.subr.mxu0 0.0
        %3168 = vmatpush1.msra.mxu0 0.0
        %3169 = vmatprep.subr.mxu0 0.0
        %3170 = vmatpush1.msra.mxu0 0.0
        %3171 = vmatprep.subr.mxu0 0.0
        %3172 = vmatpush1.msra.mxu0 0.0
        %3173 = vmatprep.subr.mxu0 0.0
        %3174 = vmatpush1.msra.mxu0 0.0
        %3175 = vmatprep.subr.mxu0 0.0
        %3176 = vmatpush1.msra.mxu0 0.0
        %3177 = vmatprep.subr.mxu0 0.0
        %3178 = vmatpush1.msra.mxu0 %v3145
        %3179 = vmatprep.subr.mxu0 0.0
        %3180 = vmatpush2.msra.mxu0 0.0
        %3181 = vmatprep.subr.mxu0 0.0
        %3182 = vmatpush2.msra.mxu0 0.0
        %3183 = vmatprep.subr.mxu0 0.0
        %3184 = vmatpush2.msra.mxu0 0.0
        %3185 = vmatprep.subr.mxu0 0.0
        %3186 = vmatpush2.msra.mxu0 0.0
        %3187 = vmatprep.subr.mxu0 0.0
        %3188 = vmatpush2.msra.mxu0 0.0
        %3189 = vmatprep.subr.mxu0 0.0
        %3190 = vmatpush2.msra.mxu0 0.0
        %3191 = vmatprep.subr.mxu0 0.0
        %3192 = vmatpush2.msra.mxu0 0.0
        %3193 = vmatprep.subr.mxu0 0.0
        %3194 = vmatpush2.msra.mxu0 0.0
        %3195 = vmatprep.subr.mxu0 0.0
        %3196 = vmatpush2.msra.mxu0 0.0
        %3197 = vmatprep.subr.mxu0 0.0
        %3198 = vmatpush2.msra.mxu0 0.0
        %3199 = vmatprep.subr.mxu0 0.0
        %3200 = vmatpush2.msra.mxu0 0.0
        %3201 = vmatprep.subr.mxu0 0.0
        %3202 = vmatpush2.msra.mxu0 0.0
        %3203 = vmatprep.subr.mxu0 0.0
        %3204 = vmatpush2.msra.mxu0 0.0
        %3205 = vmatprep.subr.mxu0 0.0
        %3206 = vmatpush2.msra.mxu0 0.0
        %3207 = vmatprep.subr.mxu0 0.0
        %3208 = vmatpush2.msra.mxu0 0.0
        %3209 = vmatprep.subr.mxu0 0.0
        %3210 = vmatpush2.msra.mxu0 0.0
        %3211 = vmatprep.mubr.f32.mxu0 0.0
        %3212 = vmatmul.mubr.f32.gmra.mxu0 %v350
        %v3213 = vpop.f32.mrf.mxu0
        %v3214 = vadd.f32 %v329, %v3213
        %v3215 = vpop.f32.mrf.mxu0
        %3216 = vdwg.mxu0
        %v3218 = vsel %vm425, %v3214, 0
        %3220 = vmatprep.subr.mxu0 0.0
        %3221 = vmatpush1.msra.mxu0 0.0
        %3222 = vmatprep.subr.mxu0 0.0
        %3223 = vmatpush1.msra.mxu0 0.0
        %3224 = vmatprep.subr.mxu0 0.0
        %3225 = vmatpush1.msra.mxu0 0.0
        %3226 = vmatprep.subr.mxu0 0.0
        %3227 = vmatpush1.msra.mxu0 0.0
        %3228 = vmatprep.subr.mxu0 0.0
        %3229 = vmatpush1.msra.mxu0 0.0
        %3230 = vmatprep.subr.mxu0 0.0
        %3231 = vmatpush1.msra.mxu0 0.0
        %3232 = vmatprep.subr.mxu0 0.0
        %3233 = vmatpush1.msra.mxu0 0.0
        %3234 = vmatprep.subr.mxu0 0.0
        %3235 = vmatpush1.msra.mxu0 0.0
        %3236 = vmatprep.subr.mxu0 0.0
        %3237 = vmatpush1.msra.mxu0 0.0
        %3238 = vmatprep.subr.mxu0 0.0
        %3239 = vmatpush1.msra.mxu0 0.0
        %3240 = vmatprep.subr.mxu0 0.0
        %3241 = vmatpush1.msra.mxu0 0.0
        %3242 = vmatprep.subr.mxu0 0.0
        %3243 = vmatpush1.msra.mxu0 0.0
        %3244 = vmatprep.subr.mxu0 0.0
        %3245 = vmatpush1.msra.mxu0 0.0
        %3246 = vmatprep.subr.mxu0 0.0
        %3247 = vmatpush1.msra.mxu0 0.0
        %3248 = vmatprep.subr.mxu0 0.0
        %3249 = vmatpush1.msra.mxu0 %v324
        %3250 = vmatprep.subr.mxu0 0.0
        %3251 = vmatpush1.msra.mxu0 %v323
        %3252 = vmatprep.subr.mxu0 0.0
        %3253 = vmatpush2.msra.mxu0 0.0
        %3254 = vmatprep.subr.mxu0 0.0
        %3255 = vmatpush2.msra.mxu0 0.0
        %3256 = vmatprep.subr.mxu0 0.0
        %3257 = vmatpush2.msra.mxu0 0.0
        %3258 = vmatprep.subr.mxu0 0.0
        %3259 = vmatpush2.msra.mxu0 0.0
        %3260 = vmatprep.subr.mxu0 0.0
        %3261 = vmatpush2.msra.mxu0 0.0
        %3262 = vmatprep.subr.mxu0 0.0
        %3263 = vmatpush2.msra.mxu0 0.0
        %3264 = vmatprep.subr.mxu0 0.0
        %3265 = vmatpush2.msra.mxu0 0.0
        %3266 = vmatprep.subr.mxu0 0.0
        %3267 = vmatpush2.msra.mxu0 0.0
        %3268 = vmatprep.subr.mxu0 0.0
        %3269 = vmatpush2.msra.mxu0 0.0
        %3270 = vmatprep.subr.mxu0 0.0
        %3271 = vmatpush2.msra.mxu0 0.0
        %3272 = vmatprep.subr.mxu0 0.0
        %3273 = vmatpush2.msra.mxu0 0.0
        %3274 = vmatprep.subr.mxu0 0.0
        %3275 = vmatpush2.msra.mxu0 0.0
        %3276 = vmatprep.subr.mxu0 0.0
        %3277 = vmatpush2.msra.mxu0 0.0
        %3278 = vmatprep.subr.mxu0 0.0
        %3279 = vmatpush2.msra.mxu0 0.0
        %3280 = vmatprep.subr.mxu0 0.0
        %3281 = vmatpush2.msra.mxu0 0.0
        %3282 = vmatprep.subr.mxu0 0.0
        %3283 = vmatpush2.msra.mxu0 0.0
        %3284 = vmatprep.mubr.f32.mxu0 0.0
        %3285 = vmatmul.mubr.f32.gmra.mxu0 %v3218
        %v3286 = vpop.f32.mrf.mxu0
        %v3287 = vadd.f32 0.0, %v3286
        %v3288 = vpop.f32.mrf.mxu0
        %3289 = vdwg.mxu0
        %v3292 = vunpack.c.l.s4 1966171168
        %v3293 = vunpack.c.0.s8 %v3292
        %v3294 = vlaneseq
        %v3295 = vshrl.u32 %v3294, 7
        %v3296 = vsub.s32 %v3293, %v3295
        %v3297 = vrot.slane %v3287, %v3296
        %v3298 = vcombine.high %v3297, %v3297
        %v3300 = vunpack.c.l.s4 1966171168
        %v3301 = vunpack.c.0.s8 %v3300
        %v3302 = vlaneseq
        %v3303 = vshrl.u32 %v3302, 7
        %v3304 = vsub.s32 %v3301, %v3303
        %v3305 = vrot.slane %v3297, %v3304
        %v3307 = vunpack.c.l.s4 1966171168
        %v3308 = vunpack.c.0.s8 %v3307
        %v3309 = vlaneseq
        %v3310 = vshrl.u32 %v3309, 7
        %v3311 = vsub.s32 %v3308, %v3310
        %v3312 = vrot.slane %v3298, %v3311
        %3315 = vst.msk [vmem:[%s318 + $0xf] sm:$0x1] %vm524, %v3305
        %3316 = vst.msk [vmem:[%s318 + $0x1f] sm:$0x1] %vm524, %v3312
        %v3317 = vld [vmem:[%s283] sm:$0xff]
        %v3318 = vld [vmem:[%s283 + $0x8] sm:$0xff]
        %v3319 = vld [vmem:[%s283 + $0x10] sm:$0xff]
        %v3320 = vld [vmem:[%s283 + $0x18] sm:$0xff]
        %s3321 = scalar_lea.vmem %s318, 32 [#allocation8]
        %vm3322 = vcmask 523264
        %3323 = vst.msk [vmem:[%s3321] sm:$0xff] %vm3322, %v3317
        %3324 = vst.msk [vmem:[%s3321 + $0x8] sm:$0xff] %vm3322, %v3318
        %3325 = vst.msk [vmem:[%s3321 + $0x10] sm:$0xff] %vm3322, %v3319
        %3326 = vst.msk [vmem:[%s3321 + $0x18] sm:$0xff] %vm3322, %v3320
        %s3327 = sand.u32 %s166, 1
        %s3328 = scalar_lea.sflag [#allocation4], %s3327
        %s3329 = sand.u32 %s166, 1
        %s3330 = smul.addr %s3329, 64
        %s3331 = scalar_lea.vmem [#allocation8], %s3330
        // Predicated region
        $region53: #{tpu_custom_call.1} parent=39 // pred_check
          %p3332 = pneg %p176
        $region54: #{tpu_custom_call.1} parent=39 // pred_check_branch
          %3334 = sbr.rel (%p3332) target = $region56
        $region55: #{tpu_custom_call.1} parent=39 // pred_region
          %s3335 = smul.u32 2, %s30
          %s3337 = ssub.s32 1024, 1024
          %3338 = vsyncadd %s3328, %s3337
          %s3339 = smul.addr %s29, 8
          %s3340 = sadd.s32 %s3335, %s3339
          %s3341 = smul.addr %s3340, 128
          %s3342 = scalar_lea.hbm %s5, %s3341
          %s3343 = sshll.u32 %s3331, 4
          %s3344 = int_to_ptr.vmem [resolvable:$true] %s3343
          %3349 = dma.vmem_to_hbm [thread:$0]  %s3344, 1024, %s3342, %s3328, 128, 128, 8
        $region56: #{tpu_custom_call.1} parent=39 // pred_fallthru
          _
      $region40: #{tpu_custom_call.1} parent=5 // pred_fallthru
        _
      %p3350 = scmp.le.s32.totalorder 2, %s20
      // Predicated region
      $region57: #{tpu_custom_call.1} parent=5 // pred_check
        %p3351 = pneg %p3350
      $region58: #{tpu_custom_call.1} parent=5 // pred_check_branch
        %3353 = sbr.rel (%p3351) target = $region60
      $region59: #{tpu_custom_call.1} parent=5 // pred_region
        %s3354 = ssub.s32 %s20, 2
        // Predicated region
        $region61: #{tpu_custom_call.1} parent=59 // pred_check
          %p3355 = pneg %p182
        $region62: #{tpu_custom_call.1} parent=59 // pred_check_branch
          %3357 = sbr.rel (%p3355) target = $region64
        $region63: #{tpu_custom_call.1} parent=59 // pred_region
          %s3358 = sand.u32 %s167, 1
          %s3359 = scalar_lea.sflag [#allocation4], %s3358
          %s3360 = sand.u32 %s167, 1
          %s3361 = smul.addr %s3360, 64
          %s3362 = scalar_lea.vmem [#allocation8], %s3361
          %3363 = dma.done %s3359, 1024
        $region64: #{tpu_custom_call.1} parent=59 // pred_fallthru
          _
      $region60: #{tpu_custom_call.1} parent=5 // pred_fallthru
        _
    $region6: #{tpu_custom_call.1} parent=1 // loop_footer
      %s24 = sadd.s32 1, %s20
    $region7: #{tpu_custom_call.1} parent=1 // loop_footer_branch
      %19 = sbr.rel target = $region3
    $region8: #{tpu_custom_call.1} parent=1 // loop_exit
      _
    %3364 = vsyncpa [#allocation3], 1
    %s3365 = scalar_lea.sflag [#allocation3], 1
    %3366 = vsyncpa %s3365, 1
    %3367 = vsyncpa [#allocation6], 1
    %s3368 = scalar_lea.sflag [#allocation6], 1
    %3369 = vsyncpa %s3368, 1
    %3370 = vsyncpa [#allocation4], 1
    %s3371 = scalar_lea.sflag [#allocation4], 1
    %3372 = vsyncpa %s3371, 1

</llo_original>
